<compile_context>
chip_gen: v7x
topology: tpu7x:2x2x1
jax: 0.10.0
libtpu: 0.0.40
codegen_flags: <defaults>
</compile_context>

<pallas_src>
import functools
import math

import jax
import jax.numpy as jnp
from jax.experimental import pallas as pl
from jax.experimental.pallas import tpu as pltpu


# ------------------------------ tiling helpers -------------------------------

def _pick_tile(dim, target, base):
    """Largest tile <= target that divides dim and is a multiple of base.

    Falls back to the full dim, which is always legal (block dim == array dim).
    """
    if dim <= target:
        return dim
    t = (target // base) * base
    while t >= base:
        if dim % t == 0:
            return t
        t -= base
    return dim


def _vmem_limit(est_bytes):
    """Raise the scoped-VMEM limit only when the tiling needs it.

    Keeps the request well under v7x's 64 MiB physical VMEM; on v5e/v6e
    (128 MiB physical) this is always safe.
    """
    if est_bytes <= 24 << 20:
        return None                      # default scoped limit is plenty
    return int(min(2 * est_bytes, 48 << 20))


# ------------------------------ Pallas kernels -------------------------------

def _dense_kernel(x_ref, w_ref, b_ref, o_ref, acc_ref, *, activation):
    """Tiled o = act(x @ w + b).  Grid (N/tm, M/tn, K/tk); f32 accumulator."""
    @pl.when(pl.program_id(2) == 0)
    def _():
        acc_ref[...] = jnp.zeros_like(acc_ref)

    acc_ref[...] += jnp.dot(x_ref[...], w_ref[...],
                            preferred_element_type=jnp.float32)

    @pl.when(pl.program_id(2) == pl.num_programs(2) - 1)
    def _():
        y = acc_ref[...] + b_ref[...]
        if activation == "gelu":
            # tanh-approx GELU (BERT intermediate activation), all f32 math
            y = jax.nn.gelu(y, approximate=True)
        elif activation == "tanh":
            y = jnp.tanh(y)
        o_ref[...] = y.astype(o_ref.dtype)


def _dense_ln_kernel(x_ref, w_ref, b_ref, r_ref, g_ref, bt_ref, o_ref, acc_ref,
                     *, eps):
    """Tiled o = LayerNorm(x @ w + b + residual) * gamma + beta.

    Grid (N/tm, K/tk); the hidden (output) axis is NOT tiled so the layernorm
    reduction over hidden stays inside one block.  All epilogue math is f32.
    """
    @pl.when(pl.program_id(1) == 0)
    def _():
        acc_ref[...] = jnp.zeros_like(acc_ref)

    acc_ref[...] += jnp.dot(x_ref[...], w_ref[...],
                            preferred_element_type=jnp.float32)

    @pl.when(pl.program_id(1) == pl.num_programs(1) - 1)
    def _():
        y = acc_ref[...] + b_ref[...] + r_ref[...].astype(jnp.float32)
        mean = jnp.mean(y, axis=-1, keepdims=True)
        yc = y - mean
        var = jnp.mean(yc * yc, axis=-1, keepdims=True)
        yn = yc * jax.lax.rsqrt(var + eps)
        o_ref[...] = (yn * g_ref[...] + bt_ref[...]).astype(o_ref.dtype)


def _emb_layernorm_kernel(word_ref, pos_ref, type_ref, g_ref, b_ref, o_ref, *,
                          eps):
    """Fused (word + pos + type) embedding add + LayerNorm, one sequence/step."""
    x = (word_ref[0].astype(jnp.float32)
         + pos_ref[...].astype(jnp.float32)
         + type_ref[...].astype(jnp.float32))          # (S, H) f32
    mean = jnp.mean(x, axis=-1, keepdims=True)
    xc = x - mean
    var = jnp.mean(xc * xc, axis=-1, keepdims=True)
    y = xc * jax.lax.rsqrt(var + eps)
    o_ref[0] = (y * g_ref[...] + b_ref[...]).astype(o_ref.dtype)


def _attn_kernel(q_ref, k_ref, v_ref, bias_ref, o_ref, *, heads_per_block,
                 head_dim):
    """Attention for one (sequence, head-block) per grid step.

    q_ref/k_ref/v_ref: (1, S, heads_per_block*head_dim) bf16 slabs carved out
    of the fused QKV projection by BlockSpec (128-lane aligned for BERT-sized
    head_dim=64).  bias_ref: (1, 1, S) additive mask bias.  o_ref: same lane
    range of the (1, S, H) output.  Inputs stay bf16 (MXU accumulates f32);
    only the (S, S) scores / softmax are f32.
    """
    bias = bias_ref[0]                    # (1, S) f32 -> broadcasts over rows
    q_all = q_ref[0]                      # (S, hpb*hd) bf16
    k_all = k_ref[0]
    v_all = v_ref[0]
    # TODO(synk): flash-style online-softmax KV blocking for S >= ~1-2k; the
    # unblocked (S, S) score matrix is guarded by an assert in the wrapper.
    for h in range(heads_per_block):
        lo = h * head_dim
        hi = lo + head_dim
        q = q_all[:, lo:hi]               # 1/sqrt(head_dim) folded into W_q
        k = k_all[:, lo:hi]
        v = v_all[:, lo:hi]
        # q @ k^T without an explicit transpose (contract last dims).
        s = jax.lax.dot_general(q, k, (((1,), (1,)), ((), ())),
                                preferred_element_type=jnp.float32)
        s = s + bias
        s = s - jnp.max(s, axis=-1, keepdims=True)
        p = jnp.exp(s)
        p = p * pl.reciprocal(jnp.sum(p, axis=-1, keepdims=True), approx=True)
        ctx = jnp.dot(p.astype(v.dtype), v, preferred_element_type=jnp.float32)
        # store each head's context directly into its lane range (no concat,
        # live set bounded to one head).
        o_ref[0, :, lo:hi] = ctx.astype(o_ref.dtype)


# ------------------------------ Pallas wrappers ------------------------------

def dense(x, w, b, activation=None, out_dtype=None):
    """act(x @ w + b) with MXU-shaped tiling and f32 accumulation."""
    n, kdim = x.shape
    _, m = w.shape
    out_dtype = out_dtype or x.dtype
    out_isz = jnp.dtype(out_dtype).itemsize

    tm = _pick_tile(n, 512, 16)          # 16-row base: native bf16 (16,128) tile
    tn = _pick_tile(m, 512, 128)
    tk = _pick_tile(kdim, 1024, 128)
    grid = (n // tm, m // tn, kdim // tk)

    kern = functools.partial(_dense_kernel, activation=activation)
    # weight tile is re-streamed once per row tile
    bytes_accessed = (n * kdim * x.dtype.itemsize
                      + (n // tm) * kdim * m * w.dtype.itemsize
                      + n * m * out_isz)
    ce = pl.CostEstimate(flops=2 * n * m * kdim,
                         transcendentals=(n * m if activation else 0),
                         bytes_accessed=bytes_accessed)

    # double-buffered inputs/outputs + f32 accumulator
    vmem_est = (2 * (tm * tk * x.dtype.itemsize + tk * tn * w.dtype.itemsize
                     + tn * 4)
                + 2 * tm * tn * out_isz + tm * tn * 4)

    # TODO(synk): if profiling shows exposed DMA on the K-stream for small
    # batches, add pipeline_mode=pl.Buffered(3) to the weight BlockSpec and
    # prefetch the next layer's weights across pallas_calls.
    return pl.pallas_call(
        kern,
        out_shape=jax.ShapeDtypeStruct((n, m), out_dtype),
        grid=grid,
        in_specs=[
            pl.BlockSpec((tm, tk), lambda i, j, k: (i, k)),
            pl.BlockSpec((tk, tn), lambda i, j, k: (k, j)),
            pl.BlockSpec((1, tn), lambda i, j, k: (0, j)),
        ],
        out_specs=pl.BlockSpec((tm, tn), lambda i, j, k: (i, j)),
        scratch_shapes=[pltpu.VMEM((tm, tn), jnp.float32)],
        compiler_params=pltpu.CompilerParams(
            dimension_semantics=("parallel", "parallel", "arbitrary"),
            vmem_limit_bytes=_vmem_limit(vmem_est)),
        cost_estimate=ce,
    )(x, w, b.reshape(1, m).astype(jnp.float32))


def dense_add_layernorm(x, w, b, residual, gamma, beta, eps=1e-12,
                        out_dtype=None):
    """LayerNorm(x @ w + b + residual): matmul with fused residual+LN epilogue."""
    n, kdim = x.shape
    _, m = w.shape                       # m == hidden (not tiled: LN needs full row)
    out_dtype = out_dtype or x.dtype
    out_isz = jnp.dtype(out_dtype).itemsize

    tm = _pick_tile(n, 512, 16)
    tk = _pick_tile(kdim, 1024, 128)
    grid = (n // tm, kdim // tk)

    kern = functools.partial(_dense_ln_kernel, eps=eps)
    ce = pl.CostEstimate(
        flops=2 * n * m * kdim + 10 * n * m,
        transcendentals=n,
        bytes_accessed=(n * kdim * x.dtype.itemsize
                        + (n // tm) * kdim * m * w.dtype.itemsize
                        + n * m * residual.dtype.itemsize
                        + n * m * out_isz))

    vmem_est = (2 * (tm * tk * x.dtype.itemsize + tk * m * w.dtype.itemsize
                     + tm * m * residual.dtype.itemsize + 3 * m * 4)
                + 2 * tm * m * out_isz + tm * m * 4)

    return pl.pallas_call(
        kern,
        out_shape=jax.ShapeDtypeStruct((n, m), out_dtype),
        grid=grid,
        in_specs=[
            pl.BlockSpec((tm, tk), lambda i, k: (i, k)),
            pl.BlockSpec((tk, m), lambda i, k: (k, 0)),
            pl.BlockSpec((1, m), lambda i, k: (0, 0)),
            pl.BlockSpec((tm, m), lambda i, k: (i, 0)),
            pl.BlockSpec((1, m), lambda i, k: (0, 0)),
            pl.BlockSpec((1, m), lambda i, k: (0, 0)),
        ],
        out_specs=pl.BlockSpec((tm, m), lambda i, k: (i, 0)),
        scratch_shapes=[pltpu.VMEM((tm, m), jnp.float32)],
        compiler_params=pltpu.CompilerParams(
            dimension_semantics=("parallel", "arbitrary"),
            vmem_limit_bytes=_vmem_limit(vmem_est)),
        cost_estimate=ce,
    )(x, w, b.reshape(1, m).astype(jnp.float32), residual,
      gamma.reshape(1, m).astype(jnp.float32),
      beta.reshape(1, m).astype(jnp.float32))


def embed_layernorm(word, pos, type_vec, gamma, beta, eps=1e-12,
                    out_dtype=jnp.bfloat16):
    """Fused (word+pos+type) add + LayerNorm.  word: (N, S, H) f32 from gather."""
    n, s, h = word.shape
    kern = functools.partial(_emb_layernorm_kernel, eps=eps)
    return pl.pallas_call(
        kern,
        out_shape=jax.ShapeDtypeStruct((n, s, h), out_dtype),
        grid=(n,),
        in_specs=[
            pl.BlockSpec((1, s, h), lambda i: (i, 0, 0)),
            pl.BlockSpec((s, h), lambda i: (0, 0)),
            pl.BlockSpec((1, h), lambda i: (0, 0)),
            pl.BlockSpec((1, h), lambda i: (0, 0)),
            pl.BlockSpec((1, h), lambda i: (0, 0)),
        ],
        out_specs=pl.BlockSpec((1, s, h), lambda i: (i, 0, 0)),
        compiler_params=pltpu.CompilerParams(
            dimension_semantics=("parallel",)),
    )(word, pos, type_vec,
      gamma.reshape(1, h).astype(jnp.float32),
      beta.reshape(1, h).astype(jnp.float32))


def multihead_attention(qkv, bias, num_heads):
    """qkv: (N, S, 3H) fused Q|K|V; bias: (N, 1, S) f32; returns (N, S, H)."""
    n, s, h3 = qkv.shape
    hidden = h3 // 3
    head_dim = hidden // num_heads

    # choose heads-per-block so each Q/K/V slab is 128-lane aligned
    # (head_dim=64 -> head pairs, head_dim=128 -> single heads).
    hpb = None
    for cand in range(1, num_heads + 1):
        if num_heads % cand == 0 and (cand * head_dim) % 128 == 0:
            hpb = cand
            break

    heads_per_block = hpb if hpb is not None else num_heads
    bw = heads_per_block * head_dim

    # guard the unblocked (S, S) f32 score matrices (see TODO in kernel).
    assert heads_per_block * s * s * 4 <= 8 * 1024 * 1024, (
        "sequence too long for unblocked attention; add KV blocking")

    if hpb is not None:
        # carve lane-aligned Q/K/V head blocks straight out of the fused slab
        q_blocks = hidden // bw
        grid = (n, num_heads // hpb)
        in_specs = [
            pl.BlockSpec((1, s, bw), lambda i, hp: (i, 0, hp)),
            pl.BlockSpec((1, s, bw), lambda i, hp: (i, 0, hp + q_blocks)),
            pl.BlockSpec((1, s, bw), lambda i, hp: (i, 0, hp + 2 * q_blocks)),
            pl.BlockSpec((1, 1, s), lambda i, hp: (i, 0, 0)),
        ]
        operands = (qkv, qkv, qkv, bias)
    else:
        # tiny / unaligned head_dim fallback: split Q/K/V in XLA, full-H blocks
        q = qkv[:, :, :hidden]
        k = qkv[:, :, hidden:2 * hidden]
        v = qkv[:, :, 2 * hidden:]
        grid = (n, 1)
        in_specs = [
            pl.BlockSpec((1, s, hidden), lambda i, hp: (i, 0, 0)),
            pl.BlockSpec((1, s, hidden), lambda i, hp: (i, 0, 0)),
            pl.BlockSpec((1, s, hidden), lambda i, hp: (i, 0, 0)),
            pl.BlockSpec((1, 1, s), lambda i, hp: (i, 0, 0)),
        ]
        operands = (q, k, v, bias)

    kern = functools.partial(_attn_kernel, heads_per_block=heads_per_block,
                             head_dim=head_dim)
    ce = pl.CostEstimate(
        flops=4 * n * num_heads * s * s * head_dim,
        transcendentals=n * num_heads * s * s,
        bytes_accessed=(3 * n * s * hidden + n * s * hidden) * qkv.dtype.itemsize
                       + n * s * 4)

    return pl.pallas_call(
        kern,
        out_shape=jax.ShapeDtypeStruct((n, s, hidden), qkv.dtype),
        grid=grid,
        in_specs=in_specs,
        out_specs=pl.BlockSpec((1, s, bw), lambda i, hp: (i, 0, hp)),
        compiler_params=pltpu.CompilerParams(
            dimension_semantics=("parallel", "parallel")),
        cost_estimate=ce,
    )(*operands)


# ---------------------------- Synthetic BERT model ---------------------------

def init_bert_params(key, *, vocab_size, hidden, num_layers, num_heads,
                     intermediate, max_position, type_vocab=2, scale=0.02):
    head_dim = hidden // num_heads
    q_scale = 1.0 / math.sqrt(head_dim)   # folded into W_q (and b_q) once here

    def nrm(k, shape):
        return scale * jax.random.normal(k, shape, dtype=jnp.float32)

    keys = iter(jax.random.split(key, 16 + 16 * num_layers))
    p = {
        "word_emb": nrm(next(keys), (vocab_size, hidden)),
        "pos_emb": nrm(next(keys), (max_position, hidden)),
        "type_emb": nrm(next(keys), (type_vocab, hidden)),
        "emb_ln_g": jnp.ones((hidden,), jnp.float32),
        "emb_ln_b": jnp.zeros((hidden,), jnp.float32),
        "pooler_w": nrm(next(keys), (hidden, hidden)).astype(jnp.bfloat16),
        "pooler_b": jnp.zeros((hidden,), jnp.float32),
        "layers": [],
    }
    for _ in range(num_layers):
        # fused QKV projection: (H, 3H) weight with 1/sqrt(head_dim) pre-folded
        # into the Q columns (the Q bias, here zero, would be scaled likewise).
        wq = nrm(next(keys), (hidden, hidden)) * q_scale
        wk = nrm(next(keys), (hidden, hidden))
        wv = nrm(next(keys), (hidden, hidden))
        layer = {
            "wqkv": jnp.concatenate([wq, wk, wv], axis=1).astype(jnp.bfloat16),
            "bqkv": jnp.zeros((3 * hidden,), jnp.float32),
            "wo": nrm(next(keys), (hidden, hidden)).astype(jnp.bfloat16),
            "bo": jnp.zeros((hidden,), jnp.float32),
            "ln1_g": jnp.ones((hidden,), jnp.float32),
            "ln1_b": jnp.zeros((hidden,), jnp.float32),
            "w1": nrm(next(keys), (hidden, intermediate)).astype(jnp.bfloat16),
            "b1": jnp.zeros((intermediate,), jnp.float32),
            "w2": nrm(next(keys), (intermediate, hidden)).astype(jnp.bfloat16),
            "b2": jnp.zeros((hidden,), jnp.float32),
            "ln2_g": jnp.ones((hidden,), jnp.float32),
            "ln2_b": jnp.zeros((hidden,), jnp.float32),
        }
        p["layers"].append(layer)
    return p


def bert_encoder_forward(params, input_ids, attention_mask=None, *, num_heads):
    """Mirrors BERTEncoder.forward: (B, P, L) ids -> (B, P, H) pooler output."""
    batch_size, num_paragraphs, seq_len = input_ids.shape
    if attention_mask is None:
        attention_mask = jnp.ones_like(input_ids)

    # reshape (B, P, L) -> (N, L) with N = B*P (matches torch.reshape(-1, L))
    ids = input_ids.reshape(-1, seq_len)
    mask = attention_mask.reshape(-1, seq_len).astype(jnp.float32)
    n_seq = ids.shape[0]
    hidden = params["word_emb"].shape[1]

    # ---- embeddings: gather stays in XLA; add + LayerNorm fused in Pallas ----
    # TODO(synk): embedding gather (jnp.take) kept as XLA glue; a DMA-gather
    # Pallas kernel is possible but not a hot path here.
    word = jnp.take(params["word_emb"], ids, axis=0)            # (N, S, H) f32
    h = embed_layernorm(word, params["pos_emb"][:seq_len],
                        params["type_emb"][0:1],
                        params["emb_ln_g"], params["emb_ln_b"])  # (N, S, H) bf16
    h = h.reshape(n_seq * seq_len, hidden)

    # additive attention bias per sequence: (N, 1, S), f32
    attn_bias = ((1.0 - mask) * -10000.0)[:, None, :]

    for layer in params["layers"]:
        # --- self attention: fused QKV matmul -> head-pair-blocked attention ---
        qkv = dense(h, layer["wqkv"], layer["bqkv"])            # (N*S, 3H) bf16
        ctx = multihead_attention(qkv.reshape(n_seq, seq_len, 3 * hidden),
                                  attn_bias, num_heads)         # (N, S, H) bf16
        ctx2d = ctx.reshape(n_seq * seq_len, hidden)
        # output projection with fused residual-add + LayerNorm epilogue
        h = dense_add_layernorm(ctx2d, layer["wo"], layer["bo"], h,
                                layer["ln1_g"], layer["ln1_b"])

        # --- feed forward: gelu fused into matmul 1, residual+LN into matmul 2 ---
        inter = dense(h, layer["w1"], layer["b1"], activation="gelu")
        h = dense_add_layernorm(inter, layer["w2"], layer["b2"], h,
                                layer["ln2_g"], layer["ln2_b"])

    # ---- pooler: dense(tanh) on the [CLS] token hidden state ----
    cls_hidden = h.reshape(n_seq, seq_len, hidden)[:, 0, :]     # (N, H) bf16
    pooler_output = dense(cls_hidden, params["pooler_w"], params["pooler_b"],
                          activation="tanh", out_dtype=jnp.float32)

    # reshape back to (batch_size, num_paragraphs, hidden)
    return pooler_output.reshape(batch_size, num_paragraphs, hidden)


# ------------------------------------ main -----------------------------------

if __name__ == "__main__":
    # small synthetic config with real BERT head geometry (head_dim=64 so the
    # 128-lane head-pair attention path is exercised)
    VOCAB = 50
    HIDDEN = 128
    NUM_LAYERS = 2
    NUM_HEADS = 2          # head_dim = 64
    INTERMEDIATE = 256
    MAX_POS = 32

    B, P, L = 2, 3, 16     # batch, paragraphs per doc, tokens per paragraph

    root = jax.random.PRNGKey(0)
    k_param, k_ids = jax.random.split(root)
    params = init_bert_params(
        k_param, vocab_size=VOCAB, hidden=HIDDEN, num_layers=NUM_LAYERS,
        num_heads=NUM_HEADS, intermediate=INTERMEDIATE, max_position=MAX_POS)

    input_ids = jax.random.randint(k_ids, (B, P, L), 0, VOCAB, dtype=jnp.int32)

    fwd = jax.jit(functools.partial(bert_encoder_forward, num_heads=NUM_HEADS))
    out = fwd(params, input_ids)
    out = jax.block_until_ready(out)

    assert out.shape == (B, P, HIDDEN), out.shape
    assert out.dtype == jnp.float32
    assert bool(jnp.all(jnp.isfinite(out)))
    print("KERNEL_OK")
</pallas_src>

<mosaic_0001>
module attributes {stable_mosaic.version = 11 : i64} {
  func.func @_emb_layernorm_kernel(%arg0: i32, %arg1: memref<1x16x128xf32, #tpu.memory_space<vmem>>, %arg2: memref<16x128xf32, #tpu.memory_space<vmem>>, %arg3: memref<1x128xf32, #tpu.memory_space<vmem>>, %arg4: memref<1x128xf32, #tpu.memory_space<vmem>>, %arg5: memref<1x128xf32, #tpu.memory_space<vmem>>, %arg6: memref<1x16x128xbf16, #tpu.memory_space<vmem>>) attributes {dimension_semantics = [#tpu.dimension_semantics<parallel>], iteration_bounds = array<i64: 6>, scalar_prefetch = 0 : i64, scratch_operands = 0 : i64, tpu.core_type = #tpu.core_type<tc>, window_params = [{transform_indices = @transform_0, window_bounds = array<i64: 1, 16, 128>}, {pipeline_mode = #tpu.pipeline_mode<synchronous>, transform_indices = @transform_1, window_bounds = array<i64: 16, 128>}, {pipeline_mode = #tpu.pipeline_mode<synchronous>, transform_indices = @transform_2, window_bounds = array<i64: 1, 128>}, {pipeline_mode = #tpu.pipeline_mode<synchronous>, transform_indices = @transform_3, window_bounds = array<i64: 1, 128>}, {pipeline_mode = #tpu.pipeline_mode<synchronous>, transform_indices = @transform_4, window_bounds = array<i64: 1, 128>}, {transform_indices = @transform_5, window_bounds = array<i64: 1, 16, 128>}]} {
    %c0 = arith.constant 0 : index
    %c0_0 = arith.constant 0 : index
    %c0_1 = arith.constant 0 : index
    %0 = vector.load %arg1[%c0, %c0_0, %c0_1] : memref<1x16x128xf32, #tpu.memory_space<vmem>>, vector<1x16x128xf32>
    %1 = vector.shape_cast %0 : vector<1x16x128xf32> to vector<16x128xf32>
    %c0_2 = arith.constant 0 : index
    %c0_3 = arith.constant 0 : index
    %2 = vector.load %arg2[%c0_2, %c0_3] : memref<16x128xf32, #tpu.memory_space<vmem>>, vector<16x128xf32>
    %3 = arith.addf %1, %2 : vector<16x128xf32>
    %c0_4 = arith.constant 0 : index
    %c0_5 = arith.constant 0 : index
    %4 = vector.load %arg3[%c0_4, %c0_5] : memref<1x128xf32, #tpu.memory_space<vmem>>, vector<1x128xf32>
    %5 = vector.broadcast %4 : vector<1x128xf32> to vector<16x128xf32>
    %6 = arith.addf %3, %5 : vector<16x128xf32>
    %cst = arith.constant dense<0.000000e+00> : vector<16xf32>
    %7 = vector.multi_reduction <add>, %6, %cst [1] : vector<16x128xf32> to vector<16xf32>
    %8 = vector.shape_cast %7 : vector<16xf32> to vector<16x1xf32>
    %cst_6 = arith.constant 1.280000e+02 : f32
    %9 = vector.broadcast %cst_6 : f32 to vector<16x1xf32>
    %10 = arith.divf %8, %9 : vector<16x1xf32>
    %11 = vector.broadcast %10 : vector<16x1xf32> to vector<16x128xf32>
    %12 = arith.subf %6, %11 : vector<16x128xf32>
    %13 = arith.mulf %12, %12 : vector<16x128xf32>
    %cst_7 = arith.constant dense<0.000000e+00> : vector<16xf32>
    %14 = vector.multi_reduction <add>, %13, %cst_7 [1] : vector<16x128xf32> to vector<16xf32>
    %15 = vector.shape_cast %14 : vector<16xf32> to vector<16x1xf32>
    %cst_8 = arith.constant 1.280000e+02 : f32
    %16 = vector.broadcast %cst_8 : f32 to vector<16x1xf32>
    %17 = arith.divf %15, %16 : vector<16x1xf32>
    %cst_9 = arith.constant 9.99999996E-13 : f32
    %18 = vector.broadcast %cst_9 : f32 to vector<16x1xf32>
    %19 = arith.addf %17, %18 : vector<16x1xf32>
    %20 = math.rsqrt %19 : vector<16x1xf32>
    %21 = vector.broadcast %20 : vector<16x1xf32> to vector<16x128xf32>
    %22 = arith.mulf %12, %21 : vector<16x128xf32>
    %c0_10 = arith.constant 0 : index
    %c0_11 = arith.constant 0 : index
    %23 = vector.load %arg4[%c0_10, %c0_11] : memref<1x128xf32, #tpu.memory_space<vmem>>, vector<1x128xf32>
    %24 = vector.broadcast %23 : vector<1x128xf32> to vector<16x128xf32>
    %25 = arith.mulf %22, %24 : vector<16x128xf32>
    %c0_12 = arith.constant 0 : index
    %c0_13 = arith.constant 0 : index
    %26 = vector.load %arg5[%c0_12, %c0_13] : memref<1x128xf32, #tpu.memory_space<vmem>>, vector<1x128xf32>
    %27 = vector.broadcast %26 : vector<1x128xf32> to vector<16x128xf32>
    %28 = arith.addf %25, %27 : vector<16x128xf32>
    %29 = arith.truncf %28 : vector<16x128xf32> to vector<16x128xbf16>
    %c0_14 = arith.constant 0 : index
    %c0_15 = arith.constant 0 : index
    %c0_16 = arith.constant 0 : index
    %30 = vector.load %arg6[%c0_14, %c0_15, %c0_16] : memref<1x16x128xbf16, #tpu.memory_space<vmem>>, vector<1x16x128xbf16>
    %31 = vector.shape_cast %30 : vector<1x16x128xbf16> to vector<16x128xbf16>
    %32 = vector.shape_cast %29 : vector<16x128xbf16> to vector<1x16x128xbf16>
    tpu.vector_store %arg6[%c0_14, %c0_15, %c0_16], %32 {strides = array<i32>} : memref<1x16x128xbf16, #tpu.memory_space<vmem>>, vector<1x16x128xbf16>,
    return
  }
  func.func @transform_0(%arg0: i32) -> (i32, i32, i32) {
    %c0_i32 = arith.constant 0 : i32
    %c0_i32_0 = arith.constant 0 : i32
    %c0_i32_1 = arith.constant 0 : i32
    return %arg0, %c0_i32, %c0_i32_0 : i32, i32, i32
  }
  func.func @transform_1(%arg0: i32) -> (i32, i32) {
    %c0_i32 = arith.constant 0 : i32
    %c0_i32_0 = arith.constant 0 : i32
    %c0_i32_1 = arith.constant 0 : i32
    return %c0_i32, %c0_i32_0 : i32, i32
  }
  func.func @transform_2(%arg0: i32) -> (i32, i32) {
    %c0_i32 = arith.constant 0 : i32
    %c0_i32_0 = arith.constant 0 : i32
    %c0_i32_1 = arith.constant 0 : i32
    return %c0_i32, %c0_i32_0 : i32, i32
  }
  func.func @transform_3(%arg0: i32) -> (i32, i32) {
    %c0_i32 = arith.constant 0 : i32
    %c0_i32_0 = arith.constant 0 : i32
    %c0_i32_1 = arith.constant 0 : i32
    return %c0_i32, %c0_i32_0 : i32, i32
  }
  func.func @transform_4(%arg0: i32) -> (i32, i32) {
    %c0_i32 = arith.constant 0 : i32
    %c0_i32_0 = arith.constant 0 : i32
    %c0_i32_1 = arith.constant 0 : i32
    return %c0_i32, %c0_i32_0 : i32, i32
  }
  func.func @transform_5(%arg0: i32) -> (i32, i32, i32) {
    %c0_i32 = arith.constant 0 : i32
    %c0_i32_0 = arith.constant 0 : i32
    %c0_i32_1 = arith.constant 0 : i32
    return %arg0, %c0_i32, %c0_i32_0 : i32, i32, i32
  }
}

module attributes {stable_mosaic.version = 11 : i64} {
  func.func @_dense_kernel(%arg0: i32, %arg1: i32, %arg2: i32, %arg3: memref<96x128xbf16, #tpu.memory_space<vmem>>, %arg4: memref<128x384xbf16, #tpu.memory_space<vmem>>, %arg5: memref<1x384xf32, #tpu.memory_space<vmem>>, %arg6: memref<96x384xbf16, #tpu.memory_space<vmem>>, %arg7: memref<96x384xf32, #tpu.memory_space<vmem>>) attributes {dimension_semantics = [#tpu.dimension_semantics<parallel>, #tpu.dimension_semantics<parallel>, #tpu.dimension_semantics<arbitrary>], iteration_bounds = array<i64: 1, 1, 1>, scalar_prefetch = 0 : i64, scratch_operands = 1 : i64, tpu.core_type = #tpu.core_type<tc>, window_params = [{transform_indices = @transform_0, window_bounds = array<i64: 96, 128>}, {transform_indices = @transform_1, window_bounds = array<i64: 128, 384>}, {transform_indices = @transform_2, window_bounds = array<i64: 1, 384>}, {transform_indices = @transform_3, window_bounds = array<i64: 96, 384>}]} {
    %c0_i32 = arith.constant 0 : i32
    %0 = arith.cmpi eq, %arg2, %c0_i32 : i32
    %1 = arith.extui %0 : i1 to i32
    %c0_i32_0 = arith.constant 0 : i32
    %2 = arith.cmpi ne, %1, %c0_i32_0 : i32
    scf.if %2 {
      %cst_10 = arith.constant 0.000000e+00 : f32
      %12 = vector.broadcast %cst_10 : f32 to vector<96x384xf32>
      %c0_11 = arith.constant 0 : index
      %c0_12 = arith.constant 0 : index
      %13 = vector.load %arg7[%c0_11, %c0_12] : memref<96x384xf32, #tpu.memory_space<vmem>>, vector<96x384xf32>
      tpu.vector_store %arg7[%c0_11, %c0_12], %12 {strides = array<i32>} : memref<96x384xf32, #tpu.memory_space<vmem>>, vector<96x384xf32>,
    } else {
    }
    %c0 = arith.constant 0 : index
    %c0_1 = arith.constant 0 : index
    %3 = vector.load %arg7[%c0, %c0_1] : memref<96x384xf32, #tpu.memory_space<vmem>>, vector<96x384xf32>
    %c0_2 = arith.constant 0 : index
    %c0_3 = arith.constant 0 : index
    %4 = vector.load %arg3[%c0_2, %c0_3] : memref<96x128xbf16, #tpu.memory_space<vmem>>, vector<96x128xbf16>
    %c0_4 = arith.constant 0 : index
    %c0_5 = arith.constant 0 : index
    %5 = vector.load %arg4[%c0_4, %c0_5] : memref<128x384xbf16, #tpu.memory_space<vmem>>, vector<128x384xbf16>
    %cst = arith.constant dense<0.000000e+00> : vector<96x384xf32>
    %6 = tpu.matmul %4, %5, %cst {dimension_numbers = #tpu.dot_dimension_numbers<[1], [0], [0], [1], [0, 0, 1, 1], [], []>} : vector<96x128xbf16>, vector<128x384xbf16>, vector<96x384xf32> -> vector<96x384xf32>
    %7 = arith.addf %3, %6 : vector<96x384xf32>
    %c0_6 = arith.constant 0 : index
    %c0_7 = arith.constant 0 : index
    %8 = vector.load %arg7[%c0_6, %c0_7] : memref<96x384xf32, #tpu.memory_space<vmem>>, vector<96x384xf32>
    tpu.vector_store %arg7[%c0_6, %c0_7], %7 {strides = array<i32>} : memref<96x384xf32, #tpu.memory_space<vmem>>, vector<96x384xf32>,
    %c0_i32_8 = arith.constant 0 : i32
    %9 = arith.cmpi eq, %arg2, %c0_i32_8 : i32
    %10 = arith.extui %9 : i1 to i32
    %c0_i32_9 = arith.constant 0 : i32
    %11 = arith.cmpi ne, %10, %c0_i32_9 : i32
    scf.if %11 {
      %c0_10 = arith.constant 0 : index
      %c0_11 = arith.constant 0 : index
      %12 = vector.load %arg7[%c0_10, %c0_11] : memref<96x384xf32, #tpu.memory_space<vmem>>, vector<96x384xf32>
      %c0_12 = arith.constant 0 : index
      %c0_13 = arith.constant 0 : index
      %13 = vector.load %arg5[%c0_12, %c0_13] : memref<1x384xf32, #tpu.memory_space<vmem>>, vector<1x384xf32>
      %14 = vector.broadcast %13 : vector<1x384xf32> to vector<96x384xf32>
      %15 = arith.addf %12, %14 : vector<96x384xf32>
      %16 = arith.truncf %15 : vector<96x384xf32> to vector<96x384xbf16>
      %c0_14 = arith.constant 0 : index
      %c0_15 = arith.constant 0 : index
      %17 = vector.load %arg6[%c0_14, %c0_15] : memref<96x384xbf16, #tpu.memory_space<vmem>>, vector<96x384xbf16>
      tpu.vector_store %arg6[%c0_14, %c0_15], %16 {strides = array<i32>} : memref<96x384xbf16, #tpu.memory_space<vmem>>, vector<96x384xbf16>,
    } else {
    }
    return
  }
  func.func @transform_0(%arg0: i32, %arg1: i32, %arg2: i32) -> (i32, i32) {
    %c0_i32 = arith.constant 0 : i32
    return %arg0, %arg2 : i32, i32
  }
  func.func @transform_1(%arg0: i32, %arg1: i32, %arg2: i32) -> (i32, i32) {
    %c0_i32 = arith.constant 0 : i32
    return %arg2, %arg1 : i32, i32
  }
  func.func @transform_2(%arg0: i32, %arg1: i32, %arg2: i32) -> (i32, i32) {
    %c0_i32 = arith.constant 0 : i32
    %c0_i32_0 = arith.constant 0 : i32
    return %c0_i32, %arg1 : i32, i32
  }
  func.func @transform_3(%arg0: i32, %arg1: i32, %arg2: i32) -> (i32, i32) {
    %c0_i32 = arith.constant 0 : i32
    return %arg0, %arg1 : i32, i32
  }
}

module attributes {stable_mosaic.version = 11 : i64} {
  func.func @_attn_kernel(%arg0: i32, %arg1: i32, %arg2: memref<1x16x128xbf16, #tpu.memory_space<vmem>>, %arg3: memref<1x16x128xbf16, #tpu.memory_space<vmem>>, %arg4: memref<1x16x128xbf16, #tpu.memory_space<vmem>>, %arg5: memref<1x1x16xf32, #tpu.memory_space<vmem>>, %arg6: memref<1x16x128xbf16, #tpu.memory_space<vmem>>) attributes {dimension_semantics = [#tpu.dimension_semantics<parallel>, #tpu.dimension_semantics<parallel>], iteration_bounds = array<i64: 6, 1>, scalar_prefetch = 0 : i64, scratch_operands = 0 : i64, tpu.core_type = #tpu.core_type<tc>, window_params = [{transform_indices = @transform_0, window_bounds = array<i64: 1, 16, 128>}, {transform_indices = @transform_1, window_bounds = array<i64: 1, 16, 128>}, {transform_indices = @transform_2, window_bounds = array<i64: 1, 16, 128>}, {transform_indices = @transform_3, window_bounds = array<i64: 1, 1, 16>}, {transform_indices = @transform_4, window_bounds = array<i64: 1, 16, 128>}]} {
    %c0 = arith.constant 0 : index
    %c0_0 = arith.constant 0 : index
    %c0_1 = arith.constant 0 : index
    %0 = vector.load %arg5[%c0, %c0_0, %c0_1] : memref<1x1x16xf32, #tpu.memory_space<vmem>>, vector<1x1x16xf32>
    %1 = vector.shape_cast %0 : vector<1x1x16xf32> to vector<1x16xf32>
    %c0_2 = arith.constant 0 : index
    %c0_3 = arith.constant 0 : index
    %c0_4 = arith.constant 0 : index
    %2 = vector.load %arg2[%c0_2, %c0_3, %c0_4] : memref<1x16x128xbf16, #tpu.memory_space<vmem>>, vector<1x16x128xbf16>
    %3 = vector.shape_cast %2 : vector<1x16x128xbf16> to vector<16x128xbf16>
    %c0_5 = arith.constant 0 : index
    %c0_6 = arith.constant 0 : index
    %c0_7 = arith.constant 0 : index
    %4 = vector.load %arg3[%c0_5, %c0_6, %c0_7] : memref<1x16x128xbf16, #tpu.memory_space<vmem>>, vector<1x16x128xbf16>
    %5 = vector.shape_cast %4 : vector<1x16x128xbf16> to vector<16x128xbf16>
    %c0_8 = arith.constant 0 : index
    %c0_9 = arith.constant 0 : index
    %c0_10 = arith.constant 0 : index
    %6 = vector.load %arg4[%c0_8, %c0_9, %c0_10] : memref<1x16x128xbf16, #tpu.memory_space<vmem>>, vector<1x16x128xbf16>
    %7 = vector.shape_cast %6 : vector<1x16x128xbf16> to vector<16x128xbf16>
    %8 = vector.extract_strided_slice %3 {offsets = [0, 0], sizes = [16, 64], strides = [1, 1]} : vector<16x128xbf16> to vector<16x64xbf16>
    %9 = vector.extract_strided_slice %5 {offsets = [0, 0], sizes = [16, 64], strides = [1, 1]} : vector<16x128xbf16> to vector<16x64xbf16>
    %10 = vector.extract_strided_slice %7 {offsets = [0, 0], sizes = [16, 64], strides = [1, 1]} : vector<16x128xbf16> to vector<16x64xbf16>
    %cst = arith.constant dense<0.000000e+00> : vector<16x16xf32>
    %11 = tpu.matmul %8, %9, %cst {dimension_numbers = #tpu.dot_dimension_numbers<[1], [1], [0], [0], [0, 0, 1, 0], [], []>} : vector<16x64xbf16>, vector<16x64xbf16>, vector<16x16xf32> -> vector<16x16xf32>
    %12 = vector.broadcast %1 : vector<1x16xf32> to vector<16x16xf32>
    %13 = arith.addf %11, %12 : vector<16x16xf32>
    %cst_11 = arith.constant dense<0xFF800000> : vector<16xf32>
    %14 = vector.multi_reduction <maximumf>, %13, %cst_11 [1] : vector<16x16xf32> to vector<16xf32>
    %15 = vector.shape_cast %14 : vector<16xf32> to vector<16x1xf32>
    %16 = vector.broadcast %15 : vector<16x1xf32> to vector<16x16xf32>
    %17 = arith.subf %13, %16 : vector<16x16xf32>
    %18 = math.exp %17 : vector<16x16xf32>
    %cst_12 = arith.constant dense<0.000000e+00> : vector<16xf32>
    %19 = vector.multi_reduction <add>, %18, %cst_12 [1] : vector<16x16xf32> to vector<16xf32>
    %20 = vector.shape_cast %19 : vector<16xf32> to vector<16x1xf32>
    %21 = tpu.reciprocal %20 {approx = true} : vector<16x1xf32> -> vector<16x1xf32>
    %22 = vector.broadcast %21 : vector<16x1xf32> to vector<16x16xf32>
    %23 = arith.mulf %18, %22 : vector<16x16xf32>
    %24 = arith.truncf %23 : vector<16x16xf32> to vector<16x16xbf16>
    %cst_13 = arith.constant dense<0.000000e+00> : vector<16x64xf32>
    %25 = tpu.matmul %24, %10, %cst_13 {dimension_numbers = #tpu.dot_dimension_numbers<[1], [0], [0], [1], [0, 0, 1, 1], [], []>} : vector<16x16xbf16>, vector<16x64xbf16>, vector<16x64xf32> -> vector<16x64xf32>
    %26 = arith.truncf %25 : vector<16x64xf32> to vector<16x64xbf16>
    %c0_14 = arith.constant 0 : index
    %c0_15 = arith.constant 0 : index
    %c0_16 = arith.constant 0 : index
    %27 = vector.load %arg6[%c0_14, %c0_15, %c0_16] : memref<1x16x128xbf16, #tpu.memory_space<vmem>>, vector<1x16x64xbf16>
    %28 = vector.shape_cast %27 : vector<1x16x64xbf16> to vector<16x64xbf16>
    %29 = vector.shape_cast %26 : vector<16x64xbf16> to vector<1x16x64xbf16>
    tpu.vector_store %arg6[%c0_14, %c0_15, %c0_16], %29 {strides = array<i32>} : memref<1x16x128xbf16, #tpu.memory_space<vmem>>, vector<1x16x64xbf16>,
    %30 = vector.extract_strided_slice %3 {offsets = [0, 64], sizes = [16, 64], strides = [1, 1]} : vector<16x128xbf16> to vector<16x64xbf16>
    %31 = vector.extract_strided_slice %5 {offsets = [0, 64], sizes = [16, 64], strides = [1, 1]} : vector<16x128xbf16> to vector<16x64xbf16>
    %32 = vector.extract_strided_slice %7 {offsets = [0, 64], sizes = [16, 64], strides = [1, 1]} : vector<16x128xbf16> to vector<16x64xbf16>
    %cst_17 = arith.constant dense<0.000000e+00> : vector<16x16xf32>
    %33 = tpu.matmul %30, %31, %cst_17 {dimension_numbers = #tpu.dot_dimension_numbers<[1], [1], [0], [0], [0, 0, 1, 0], [], []>} : vector<16x64xbf16>, vector<16x64xbf16>, vector<16x16xf32> -> vector<16x16xf32>
    %34 = vector.broadcast %1 : vector<1x16xf32> to vector<16x16xf32>
    %35 = arith.addf %33, %34 : vector<16x16xf32>
    %cst_18 = arith.constant dense<0xFF800000> : vector<16xf32>
    %36 = vector.multi_reduction <maximumf>, %35, %cst_18 [1] : vector<16x16xf32> to vector<16xf32>
    %37 = vector.shape_cast %36 : vector<16xf32> to vector<16x1xf32>
    %38 = vector.broadcast %37 : vector<16x1xf32> to vector<16x16xf32>
    %39 = arith.subf %35, %38 : vector<16x16xf32>
    %40 = math.exp %39 : vector<16x16xf32>
    %cst_19 = arith.constant dense<0.000000e+00> : vector<16xf32>
    %41 = vector.multi_reduction <add>, %40, %cst_19 [1] : vector<16x16xf32> to vector<16xf32>
    %42 = vector.shape_cast %41 : vector<16xf32> to vector<16x1xf32>
    %43 = tpu.reciprocal %42 {approx = true} : vector<16x1xf32> -> vector<16x1xf32>
    %44 = vector.broadcast %43 : vector<16x1xf32> to vector<16x16xf32>
    %45 = arith.mulf %40, %44 : vector<16x16xf32>
    %46 = arith.truncf %45 : vector<16x16xf32> to vector<16x16xbf16>
    %cst_20 = arith.constant dense<0.000000e+00> : vector<16x64xf32>
    %47 = tpu.matmul %46, %32, %cst_20 {dimension_numbers = #tpu.dot_dimension_numbers<[1], [0], [0], [1], [0, 0, 1, 1], [], []>} : vector<16x16xbf16>, vector<16x64xbf16>, vector<16x64xf32> -> vector<16x64xf32>
    %48 = arith.truncf %47 : vector<16x64xf32> to vector<16x64xbf16>
    %c0_21 = arith.constant 0 : index
    %c0_22 = arith.constant 0 : index
    %c64 = arith.constant 64 : index
    %49 = vector.load %arg6[%c0_21, %c0_22, %c64] : memref<1x16x128xbf16, #tpu.memory_space<vmem>>, vector<1x16x64xbf16>
    %50 = vector.shape_cast %49 : vector<1x16x64xbf16> to vector<16x64xbf16>
    %51 = vector.shape_cast %48 : vector<16x64xbf16> to vector<1x16x64xbf16>
    tpu.vector_store %arg6[%c0_21, %c0_22, %c64], %51 {strides = array<i32>} : memref<1x16x128xbf16, #tpu.memory_space<vmem>>, vector<1x16x64xbf16>,
    return
  }
  func.func @transform_0(%arg0: i32, %arg1: i32) -> (i32, i32, i32) {
    %c0_i32 = arith.constant 0 : i32
    %c0_i32_0 = arith.constant 0 : i32
    return %arg0, %c0_i32, %arg1 : i32, i32, i32
  }
  func.func @transform_1(%arg0: i32, %arg1: i32) -> (i32, i32, i32) {
    %c1_i32 = arith.constant 1 : i32
    %0 = arith.addi %arg1, %c1_i32 : i32
    %c0_i32 = arith.constant 0 : i32
    %c0_i32_0 = arith.constant 0 : i32
    return %arg0, %c0_i32, %0 : i32, i32, i32
  }
  func.func @transform_2(%arg0: i32, %arg1: i32) -> (i32, i32, i32) {
    %c2_i32 = arith.constant 2 : i32
    %0 = arith.addi %arg1, %c2_i32 : i32
    %c0_i32 = arith.constant 0 : i32
    %c0_i32_0 = arith.constant 0 : i32
    return %arg0, %c0_i32, %0 : i32, i32, i32
  }
  func.func @transform_3(%arg0: i32, %arg1: i32) -> (i32, i32, i32) {
    %c0_i32 = arith.constant 0 : i32
    %c0_i32_0 = arith.constant 0 : i32
    %c0_i32_1 = arith.constant 0 : i32
    return %arg0, %c0_i32, %c0_i32_0 : i32, i32, i32
  }
  func.func @transform_4(%arg0: i32, %arg1: i32) -> (i32, i32, i32) {
    %c0_i32 = arith.constant 0 : i32
    %c0_i32_0 = arith.constant 0 : i32
    return %arg0, %c0_i32, %arg1 : i32, i32, i32
  }
}

module attributes {stable_mosaic.version = 11 : i64} {
  func.func @_dense_ln_kernel(%arg0: i32, %arg1: i32, %arg2: memref<96x128xbf16, #tpu.memory_space<vmem>>, %arg3: memref<128x128xbf16, #tpu.memory_space<vmem>>, %arg4: memref<1x128xf32, #tpu.memory_space<vmem>>, %arg5: memref<96x128xbf16, #tpu.memory_space<vmem>>, %arg6: memref<1x128xf32, #tpu.memory_space<vmem>>, %arg7: memref<1x128xf32, #tpu.memory_space<vmem>>, %arg8: memref<96x128xbf16, #tpu.memory_space<vmem>>, %arg9: memref<96x128xf32, #tpu.memory_space<vmem>>) attributes {dimension_semantics = [#tpu.dimension_semantics<parallel>, #tpu.dimension_semantics<arbitrary>], iteration_bounds = array<i64: 1, 1>, scalar_prefetch = 0 : i64, scratch_operands = 1 : i64, tpu.core_type = #tpu.core_type<tc>, window_params = [{transform_indices = @transform_0, window_bounds = array<i64: 96, 128>}, {transform_indices = @transform_1, window_bounds = array<i64: 128, 128>}, {pipeline_mode = #tpu.pipeline_mode<synchronous>, transform_indices = @transform_2, window_bounds = array<i64: 1, 128>}, {transform_indices = @transform_3, window_bounds = array<i64: 96, 128>}, {pipeline_mode = #tpu.pipeline_mode<synchronous>, transform_indices = @transform_4, window_bounds = array<i64: 1, 128>}, {pipeline_mode = #tpu.pipeline_mode<synchronous>, transform_indices = @transform_5, window_bounds = array<i64: 1, 128>}, {transform_indices = @transform_6, window_bounds = array<i64: 96, 128>}]} {
    %c0_i32 = arith.constant 0 : i32
    %0 = arith.cmpi eq, %arg1, %c0_i32 : i32
    %1 = arith.extui %0 : i1 to i32
    %c0_i32_0 = arith.constant 0 : i32
    %2 = arith.cmpi ne, %1, %c0_i32_0 : i32
    scf.if %2 {
      %cst_10 = arith.constant 0.000000e+00 : f32
      %12 = vector.broadcast %cst_10 : f32 to vector<96x128xf32>
      %c0_11 = arith.constant 0 : index
      %c0_12 = arith.constant 0 : index
      %13 = vector.load %arg9[%c0_11, %c0_12] : memref<96x128xf32, #tpu.memory_space<vmem>>, vector<96x128xf32>
      tpu.vector_store %arg9[%c0_11, %c0_12], %12 {strides = array<i32>} : memref<96x128xf32, #tpu.memory_space<vmem>>, vector<96x128xf32>,
    } else {
    }
    %c0 = arith.constant 0 : index
    %c0_1 = arith.constant 0 : index
    %3 = vector.load %arg9[%c0, %c0_1] : memref<96x128xf32, #tpu.memory_space<vmem>>, vector<96x128xf32>
    %c0_2 = arith.constant 0 : index
    %c0_3 = arith.constant 0 : index
    %4 = vector.load %arg2[%c0_2, %c0_3] : memref<96x128xbf16, #tpu.memory_space<vmem>>, vector<96x128xbf16>
    %c0_4 = arith.constant 0 : index
    %c0_5 = arith.constant 0 : index
    %5 = vector.load %arg3[%c0_4, %c0_5] : memref<128x128xbf16, #tpu.memory_space<vmem>>, vector<128x128xbf16>
    %cst = arith.constant dense<0.000000e+00> : vector<96x128xf32>
    %6 = tpu.matmul %4, %5, %cst {dimension_numbers = #tpu.dot_dimension_numbers<[1], [0], [0], [1], [0, 0, 1, 1], [], []>} : vector<96x128xbf16>, vector<128x128xbf16>, vector<96x128xf32> -> vector<96x128xf32>
    %7 = arith.addf %3, %6 : vector<96x128xf32>
    %c0_6 = arith.constant 0 : index
    %c0_7 = arith.constant 0 : index
    %8 = vector.load %arg9[%c0_6, %c0_7] : memref<96x128xf32, #tpu.memory_space<vmem>>, vector<96x128xf32>
    tpu.vector_store %arg9[%c0_6, %c0_7], %7 {strides = array<i32>} : memref<96x128xf32, #tpu.memory_space<vmem>>, vector<96x128xf32>,
    %c0_i32_8 = arith.constant 0 : i32
    %9 = arith.cmpi eq, %arg1, %c0_i32_8 : i32
    %10 = arith.extui %9 : i1 to i32
    %c0_i32_9 = arith.constant 0 : i32
    %11 = arith.cmpi ne, %10, %c0_i32_9 : i32
    scf.if %11 {
      %c0_10 = arith.constant 0 : index
      %c0_11 = arith.constant 0 : index
      %12 = vector.load %arg9[%c0_10, %c0_11] : memref<96x128xf32, #tpu.memory_space<vmem>>, vector<96x128xf32>
      %c0_12 = arith.constant 0 : index
      %c0_13 = arith.constant 0 : index
      %13 = vector.load %arg4[%c0_12, %c0_13] : memref<1x128xf32, #tpu.memory_space<vmem>>, vector<1x128xf32>
      %14 = vector.broadcast %13 : vector<1x128xf32> to vector<96x128xf32>
      %15 = arith.addf %12, %14 : vector<96x128xf32>
      %c0_14 = arith.constant 0 : index
      %c0_15 = arith.constant 0 : index
      %16 = vector.load %arg5[%c0_14, %c0_15] : memref<96x128xbf16, #tpu.memory_space<vmem>>, vector<96x128xbf16>
      %17 = arith.extf %16 : vector<96x128xbf16> to vector<96x128xf32>
      %18 = arith.addf %15, %17 : vector<96x128xf32>
      %cst_16 = arith.constant dense<0.000000e+00> : vector<96xf32>
      %19 = vector.multi_reduction <add>, %18, %cst_16 [1] : vector<96x128xf32> to vector<96xf32>
      %20 = vector.shape_cast %19 : vector<96xf32> to vector<96x1xf32>
      %cst_17 = arith.constant 1.280000e+02 : f32
      %21 = vector.broadcast %cst_17 : f32 to vector<96x1xf32>
      %22 = arith.divf %20, %21 : vector<96x1xf32>
      %23 = vector.broadcast %22 : vector<96x1xf32> to vector<96x128xf32>
      %24 = arith.subf %18, %23 : vector<96x128xf32>
      %25 = arith.mulf %24, %24 : vector<96x128xf32>
      %cst_18 = arith.constant dense<0.000000e+00> : vector<96xf32>
      %26 = vector.multi_reduction <add>, %25, %cst_18 [1] : vector<96x128xf32> to vector<96xf32>
      %27 = vector.shape_cast %26 : vector<96xf32> to vector<96x1xf32>
      %cst_19 = arith.constant 1.280000e+02 : f32
      %28 = vector.broadcast %cst_19 : f32 to vector<96x1xf32>
      %29 = arith.divf %27, %28 : vector<96x1xf32>
      %cst_20 = arith.constant 9.99999996E-13 : f32
      %30 = vector.broadcast %cst_20 : f32 to vector<96x1xf32>
      %31 = arith.addf %29, %30 : vector<96x1xf32>
      %32 = math.rsqrt %31 : vector<96x1xf32>
      %33 = vector.broadcast %32 : vector<96x1xf32> to vector<96x128xf32>
      %34 = arith.mulf %24, %33 : vector<96x128xf32>
      %c0_21 = arith.constant 0 : index
      %c0_22 = arith.constant 0 : index
      %35 = vector.load %arg6[%c0_21, %c0_22] : memref<1x128xf32, #tpu.memory_space<vmem>>, vector<1x128xf32>
      %36 = vector.broadcast %35 : vector<1x128xf32> to vector<96x128xf32>
      %37 = arith.mulf %34, %36 : vector<96x128xf32>
      %c0_23 = arith.constant 0 : index
      %c0_24 = arith.constant 0 : index
      %38 = vector.load %arg7[%c0_23, %c0_24] : memref<1x128xf32, #tpu.memory_space<vmem>>, vector<1x128xf32>
      %39 = vector.broadcast %38 : vector<1x128xf32> to vector<96x128xf32>
      %40 = arith.addf %37, %39 : vector<96x128xf32>
      %41 = arith.truncf %40 : vector<96x128xf32> to vector<96x128xbf16>
      %c0_25 = arith.constant 0 : index
      %c0_26 = arith.constant 0 : index
      %42 = vector.load %arg8[%c0_25, %c0_26] : memref<96x128xbf16, #tpu.memory_space<vmem>>, vector<96x128xbf16>
      tpu.vector_store %arg8[%c0_25, %c0_26], %41 {strides = array<i32>} : memref<96x128xbf16, #tpu.memory_space<vmem>>, vector<96x128xbf16>,
    } else {
    }
    return
  }
  func.func @transform_0(%arg0: i32, %arg1: i32) -> (i32, i32) {
    %c0_i32 = arith.constant 0 : i32
    return %arg0, %arg1 : i32, i32
  }
  func.func @transform_1(%arg0: i32, %arg1: i32) -> (i32, i32) {
    %c0_i32 = arith.constant 0 : i32
    %c0_i32_0 = arith.constant 0 : i32
    return %arg1, %c0_i32 : i32, i32
  }
  func.func @transform_2(%arg0: i32, %arg1: i32) -> (i32, i32) {
    %c0_i32 = arith.constant 0 : i32
    %c0_i32_0 = arith.constant 0 : i32
    %c0_i32_1 = arith.constant 0 : i32
    return %c0_i32, %c0_i32_0 : i32, i32
  }
  func.func @transform_3(%arg0: i32, %arg1: i32) -> (i32, i32) {
    %c0_i32 = arith.constant 0 : i32
    %c0_i32_0 = arith.constant 0 : i32
    return %arg0, %c0_i32 : i32, i32
  }
  func.func @transform_4(%arg0: i32, %arg1: i32) -> (i32, i32) {
    %c0_i32 = arith.constant 0 : i32
    %c0_i32_0 = arith.constant 0 : i32
    %c0_i32_1 = arith.constant 0 : i32
    return %c0_i32, %c0_i32_0 : i32, i32
  }
  func.func @transform_5(%arg0: i32, %arg1: i32) -> (i32, i32) {
    %c0_i32 = arith.constant 0 : i32
    %c0_i32_0 = arith.constant 0 : i32
    %c0_i32_1 = arith.constant 0 : i32
    return %c0_i32, %c0_i32_0 : i32, i32
  }
  func.func @transform_6(%arg0: i32, %arg1: i32) -> (i32, i32) {
    %c0_i32 = arith.constant 0 : i32
    %c0_i32_0 = arith.constant 0 : i32
    return %arg0, %c0_i32 : i32, i32
  }
}

module attributes {stable_mosaic.version = 11 : i64} {
  func.func @_dense_kernel(%arg0: i32, %arg1: i32, %arg2: i32, %arg3: memref<96x128xbf16, #tpu.memory_space<vmem>>, %arg4: memref<128x256xbf16, #tpu.memory_space<vmem>>, %arg5: memref<1x256xf32, #tpu.memory_space<vmem>>, %arg6: memref<96x256xbf16, #tpu.memory_space<vmem>>, %arg7: memref<96x256xf32, #tpu.memory_space<vmem>>) attributes {dimension_semantics = [#tpu.dimension_semantics<parallel>, #tpu.dimension_semantics<parallel>, #tpu.dimension_semantics<arbitrary>], iteration_bounds = array<i64: 1, 1, 1>, scalar_prefetch = 0 : i64, scratch_operands = 1 : i64, tpu.core_type = #tpu.core_type<tc>, window_params = [{transform_indices = @transform_0, window_bounds = array<i64: 96, 128>}, {transform_indices = @transform_1, window_bounds = array<i64: 128, 256>}, {transform_indices = @transform_2, window_bounds = array<i64: 1, 256>}, {transform_indices = @transform_3, window_bounds = array<i64: 96, 256>}]} {
    %c0_i32 = arith.constant 0 : i32
    %0 = arith.cmpi eq, %arg2, %c0_i32 : i32
    %1 = arith.extui %0 : i1 to i32
    %c0_i32_0 = arith.constant 0 : i32
    %2 = arith.cmpi ne, %1, %c0_i32_0 : i32
    scf.if %2 {
      %cst_10 = arith.constant 0.000000e+00 : f32
      %12 = vector.broadcast %cst_10 : f32 to vector<96x256xf32>
      %c0_11 = arith.constant 0 : index
      %c0_12 = arith.constant 0 : index
      %13 = vector.load %arg7[%c0_11, %c0_12] : memref<96x256xf32, #tpu.memory_space<vmem>>, vector<96x256xf32>
      tpu.vector_store %arg7[%c0_11, %c0_12], %12 {strides = array<i32>} : memref<96x256xf32, #tpu.memory_space<vmem>>, vector<96x256xf32>,
    } else {
    }
    %c0 = arith.constant 0 : index
    %c0_1 = arith.constant 0 : index
    %3 = vector.load %arg7[%c0, %c0_1] : memref<96x256xf32, #tpu.memory_space<vmem>>, vector<96x256xf32>
    %c0_2 = arith.constant 0 : index
    %c0_3 = arith.constant 0 : index
    %4 = vector.load %arg3[%c0_2, %c0_3] : memref<96x128xbf16, #tpu.memory_space<vmem>>, vector<96x128xbf16>
    %c0_4 = arith.constant 0 : index
    %c0_5 = arith.constant 0 : index
    %5 = vector.load %arg4[%c0_4, %c0_5] : memref<128x256xbf16, #tpu.memory_space<vmem>>, vector<128x256xbf16>
    %cst = arith.constant dense<0.000000e+00> : vector<96x256xf32>
    %6 = tpu.matmul %4, %5, %cst {dimension_numbers = #tpu.dot_dimension_numbers<[1], [0], [0], [1], [0, 0, 1, 1], [], []>} : vector<96x128xbf16>, vector<128x256xbf16>, vector<96x256xf32> -> vector<96x256xf32>
    %7 = arith.addf %3, %6 : vector<96x256xf32>
    %c0_6 = arith.constant 0 : index
    %c0_7 = arith.constant 0 : index
    %8 = vector.load %arg7[%c0_6, %c0_7] : memref<96x256xf32, #tpu.memory_space<vmem>>, vector<96x256xf32>
    tpu.vector_store %arg7[%c0_6, %c0_7], %7 {strides = array<i32>} : memref<96x256xf32, #tpu.memory_space<vmem>>, vector<96x256xf32>,
    %c0_i32_8 = arith.constant 0 : i32
    %9 = arith.cmpi eq, %arg2, %c0_i32_8 : i32
    %10 = arith.extui %9 : i1 to i32
    %c0_i32_9 = arith.constant 0 : i32
    %11 = arith.cmpi ne, %10, %c0_i32_9 : i32
    scf.if %11 {
      %c0_10 = arith.constant 0 : index
      %c0_11 = arith.constant 0 : index
      %12 = vector.load %arg7[%c0_10, %c0_11] : memref<96x256xf32, #tpu.memory_space<vmem>>, vector<96x256xf32>
      %c0_12 = arith.constant 0 : index
      %c0_13 = arith.constant 0 : index
      %13 = vector.load %arg5[%c0_12, %c0_13] : memref<1x256xf32, #tpu.memory_space<vmem>>, vector<1x256xf32>
      %14 = vector.broadcast %13 : vector<1x256xf32> to vector<96x256xf32>
      %15 = arith.addf %12, %14 : vector<96x256xf32>
      %16 = arith.mulf %15, %15 : vector<96x256xf32>
      %17 = arith.mulf %15, %16 : vector<96x256xf32>
      %cst_14 = arith.constant 4.471500e-02 : f32
      %18 = vector.broadcast %cst_14 : f32 to vector<96x256xf32>
      %19 = arith.mulf %18, %17 : vector<96x256xf32>
      %20 = arith.addf %15, %19 : vector<96x256xf32>
      %cst_15 = arith.constant 0.797884583 : f32
      %21 = vector.broadcast %cst_15 : f32 to vector<96x256xf32>
      %22 = arith.mulf %21, %20 : vector<96x256xf32>
      %23 = math.tanh %22 : vector<96x256xf32>
      %cst_16 = arith.constant 1.000000e+00 : f32
      %24 = vector.broadcast %cst_16 : f32 to vector<96x256xf32>
      %25 = arith.addf %24, %23 : vector<96x256xf32>
      %cst_17 = arith.constant 5.000000e-01 : f32
      %26 = vector.broadcast %cst_17 : f32 to vector<96x256xf32>
      %27 = arith.mulf %26, %25 : vector<96x256xf32>
      %28 = arith.mulf %15, %27 : vector<96x256xf32>
      %29 = arith.truncf %28 : vector<96x256xf32> to vector<96x256xbf16>
      %c0_18 = arith.constant 0 : index
      %c0_19 = arith.constant 0 : index
      %30 = vector.load %arg6[%c0_18, %c0_19] : memref<96x256xbf16, #tpu.memory_space<vmem>>, vector<96x256xbf16>
      tpu.vector_store %arg6[%c0_18, %c0_19], %29 {strides = array<i32>} : memref<96x256xbf16, #tpu.memory_space<vmem>>, vector<96x256xbf16>,
    } else {
    }
    return
  }
  func.func @transform_0(%arg0: i32, %arg1: i32, %arg2: i32) -> (i32, i32) {
    %c0_i32 = arith.constant 0 : i32
    return %arg0, %arg2 : i32, i32
  }
  func.func @transform_1(%arg0: i32, %arg1: i32, %arg2: i32) -> (i32, i32) {
    %c0_i32 = arith.constant 0 : i32
    return %arg2, %arg1 : i32, i32
  }
  func.func @transform_2(%arg0: i32, %arg1: i32, %arg2: i32) -> (i32, i32) {
    %c0_i32 = arith.constant 0 : i32
    %c0_i32_0 = arith.constant 0 : i32
    return %c0_i32, %arg1 : i32, i32
  }
  func.func @transform_3(%arg0: i32, %arg1: i32, %arg2: i32) -> (i32, i32) {
    %c0_i32 = arith.constant 0 : i32
    return %arg0, %arg1 : i32, i32
  }
}

module attributes {stable_mosaic.version = 11 : i64} {
  func.func @_dense_ln_kernel(%arg0: i32, %arg1: i32, %arg2: memref<96x256xbf16, #tpu.memory_space<vmem>>, %arg3: memref<256x128xbf16, #tpu.memory_space<vmem>>, %arg4: memref<1x128xf32, #tpu.memory_space<vmem>>, %arg5: memref<96x128xbf16, #tpu.memory_space<vmem>>, %arg6: memref<1x128xf32, #tpu.memory_space<vmem>>, %arg7: memref<1x128xf32, #tpu.memory_space<vmem>>, %arg8: memref<96x128xbf16, #tpu.memory_space<vmem>>, %arg9: memref<96x128xf32, #tpu.memory_space<vmem>>) attributes {dimension_semantics = [#tpu.dimension_semantics<parallel>, #tpu.dimension_semantics<arbitrary>], iteration_bounds = array<i64: 1, 1>, scalar_prefetch = 0 : i64, scratch_operands = 1 : i64, tpu.core_type = #tpu.core_type<tc>, window_params = [{transform_indices = @transform_0, window_bounds = array<i64: 96, 256>}, {transform_indices = @transform_1, window_bounds = array<i64: 256, 128>}, {pipeline_mode = #tpu.pipeline_mode<synchronous>, transform_indices = @transform_2, window_bounds = array<i64: 1, 128>}, {transform_indices = @transform_3, window_bounds = array<i64: 96, 128>}, {pipeline_mode = #tpu.pipeline_mode<synchronous>, transform_indices = @transform_4, window_bounds = array<i64: 1, 128>}, {pipeline_mode = #tpu.pipeline_mode<synchronous>, transform_indices = @transform_5, window_bounds = array<i64: 1, 128>}, {transform_indices = @transform_6, window_bounds = array<i64: 96, 128>}]} {
    %c0_i32 = arith.constant 0 : i32
    %0 = arith.cmpi eq, %arg1, %c0_i32 : i32
    %1 = arith.extui %0 : i1 to i32
    %c0_i32_0 = arith.constant 0 : i32
    %2 = arith.cmpi ne, %1, %c0_i32_0 : i32
    scf.if %2 {
      %cst_10 = arith.constant 0.000000e+00 : f32
      %12 = vector.broadcast %cst_10 : f32 to vector<96x128xf32>
      %c0_11 = arith.constant 0 : index
      %c0_12 = arith.constant 0 : index
      %13 = vector.load %arg9[%c0_11, %c0_12] : memref<96x128xf32, #tpu.memory_space<vmem>>, vector<96x128xf32>
      tpu.vector_store %arg9[%c0_11, %c0_12], %12 {strides = array<i32>} : memref<96x128xf32, #tpu.memory_space<vmem>>, vector<96x128xf32>,
    } else {
    }
    %c0 = arith.constant 0 : index
    %c0_1 = arith.constant 0 : index
    %3 = vector.load %arg9[%c0, %c0_1] : memref<96x128xf32, #tpu.memory_space<vmem>>, vector<96x128xf32>
    %c0_2 = arith.constant 0 : index
    %c0_3 = arith.constant 0 : index
    %4 = vector.load %arg2[%c0_2, %c0_3] : memref<96x256xbf16, #tpu.memory_space<vmem>>, vector<96x256xbf16>
    %c0_4 = arith.constant 0 : index
    %c0_5 = arith.constant 0 : index
    %5 = vector.load %arg3[%c0_4, %c0_5] : memref<256x128xbf16, #tpu.memory_space<vmem>>, vector<256x128xbf16>
    %cst = arith.constant dense<0.000000e+00> : vector<96x128xf32>
    %6 = tpu.matmul %4, %5, %cst {dimension_numbers = #tpu.dot_dimension_numbers<[1], [0], [0], [1], [0, 0, 1, 1], [], []>} : vector<96x256xbf16>, vector<256x128xbf16>, vector<96x128xf32> -> vector<96x128xf32>
    %7 = arith.addf %3, %6 : vector<96x128xf32>
    %c0_6 = arith.constant 0 : index
    %c0_7 = arith.constant 0 : index
    %8 = vector.load %arg9[%c0_6, %c0_7] : memref<96x128xf32, #tpu.memory_space<vmem>>, vector<96x128xf32>
    tpu.vector_store %arg9[%c0_6, %c0_7], %7 {strides = array<i32>} : memref<96x128xf32, #tpu.memory_space<vmem>>, vector<96x128xf32>,
    %c0_i32_8 = arith.constant 0 : i32
    %9 = arith.cmpi eq, %arg1, %c0_i32_8 : i32
    %10 = arith.extui %9 : i1 to i32
    %c0_i32_9 = arith.constant 0 : i32
    %11 = arith.cmpi ne, %10, %c0_i32_9 : i32
    scf.if %11 {
      %c0_10 = arith.constant 0 : index
      %c0_11 = arith.constant 0 : index
      %12 = vector.load %arg9[%c0_10, %c0_11] : memref<96x128xf32, #tpu.memory_space<vmem>>, vector<96x128xf32>
      %c0_12 = arith.constant 0 : index
      %c0_13 = arith.constant 0 : index
      %13 = vector.load %arg4[%c0_12, %c0_13] : memref<1x128xf32, #tpu.memory_space<vmem>>, vector<1x128xf32>
      %14 = vector.broadcast %13 : vector<1x128xf32> to vector<96x128xf32>
      %15 = arith.addf %12, %14 : vector<96x128xf32>
      %c0_14 = arith.constant 0 : index
      %c0_15 = arith.constant 0 : index
      %16 = vector.load %arg5[%c0_14, %c0_15] : memref<96x128xbf16, #tpu.memory_space<vmem>>, vector<96x128xbf16>
      %17 = arith.extf %16 : vector<96x128xbf16> to vector<96x128xf32>
      %18 = arith.addf %15, %17 : vector<96x128xf32>
      %cst_16 = arith.constant dense<0.000000e+00> : vector<96xf32>
      %19 = vector.multi_reduction <add>, %18, %cst_16 [1] : vector<96x128xf32> to vector<96xf32>
      %20 = vector.shape_cast %19 : vector<96xf32> to vector<96x1xf32>
      %cst_17 = arith.constant 1.280000e+02 : f32
      %21 = vector.broadcast %cst_17 : f32 to vector<96x1xf32>
      %22 = arith.divf %20, %21 : vector<96x1xf32>
      %23 = vector.broadcast %22 : vector<96x1xf32> to vector<96x128xf32>
      %24 = arith.subf %18, %23 : vector<96x128xf32>
      %25 = arith.mulf %24, %24 : vector<96x128xf32>
      %cst_18 = arith.constant dense<0.000000e+00> : vector<96xf32>
      %26 = vector.multi_reduction <add>, %25, %cst_18 [1] : vector<96x128xf32> to vector<96xf32>
      %27 = vector.shape_cast %26 : vector<96xf32> to vector<96x1xf32>
      %cst_19 = arith.constant 1.280000e+02 : f32
      %28 = vector.broadcast %cst_19 : f32 to vector<96x1xf32>
      %29 = arith.divf %27, %28 : vector<96x1xf32>
      %cst_20 = arith.constant 9.99999996E-13 : f32
      %30 = vector.broadcast %cst_20 : f32 to vector<96x1xf32>
      %31 = arith.addf %29, %30 : vector<96x1xf32>
      %32 = math.rsqrt %31 : vector<96x1xf32>
      %33 = vector.broadcast %32 : vector<96x1xf32> to vector<96x128xf32>
      %34 = arith.mulf %24, %33 : vector<96x128xf32>
      %c0_21 = arith.constant 0 : index
      %c0_22 = arith.constant 0 : index
      %35 = vector.load %arg6[%c0_21, %c0_22] : memref<1x128xf32, #tpu.memory_space<vmem>>, vector<1x128xf32>
      %36 = vector.broadcast %35 : vector<1x128xf32> to vector<96x128xf32>
      %37 = arith.mulf %34, %36 : vector<96x128xf32>
      %c0_23 = arith.constant 0 : index
      %c0_24 = arith.constant 0 : index
      %38 = vector.load %arg7[%c0_23, %c0_24] : memref<1x128xf32, #tpu.memory_space<vmem>>, vector<1x128xf32>
      %39 = vector.broadcast %38 : vector<1x128xf32> to vector<96x128xf32>
      %40 = arith.addf %37, %39 : vector<96x128xf32>
      %41 = arith.truncf %40 : vector<96x128xf32> to vector<96x128xbf16>
      %c0_25 = arith.constant 0 : index
      %c0_26 = arith.constant 0 : index
      %42 = vector.load %arg8[%c0_25, %c0_26] : memref<96x128xbf16, #tpu.memory_space<vmem>>, vector<96x128xbf16>
      tpu.vector_store %arg8[%c0_25, %c0_26], %41 {strides = array<i32>} : memref<96x128xbf16, #tpu.memory_space<vmem>>, vector<96x128xbf16>,
    } else {
    }
    return
  }
  func.func @transform_0(%arg0: i32, %arg1: i32) -> (i32, i32) {
    %c0_i32 = arith.constant 0 : i32
    return %arg0, %arg1 : i32, i32
  }
  func.func @transform_1(%arg0: i32, %arg1: i32) -> (i32, i32) {
    %c0_i32 = arith.constant 0 : i32
    %c0_i32_0 = arith.constant 0 : i32
    return %arg1, %c0_i32 : i32, i32
  }
  func.func @transform_2(%arg0: i32, %arg1: i32) -> (i32, i32) {
    %c0_i32 = arith.constant 0 : i32
    %c0_i32_0 = arith.constant 0 : i32
    %c0_i32_1 = arith.constant 0 : i32
    return %c0_i32, %c0_i32_0 : i32, i32
  }
  func.func @transform_3(%arg0: i32, %arg1: i32) -> (i32, i32) {
    %c0_i32 = arith.constant 0 : i32
    %c0_i32_0 = arith.constant 0 : i32
    return %arg0, %c0_i32 : i32, i32
  }
  func.func @transform_4(%arg0: i32, %arg1: i32) -> (i32, i32) {
    %c0_i32 = arith.constant 0 : i32
    %c0_i32_0 = arith.constant 0 : i32
    %c0_i32_1 = arith.constant 0 : i32
    return %c0_i32, %c0_i32_0 : i32, i32
  }
  func.func @transform_5(%arg0: i32, %arg1: i32) -> (i32, i32) {
    %c0_i32 = arith.constant 0 : i32
    %c0_i32_0 = arith.constant 0 : i32
    %c0_i32_1 = arith.constant 0 : i32
    return %c0_i32, %c0_i32_0 : i32, i32
  }
  func.func @transform_6(%arg0: i32, %arg1: i32) -> (i32, i32) {
    %c0_i32 = arith.constant 0 : i32
    %c0_i32_0 = arith.constant 0 : i32
    return %arg0, %c0_i32 : i32, i32
  }
}

module attributes {stable_mosaic.version = 11 : i64} {
  func.func @_dense_kernel(%arg0: i32, %arg1: i32, %arg2: i32, %arg3: memref<6x128xbf16, #tpu.memory_space<vmem>>, %arg4: memref<128x128xbf16, #tpu.memory_space<vmem>>, %arg5: memref<1x128xf32, #tpu.memory_space<vmem>>, %arg6: memref<6x128xf32, #tpu.memory_space<vmem>>, %arg7: memref<6x128xf32, #tpu.memory_space<vmem>>) attributes {dimension_semantics = [#tpu.dimension_semantics<parallel>, #tpu.dimension_semantics<parallel>, #tpu.dimension_semantics<arbitrary>], iteration_bounds = array<i64: 1, 1, 1>, scalar_prefetch = 0 : i64, scratch_operands = 1 : i64, tpu.core_type = #tpu.core_type<tc>, window_params = [{transform_indices = @transform_0, window_bounds = array<i64: 6, 128>}, {transform_indices = @transform_1, window_bounds = array<i64: 128, 128>}, {transform_indices = @transform_2, window_bounds = array<i64: 1, 128>}, {transform_indices = @transform_3, window_bounds = array<i64: 6, 128>}]} {
    %c0_i32 = arith.constant 0 : i32
    %0 = arith.cmpi eq, %arg2, %c0_i32 : i32
    %1 = arith.extui %0 : i1 to i32
    %c0_i32_0 = arith.constant 0 : i32
    %2 = arith.cmpi ne, %1, %c0_i32_0 : i32
    scf.if %2 {
      %cst_10 = arith.constant 0.000000e+00 : f32
      %12 = vector.broadcast %cst_10 : f32 to vector<6x128xf32>
      %c0_11 = arith.constant 0 : index
      %c0_12 = arith.constant 0 : index
      %13 = vector.load %arg7[%c0_11, %c0_12] : memref<6x128xf32, #tpu.memory_space<vmem>>, vector<6x128xf32>
      tpu.vector_store %arg7[%c0_11, %c0_12], %12 {strides = array<i32>} : memref<6x128xf32, #tpu.memory_space<vmem>>, vector<6x128xf32>,
    } else {
    }
    %c0 = arith.constant 0 : index
    %c0_1 = arith.constant 0 : index
    %3 = vector.load %arg7[%c0, %c0_1] : memref<6x128xf32, #tpu.memory_space<vmem>>, vector<6x128xf32>
    %c0_2 = arith.constant 0 : index
    %c0_3 = arith.constant 0 : index
    %4 = vector.load %arg3[%c0_2, %c0_3] : memref<6x128xbf16, #tpu.memory_space<vmem>>, vector<6x128xbf16>
    %c0_4 = arith.constant 0 : index
    %c0_5 = arith.constant 0 : index
    %5 = vector.load %arg4[%c0_4, %c0_5] : memref<128x128xbf16, #tpu.memory_space<vmem>>, vector<128x128xbf16>
    %cst = arith.constant dense<0.000000e+00> : vector<6x128xf32>
    %6 = tpu.matmul %4, %5, %cst {dimension_numbers = #tpu.dot_dimension_numbers<[1], [0], [0], [1], [0, 0, 1, 1], [], []>} : vector<6x128xbf16>, vector<128x128xbf16>, vector<6x128xf32> -> vector<6x128xf32>
    %7 = arith.addf %3, %6 : vector<6x128xf32>
    %c0_6 = arith.constant 0 : index
    %c0_7 = arith.constant 0 : index
    %8 = vector.load %arg7[%c0_6, %c0_7] : memref<6x128xf32, #tpu.memory_space<vmem>>, vector<6x128xf32>
    tpu.vector_store %arg7[%c0_6, %c0_7], %7 {strides = array<i32>} : memref<6x128xf32, #tpu.memory_space<vmem>>, vector<6x128xf32>,
    %c0_i32_8 = arith.constant 0 : i32
    %9 = arith.cmpi eq, %arg2, %c0_i32_8 : i32
    %10 = arith.extui %9 : i1 to i32
    %c0_i32_9 = arith.constant 0 : i32
    %11 = arith.cmpi ne, %10, %c0_i32_9 : i32
    scf.if %11 {
      %c0_10 = arith.constant 0 : index
      %c0_11 = arith.constant 0 : index
      %12 = vector.load %arg7[%c0_10, %c0_11] : memref<6x128xf32, #tpu.memory_space<vmem>>, vector<6x128xf32>
      %c0_12 = arith.constant 0 : index
      %c0_13 = arith.constant 0 : index
      %13 = vector.load %arg5[%c0_12, %c0_13] : memref<1x128xf32, #tpu.memory_space<vmem>>, vector<1x128xf32>
      %14 = vector.broadcast %13 : vector<1x128xf32> to vector<6x128xf32>
      %15 = arith.addf %12, %14 : vector<6x128xf32>
      %16 = math.tanh %15 : vector<6x128xf32>
      %c0_14 = arith.constant 0 : index
      %c0_15 = arith.constant 0 : index
      %17 = vector.load %arg6[%c0_14, %c0_15] : memref<6x128xf32, #tpu.memory_space<vmem>>, vector<6x128xf32>
      tpu.vector_store %arg6[%c0_14, %c0_15], %16 {strides = array<i32>} : memref<6x128xf32, #tpu.memory_space<vmem>>, vector<6x128xf32>,
    } else {
    }
    return
  }
  func.func @transform_0(%arg0: i32, %arg1: i32, %arg2: i32) -> (i32, i32) {
    %c0_i32 = arith.constant 0 : i32
    return %arg0, %arg2 : i32, i32
  }
  func.func @transform_1(%arg0: i32, %arg1: i32, %arg2: i32) -> (i32, i32) {
    %c0_i32 = arith.constant 0 : i32
    return %arg2, %arg1 : i32, i32
  }
  func.func @transform_2(%arg0: i32, %arg1: i32, %arg2: i32) -> (i32, i32) {
    %c0_i32 = arith.constant 0 : i32
    %c0_i32_0 = arith.constant 0 : i32
    return %c0_i32, %arg1 : i32, i32
  }
  func.func @transform_3(%arg0: i32, %arg1: i32, %arg2: i32) -> (i32, i32) {
    %c0_i32 = arith.constant 0 : i32
    return %arg0, %arg1 : i32, i32
  }
}

</mosaic_0001>

<llo_original>
// kernel: bert_encoder_forward.12
$region0: #{bert_encoder_forward.12}
  #allocation0 [shape = 'u32[]', space=smem, size = 0x4, offset = 0x4, fixed_abs, tag = 'smem constant byte address 0x4 - core index']
  #allocation1 [shape = 'u32[144,128]{1,0:T(1,128)}', space=vmem, size = 0x12000, scoped, tag = 'internal scratch']
  %s0 = inlined_call_operand.vmem [shape: f32[6,16,128], index: 0, kind: input, shape index: {}]
  %s1 = inlined_call_operand.vmem [shape: f32[16,128], index: 1, kind: input, shape index: {}]
  %s2 = inlined_call_operand.vmem [shape: f32[1,128], index: 2, kind: input, shape index: {}]
  %s3 = inlined_call_operand.vmem [shape: f32[1,128], index: 3, kind: input, shape index: {}]
  %s4 = inlined_call_operand.vmem [shape: f32[1,128], index: 4, kind: input, shape index: {}]
  %s5 = inlined_call_operand.vmem [shape: bf16[6,16,128], index: 5, kind: output, shape index: {}]
  %s6 = sld [smem:[#allocation0]]
  $region53: #{bert_encoder_forward.12} parent=0
    _
  %s8 = ssub.s32 1, %s6
  %s9 = scalar_select 0, %s8, %s6
  loop: start=0, step=1, limit=8
  $region2: #{bert_encoder_forward.12} parent=0 // loop_pre_header
    _
  $region3: #{bert_encoder_forward.12} parent=0 // loop_header
    %s11 = sphi 0, %s15
    %p12 = scmp.ge.s32.totalorder %s11, 8
    %s21 = sphi 0, %s23
    %s24 = sphi 0, %s21
    %s25 = sphi 0, %s24
    %s41 = sphi 0, %s25
    %s45 = sphi 0, %s45
    %s47 = sphi 0, %s45
    %s48 = sphi 0, %s47
    %s62 = sphi 0, %s48
    %s66 = sphi 0, %s66
    %s68 = sphi 0, %s66
    %s69 = sphi 0, %s68
    %s83 = sphi 0, %s69
    %s87 = sphi 0, %s87
    %s89 = sphi 0, %s87
    %s90 = sphi 0, %s89
    %s104 = sphi 0, %s90
    %s108 = sphi 0, %s108
    %s110 = sphi 0, %s108
    %s111 = sphi 0, %s110
    %s125 = sphi 0, %s111
    %s131 = sphi 0, %s133
    %s134 = sphi 0, %s131
    %s135 = sphi 0, %s134
    %s151 = sphi 0, %s135
  $region4: #{bert_encoder_forward.12} parent=0 // loop_header_branch
    %14 = sbr.rel (%p12) target = $region8
  $region5: #{bert_encoder_forward.12} parent=0 // loop_body
    %s16 = ssub.s32 %s11, 1
    %s17 = ssub.s32 %s11, 2
    %s18 = sadd.s32 %s11, 1
    %s19 = ssub.s32 %s11, %s18
    %p20 = scmp.eq.s32.totalorder %s19, 0
    %s22 = sadd.s32 %s21, 1
    %s23 = scalar_select %p20, %s21, %s22
    %p26 = pneg %p20
    %p27 = scmp.eq.s32.totalorder %s11, 5
    %p28 = por %p26, %p27
    %p29 = scmp.ne.s32.totalorder %s21, %s24
    %p30 = scmp.eq.s32.totalorder %s11, 0
    %p31 = por %p29, %p30
    %p32 = scmp.ne.s32.totalorder %s21, %s24
    %p33 = scmp.eq.s32.totalorder %s16, 5
    %p34 = por %p32, %p33
    %p35 = scmp.ne.s32.totalorder %s24, %s25
    %p36 = scmp.eq.s32.totalorder %s16, 0
    %p37 = por %p35, %p36
    %p38 = scmp.ne.s32.totalorder %s24, %s25
    %p39 = scmp.eq.s32.totalorder %s17, 5
    %p40 = por %p38, %p39
    %p42 = scmp.ne.s32.totalorder %s25, %s41
    %p43 = scmp.eq.s32.totalorder %s17, 0
    %p44 = por %p42, %p43
    %s46 = sadd.s32 %s45, 1
    %p49 = scmp.eq.s32.totalorder %s11, 5
    %p50 = scmp.ne.s32.totalorder %s45, %s47
    %p51 = scmp.eq.s32.totalorder %s11, 0
    %p52 = por %p50, %p51
    %p53 = scmp.ne.s32.totalorder %s45, %s47
    %p54 = scmp.eq.s32.totalorder %s16, 5
    %p55 = por %p53, %p54
    %p56 = scmp.ne.s32.totalorder %s47, %s48
    %p57 = scmp.eq.s32.totalorder %s16, 0
    %p58 = por %p56, %p57
    %p59 = scmp.ne.s32.totalorder %s47, %s48
    %p60 = scmp.eq.s32.totalorder %s17, 5
    %p61 = por %p59, %p60
    %p63 = scmp.ne.s32.totalorder %s48, %s62
    %p64 = scmp.eq.s32.totalorder %s17, 0
    %p65 = por %p63, %p64
    %s67 = sadd.s32 %s66, 1
    %p70 = scmp.eq.s32.totalorder %s11, 5
    %p71 = scmp.ne.s32.totalorder %s66, %s68
    %p72 = scmp.eq.s32.totalorder %s11, 0
    %p73 = por %p71, %p72
    %p74 = scmp.ne.s32.totalorder %s66, %s68
    %p75 = scmp.eq.s32.totalorder %s16, 5
    %p76 = por %p74, %p75
    %p77 = scmp.ne.s32.totalorder %s68, %s69
    %p78 = scmp.eq.s32.totalorder %s16, 0
    %p79 = por %p77, %p78
    %p80 = scmp.ne.s32.totalorder %s68, %s69
    %p81 = scmp.eq.s32.totalorder %s17, 5
    %p82 = por %p80, %p81
    %p84 = scmp.ne.s32.totalorder %s69, %s83
    %p85 = scmp.eq.s32.totalorder %s17, 0
    %p86 = por %p84, %p85
    %s88 = sadd.s32 %s87, 1
    %p91 = scmp.eq.s32.totalorder %s11, 5
    %p92 = scmp.ne.s32.totalorder %s87, %s89
    %p93 = scmp.eq.s32.totalorder %s11, 0
    %p94 = por %p92, %p93
    %p95 = scmp.ne.s32.totalorder %s87, %s89
    %p96 = scmp.eq.s32.totalorder %s16, 5
    %p97 = por %p95, %p96
    %p98 = scmp.ne.s32.totalorder %s89, %s90
    %p99 = scmp.eq.s32.totalorder %s16, 0
    %p100 = por %p98, %p99
    %p101 = scmp.ne.s32.totalorder %s89, %s90
    %p102 = scmp.eq.s32.totalorder %s17, 5
    %p103 = por %p101, %p102
    %p105 = scmp.ne.s32.totalorder %s90, %s104
    %p106 = scmp.eq.s32.totalorder %s17, 0
    %p107 = por %p105, %p106
    %s109 = sadd.s32 %s108, 1
    %p112 = scmp.eq.s32.totalorder %s11, 5
    %p113 = scmp.ne.s32.totalorder %s108, %s110
    %p114 = scmp.eq.s32.totalorder %s11, 0
    %p115 = por %p113, %p114
    %p116 = scmp.ne.s32.totalorder %s108, %s110
    %p117 = scmp.eq.s32.totalorder %s16, 5
    %p118 = por %p116, %p117
    %p119 = scmp.ne.s32.totalorder %s110, %s111
    %p120 = scmp.eq.s32.totalorder %s16, 0
    %p121 = por %p119, %p120
    %p122 = scmp.ne.s32.totalorder %s110, %s111
    %p123 = scmp.eq.s32.totalorder %s17, 5
    %p124 = por %p122, %p123
    %p126 = scmp.ne.s32.totalorder %s111, %s125
    %p127 = scmp.eq.s32.totalorder %s17, 0
    %p128 = por %p126, %p127
    %s129 = ssub.s32 %s11, %s18
    %p130 = scmp.eq.s32.totalorder %s129, 0
    %s132 = sadd.s32 %s131, 1
    %s133 = scalar_select %p130, %s131, %s132
    %p136 = pneg %p130
    %p137 = scmp.eq.s32.totalorder %s11, 5
    %p138 = por %p136, %p137
    %p139 = scmp.ne.s32.totalorder %s131, %s134
    %p140 = scmp.eq.s32.totalorder %s11, 0
    %p141 = por %p139, %p140
    %p142 = scmp.ne.s32.totalorder %s131, %s134
    %p143 = scmp.eq.s32.totalorder %s16, 5
    %p144 = por %p142, %p143
    %p145 = scmp.ne.s32.totalorder %s134, %s135
    %p146 = scmp.eq.s32.totalorder %s16, 0
    %p147 = por %p145, %p146
    %p148 = scmp.ne.s32.totalorder %s134, %s135
    %p149 = scmp.eq.s32.totalorder %s17, 5
    %p150 = por %p148, %p149
    %p152 = scmp.ne.s32.totalorder %s135, %s151
    %p153 = scmp.eq.s32.totalorder %s17, 0
    %p154 = por %p152, %p153
    %p155 = scmp.le.s32.totalorder 1, %s11
    %p156 = scmp.lt.s32.totalorder %s11, 7
    %p157 = pnand %p155, %p156
    %p158 = pneg %p157
    // Predicated region
    $region9: #{bert_encoder_forward.12} parent=5 // pred_check
      _
    $region10: #{bert_encoder_forward.12} parent=5 // pred_check_branch
      %160 = sbr.rel (%p157) target = $region12
    $region11: #{bert_encoder_forward.12} parent=5 // pred_region
      %s161 = ssub.s32 %s11, 1
      // Predicated region
      $region13: #{bert_encoder_forward.12} parent=11 // pred_check
        %p162 = pneg %p58
      $region14: #{bert_encoder_forward.12} parent=11 // pred_check_branch
        %164 = sbr.rel (%p162) target = $region16
      $region15: #{bert_encoder_forward.12} parent=11 // pred_region
        _
      $region16: #{bert_encoder_forward.12} parent=11 // pred_fallthru
        _
      // Predicated region
      $region17: #{bert_encoder_forward.12} parent=11 // pred_check
        %p165 = pneg %p79
      $region18: #{bert_encoder_forward.12} parent=11 // pred_check_branch
        %167 = sbr.rel (%p165) target = $region20
      $region19: #{bert_encoder_forward.12} parent=11 // pred_region
        _
      $region20: #{bert_encoder_forward.12} parent=11 // pred_fallthru
        _
      // Predicated region
      $region21: #{bert_encoder_forward.12} parent=11 // pred_check
        %p168 = pneg %p100
      $region22: #{bert_encoder_forward.12} parent=11 // pred_check_branch
        %170 = sbr.rel (%p168) target = $region24
      $region23: #{bert_encoder_forward.12} parent=11 // pred_region
        _
      $region24: #{bert_encoder_forward.12} parent=11 // pred_fallthru
        _
      // Predicated region
      $region25: #{bert_encoder_forward.12} parent=11 // pred_check
        %p171 = pneg %p121
      $region26: #{bert_encoder_forward.12} parent=11 // pred_check_branch
        %173 = sbr.rel (%p171) target = $region28
      $region27: #{bert_encoder_forward.12} parent=11 // pred_region
        _
      $region28: #{bert_encoder_forward.12} parent=11 // pred_fallthru
        _
    $region12: #{bert_encoder_forward.12} parent=5 // pred_fallthru
      _
    %p174 = scmp.lt.s32.totalorder %s11, 6
    // Predicated region
    $region29: #{bert_encoder_forward.12} parent=5 // pred_check
      %p175 = pneg %p174
    $region30: #{bert_encoder_forward.12} parent=5 // pred_check_branch
      %177 = sbr.rel (%p175) target = $region32
    $region31: #{bert_encoder_forward.12} parent=5 // pred_region
      // Predicated region
      $region33: #{bert_encoder_forward.12} parent=31 // pred_check
        %p178 = pneg %p31
      $region34: #{bert_encoder_forward.12} parent=31 // pred_check_branch
        %180 = sbr.rel (%p178) target = $region36
      $region35: #{bert_encoder_forward.12} parent=31 // pred_region
        %p181 = scmp.lt.s32.totalorder %s11, 5
        %s182 = scalar_select %p181, %s11, 5
        %s183 = smul.addr %s182, 2
        %s184 = smul.addr %s183, 8
        %s185 = scalar_lea.vmem %s0, %s184
      $region36: #{bert_encoder_forward.12} parent=31 // pred_fallthru
        _
    $region32: #{bert_encoder_forward.12} parent=5 // pred_fallthru
      _
    %p186 = scmp.le.s32.totalorder 1, %s11
    %p187 = scmp.lt.s32.totalorder %s11, 7
    %p188 = pnand %p186, %p187
    %p189 = pneg %p188
    // Predicated region
    $region37: #{bert_encoder_forward.12} parent=5 // pred_check
      _
    $region38: #{bert_encoder_forward.12} parent=5 // pred_check_branch
      %191 = sbr.rel (%p188) target = $region40
    $region39: #{bert_encoder_forward.12} parent=5 // pred_region
      %s192 = ssub.s32 %s11, 1
      %p193 = scmp.lt.s32.totalorder %s16, 5
      %s194 = scalar_select %p193, %s16, 5
      %s195 = smul.addr %s194, 2
      %s196 = smul.addr %s195, 8
      %s197 = scalar_lea.vmem %s0, %s196
      %p198 = pneg %p37
      %p199 = pneg %p34
      %p200 = pneg %p58
      %p201 = pneg %p55
      %p202 = pneg %p79
      %p203 = pneg %p76
      %p204 = pneg %p100
      %p205 = pneg %p97
      %p206 = pneg %p121
      %p207 = pneg %p118
      %p208 = pneg %p147
      %p209 = pneg %p144
      %p210 = scmp.lt.s32.totalorder %s16, 5
      %s211 = scalar_select %p210, %s16, 5
      %s212 = smul.addr %s211, 2
      %s213 = smul.addr %s212, 4
      %s214 = scalar_lea.vmem %s5, %s213
      %p215 = scmp.lt.s32.totalorder %s16, 5
      %s216 = scalar_select %p215, %s16, 5
      %s217 = smul.addr %s216, 2
      %s218 = smul.addr %s217, 8
      %s219 = scalar_lea.vmem %s0, %s218
      %p220 = scmp.lt.s32.totalorder %s16, 5
      %s221 = scalar_select %p220, %s16, 5
      %s222 = smul.addr %s221, 2
      %s223 = smul.addr %s222, 4
      %s224 = scalar_lea.vmem %s5, %s223
      %v225 = vld [vmem:[%s219] sm:$0xff]
      %v226 = vld [vmem:[%s219 + $0x8] sm:$0xff]
      %v227 = vld [vmem:[%s1] sm:$0xff]
      %v228 = vld [vmem:[%s1 + $0x8] sm:$0xff]
      %v229 = vadd.f32 %v225, %v227
      %v230 = vadd.f32 %v226, %v228
      %v231 = vld [vmem:[%s2] sm:$0x1]
      %v233 = vlaneseq
      %v234 = vshrl.u32 %v233, 7
      %v235 = vsub.s32 0, %v234
      %v236 = vrot.slane %v231, %v235
      %v238 = vadd.f32 %v229, %v236
      %v239 = vadd.f32 %v230, %v236
      %240 = vadd.xlane.f32.xlu0 %v238
      %v241 = vpop.xlane.xlu0 %240
      %242 = vadd.xlane.f32.xlu0 %v239
      %v243 = vpop.xlane.xlu0 %242
      %v244 = vrcp.pop 128.0
      %v245 = vmul.f32 %v241, %v244
      %v246 = vmul.f32 %v243, %v244
      %v247 = vsub.f32 %v238, %v245
      %v248 = vsub.f32 %v239, %v246
      %v249 = vmul.f32 %v247, %v247
      %v250 = vmul.f32 %v248, %v248
      %251 = vadd.xlane.f32.xlu0 %v249
      %v252 = vpop.xlane.xlu0 %251
      %253 = vadd.xlane.f32.xlu0 %v250
      %v254 = vpop.xlane.xlu0 %253
      %v255 = vmul.f32 %v252, %v244
      %v256 = vmul.f32 %v254, %v244
      %v257 = vadd.f32 %v255, 1e-12
      %v258 = vadd.f32 %v256, 1e-12
      %v259 = vrsqrt.pop %v257
      %v260 = vrsqrt.pop %v258
      %v261 = vmul.f32 %v247, %v259
      %v262 = vmul.f32 %v248, %v260
      %v263 = vld [vmem:[%s3] sm:$0x1]
      %v265 = vlaneseq
      %v266 = vshrl.u32 %v265, 7
      %v267 = vsub.s32 0, %v266
      %v268 = vrot.slane %v263, %v267
      %v270 = vmul.f32 %v261, %v268
      %v271 = vmul.f32 %v262, %v268
      %v272 = vld [vmem:[%s4] sm:$0x1]
      %v274 = vlaneseq
      %v275 = vshrl.u32 %v274, 7
      %v276 = vsub.s32 0, %v275
      %v277 = vrot.slane %v272, %v276
      %v279 = vadd.f32 %v270, %v277
      %v280 = vadd.f32 %v271, %v277
      %v281 = vpack.c.bf16 %v280, %v279
      %v283 = vunpack.c.l.b16 %v281
      %v284 = vunpack.c.h.b16 %v281
      %v285 = vpack.c.b16 %v283, %v283
      %v286 = vpack.c.b16 %v284, %v284
      %289 = vst [vmem:[%s224] sm:$0xf] %v285
      %290 = vst [vmem:[%s224 + $0x4] sm:$0xf] %v286
      %p291 = scmp.lt.s32.totalorder %s16, 5
      %s292 = scalar_select %p291, %s16, 5
      %s293 = smul.addr %s292, 2
      %s294 = smul.addr %s293, 4
      %s295 = scalar_lea.vmem %s5, %s294
      // Predicated region
      $region41: #{bert_encoder_forward.12} parent=39 // pred_check
        %p296 = pneg %p144
      $region42: #{bert_encoder_forward.12} parent=39 // pred_check_branch
        %298 = sbr.rel (%p296) target = $region44
      $region43: #{bert_encoder_forward.12} parent=39 // pred_region
        _
      $region44: #{bert_encoder_forward.12} parent=39 // pred_fallthru
        _
    $region40: #{bert_encoder_forward.12} parent=5 // pred_fallthru
      _
    %p299 = scmp.le.s32.totalorder 2, %s11
    // Predicated region
    $region45: #{bert_encoder_forward.12} parent=5 // pred_check
      %p300 = pneg %p299
    $region46: #{bert_encoder_forward.12} parent=5 // pred_check_branch
      %302 = sbr.rel (%p300) target = $region48
    $region47: #{bert_encoder_forward.12} parent=5 // pred_region
      %s303 = ssub.s32 %s11, 2
      // Predicated region
      $region49: #{bert_encoder_forward.12} parent=47 // pred_check
        %p304 = pneg %p150
      $region50: #{bert_encoder_forward.12} parent=47 // pred_check_branch
        %306 = sbr.rel (%p304) target = $region52
      $region51: #{bert_encoder_forward.12} parent=47 // pred_region
        %p307 = scmp.lt.s32.totalorder %s17, 5
        %s308 = scalar_select %p307, %s17, 5
        %s309 = smul.addr %s308, 2
        %s310 = smul.addr %s309, 4
        %s311 = scalar_lea.vmem %s5, %s310
      $region52: #{bert_encoder_forward.12} parent=47 // pred_fallthru
        _
    $region48: #{bert_encoder_forward.12} parent=5 // pred_fallthru
      _
  $region6: #{bert_encoder_forward.12} parent=0 // loop_footer
    %s15 = sadd.s32 1, %s11
  $region7: #{bert_encoder_forward.12} parent=0 // loop_footer_branch
    %10 = sbr.rel target = $region3
  $region8: #{bert_encoder_forward.12} parent=0 // loop_exit
    _

// kernel: bert_encoder_forward.14
$region0: #{bert_encoder_forward.14}
  #allocation0 [shape = 'u32[]', space=smem, size = 0x4, offset = 0x4, fixed_abs, tag = 'smem constant byte address 0x4 - core index']
  #allocation1 [shape = 'u32[144,128]{1,0:T(1,128)}', space=vmem, size = 0x12000, scoped, tag = 'internal scratch']
  %s0 = inlined_call_operand.vmem [shape: bf16[6,16,384], index: 0, kind: input, shape index: {}, may-alias: {0,1,2}]
  %s1 = inlined_call_operand.vmem [shape: bf16[6,16,384], index: 1, kind: input, shape index: {}, may-alias: {0,1,2}]
  %s2 = inlined_call_operand.vmem [shape: bf16[6,16,384], index: 2, kind: input, shape index: {}, may-alias: {0,1,2}]
  %s3 = inlined_call_operand.vmem [shape: f32[6,1,16], index: 3, kind: input, shape index: {}]
  %s4 = inlined_call_operand.vmem [shape: bf16[6,16,128], index: 4, kind: output, shape index: {}]
  %s5 = sld [smem:[#allocation0]]
  $region172: #{bert_encoder_forward.14} parent=0
    _
  %s7 = ssub.s32 1, %s5
  %s8 = scalar_select 0, %s7, %s5
  $region1: #{bert_encoder_forward.14} parent=0
    #allocation2 [shape = 'u8[8192]{0}', space=vmem, size = 0x2000, scoped, tag = 'input window, operand 0']
    #allocation3 [shape = 'u8[8192]{0}', space=vmem, size = 0x2000, scoped, tag = 'input window, operand 1']
    #allocation4 [shape = 'u8[8192]{0}', space=vmem, size = 0x2000, scoped, tag = 'input window, operand 2']
    loop: start=0, step=1, limit=8
    $region2: #{bert_encoder_forward.14} parent=1 // loop_pre_header
      _
    $region3: #{bert_encoder_forward.14} parent=1 // loop_header
      %s10 = sphi 0, %s14
      %p11 = scmp.ge.s32.totalorder %s10, 8
      %s17 = sphi 0, %s29
      %s18 = sphi 0, %s25
      %s19 = sphi 0, %s17
      %s20 = sphi 0, %s18
      %s21 = sphi 0, %s19
      %s22 = sphi 0, %s20
      %s34 = sphi 0, %s36
      %s37 = sphi 0, %s34
      %s38 = sphi 0, %s37
      %s54 = sphi 0, %s38
      %s64 = sphi 0, %s66
      %s67 = sphi 0, %s64
      %s68 = sphi 0, %s67
      %s84 = sphi 0, %s68
      %s94 = sphi 0, %s96
      %s97 = sphi 0, %s94
      %s98 = sphi 0, %s97
      %s114 = sphi 0, %s98
      %s120 = sphi 0, %s122
      %s123 = sphi 0, %s120
      %s124 = sphi 0, %s123
      %s140 = sphi 0, %s124
      %s148 = sphi 0, %s150
      %s151 = sphi 0, %s148
      %s152 = sphi 0, %s151
      %s168 = sphi 0, %s152
    $region4: #{bert_encoder_forward.14} parent=1 // loop_header_branch
      %13 = sbr.rel (%p11) target = $region8
    $region5: #{bert_encoder_forward.14} parent=1 // loop_body
      %s15 = ssub.s32 %s10, 1
      %s16 = ssub.s32 %s10, 2
      %s23 = sadd.s32 1, %s18
      %p24 = scmp.ge.s32.totalorder %s23, 1
      %s25 = scalar_select %p24, 0, %s23
      %s26 = sadd.s32 1, %s17
      %s27 = scalar_select %p24, %s26, %s17
      %p28 = scmp.ge.s32.totalorder %s27, 6
      %s29 = scalar_select %p28, 0, %s27
      %s30 = ssub.s32 %s17, %s29
      %s31 = ssub.s32 %s18, %s25
      %s32 = sor.u32 %s30, %s31
      %p33 = scmp.eq.s32.totalorder %s32, 0
      %s35 = sadd.s32 %s34, 1
      %s36 = scalar_select %p33, %s34, %s35
      %p39 = pneg %p33
      %p40 = scmp.eq.s32.totalorder %s10, 5
      %p41 = por %p39, %p40
      %p42 = scmp.ne.s32.totalorder %s34, %s37
      %p43 = scmp.eq.s32.totalorder %s10, 0
      %p44 = por %p42, %p43
      %p45 = scmp.ne.s32.totalorder %s34, %s37
      %p46 = scmp.eq.s32.totalorder %s15, 5
      %p47 = por %p45, %p46
      %p48 = scmp.ne.s32.totalorder %s37, %s38
      %p49 = scmp.eq.s32.totalorder %s15, 0
      %p50 = por %p48, %p49
      %p51 = scmp.ne.s32.totalorder %s37, %s38
      %p52 = scmp.eq.s32.totalorder %s16, 5
      %p53 = por %p51, %p52
      %p55 = scmp.ne.s32.totalorder %s38, %s54
      %p56 = scmp.eq.s32.totalorder %s16, 0
      %p57 = por %p55, %p56
      %s58 = sadd.s32 %s18, 1
      %s59 = sadd.s32 %s25, 1
      %s60 = ssub.s32 %s17, %s29
      %s61 = ssub.s32 %s58, %s59
      %s62 = sor.u32 %s60, %s61
      %p63 = scmp.eq.s32.totalorder %s62, 0
      %s65 = sadd.s32 %s64, 1
      %s66 = scalar_select %p63, %s64, %s65
      %p69 = pneg %p63
      %p70 = scmp.eq.s32.totalorder %s10, 5
      %p71 = por %p69, %p70
      %p72 = scmp.ne.s32.totalorder %s64, %s67
      %p73 = scmp.eq.s32.totalorder %s10, 0
      %p74 = por %p72, %p73
      %p75 = scmp.ne.s32.totalorder %s64, %s67
      %p76 = scmp.eq.s32.totalorder %s15, 5
      %p77 = por %p75, %p76
      %p78 = scmp.ne.s32.totalorder %s67, %s68
      %p79 = scmp.eq.s32.totalorder %s15, 0
      %p80 = por %p78, %p79
      %p81 = scmp.ne.s32.totalorder %s67, %s68
      %p82 = scmp.eq.s32.totalorder %s16, 5
      %p83 = por %p81, %p82
      %p85 = scmp.ne.s32.totalorder %s68, %s84
      %p86 = scmp.eq.s32.totalorder %s16, 0
      %p87 = por %p85, %p86
      %s88 = sadd.s32 %s18, 2
      %s89 = sadd.s32 %s25, 2
      %s90 = ssub.s32 %s17, %s29
      %s91 = ssub.s32 %s88, %s89
      %s92 = sor.u32 %s90, %s91
      %p93 = scmp.eq.s32.totalorder %s92, 0
      %s95 = sadd.s32 %s94, 1
      %s96 = scalar_select %p93, %s94, %s95
      %p99 = pneg %p93
      %p100 = scmp.eq.s32.totalorder %s10, 5
      %p101 = por %p99, %p100
      %p102 = scmp.ne.s32.totalorder %s94, %s97
      %p103 = scmp.eq.s32.totalorder %s10, 0
      %p104 = por %p102, %p103
      %p105 = scmp.ne.s32.totalorder %s94, %s97
      %p106 = scmp.eq.s32.totalorder %s15, 5
      %p107 = por %p105, %p106
      %p108 = scmp.ne.s32.totalorder %s97, %s98
      %p109 = scmp.eq.s32.totalorder %s15, 0
      %p110 = por %p108, %p109
      %p111 = scmp.ne.s32.totalorder %s97, %s98
      %p112 = scmp.eq.s32.totalorder %s16, 5
      %p113 = por %p111, %p112
      %p115 = scmp.ne.s32.totalorder %s98, %s114
      %p116 = scmp.eq.s32.totalorder %s16, 0
      %p117 = por %p115, %p116
      %s118 = ssub.s32 %s17, %s29
      %p119 = scmp.eq.s32.totalorder %s118, 0
      %s121 = sadd.s32 %s120, 1
      %s122 = scalar_select %p119, %s120, %s121
      %p125 = pneg %p119
      %p126 = scmp.eq.s32.totalorder %s10, 5
      %p127 = por %p125, %p126
      %p128 = scmp.ne.s32.totalorder %s120, %s123
      %p129 = scmp.eq.s32.totalorder %s10, 0
      %p130 = por %p128, %p129
      %p131 = scmp.ne.s32.totalorder %s120, %s123
      %p132 = scmp.eq.s32.totalorder %s15, 5
      %p133 = por %p131, %p132
      %p134 = scmp.ne.s32.totalorder %s123, %s124
      %p135 = scmp.eq.s32.totalorder %s15, 0
      %p136 = por %p134, %p135
      %p137 = scmp.ne.s32.totalorder %s123, %s124
      %p138 = scmp.eq.s32.totalorder %s16, 5
      %p139 = por %p137, %p138
      %p141 = scmp.ne.s32.totalorder %s124, %s140
      %p142 = scmp.eq.s32.totalorder %s16, 0
      %p143 = por %p141, %p142
      %s144 = ssub.s32 %s17, %s29
      %s145 = ssub.s32 %s18, %s25
      %s146 = sor.u32 %s144, %s145
      %p147 = scmp.eq.s32.totalorder %s146, 0
      %s149 = sadd.s32 %s148, 1
      %s150 = scalar_select %p147, %s148, %s149
      %p153 = pneg %p147
      %p154 = scmp.eq.s32.totalorder %s10, 5
      %p155 = por %p153, %p154
      %p156 = scmp.ne.s32.totalorder %s148, %s151
      %p157 = scmp.eq.s32.totalorder %s10, 0
      %p158 = por %p156, %p157
      %p159 = scmp.ne.s32.totalorder %s148, %s151
      %p160 = scmp.eq.s32.totalorder %s15, 5
      %p161 = por %p159, %p160
      %p162 = scmp.ne.s32.totalorder %s151, %s152
      %p163 = scmp.eq.s32.totalorder %s15, 0
      %p164 = por %p162, %p163
      %p165 = scmp.ne.s32.totalorder %s151, %s152
      %p166 = scmp.eq.s32.totalorder %s16, 5
      %p167 = por %p165, %p166
      %p169 = scmp.ne.s32.totalorder %s152, %s168
      %p170 = scmp.eq.s32.totalorder %s16, 0
      %p171 = por %p169, %p170
      %p172 = scmp.le.s32.totalorder 1, %s10
      %p173 = scmp.lt.s32.totalorder %s10, 7
      %p174 = pnand %p172, %p173
      %p175 = pneg %p174
      // Predicated region
      $region9: #{bert_encoder_forward.14} parent=5 // pred_check
        _
      $region10: #{bert_encoder_forward.14} parent=5 // pred_check_branch
        %177 = sbr.rel (%p174) target = $region12
      $region11: #{bert_encoder_forward.14} parent=5 // pred_region
        %s178 = ssub.s32 %s10, 1
      $region12: #{bert_encoder_forward.14} parent=5 // pred_fallthru
        _
      %p179 = scmp.lt.s32.totalorder %s10, 6
      // Predicated region
      $region13: #{bert_encoder_forward.14} parent=5 // pred_check
        %p180 = pneg %p179
      $region14: #{bert_encoder_forward.14} parent=5 // pred_check_branch
        %182 = sbr.rel (%p180) target = $region16
      $region15: #{bert_encoder_forward.14} parent=5 // pred_region
        // Predicated region
        $region17: #{bert_encoder_forward.14} parent=15 // pred_check
          %p183 = pneg %p44
        $region18: #{bert_encoder_forward.14} parent=15 // pred_check_branch
          %185 = sbr.rel (%p183) target = $region20
        $region19: #{bert_encoder_forward.14} parent=15 // pred_region
          %s186 = sand.u32 %s34, 1
          %s187 = sand.u32 %s34, 1
          %s188 = smul.addr %s187, 8
          %s189 = scalar_lea.vmem [#allocation2], %s188
          %s190 = smul.addr %s17, 6
          %s191 = sadd.s32 %s18, %s190
          %s192 = smul.addr %s191, 4
          %s193 = scalar_lea.vmem %s0, %s192
          // Predicated region
          $region21: #{bert_encoder_forward.14} parent=19 // pred_check
            _
          $region22: #{bert_encoder_forward.14} parent=19 // pred_check_branch
            %195 = sbr.rel (0) target = $region24
          $region23: #{bert_encoder_forward.14} parent=19 // pred_region
            // Predicated region
            $region25: #{bert_encoder_forward.14} parent=23 // pred_check
              _
            $region26: #{bert_encoder_forward.14} parent=23 // pred_check_branch
              %197 = sbr.rel target = $region28
            $region27: #{bert_encoder_forward.14} parent=23 // pred_region
              // Predicated region
              $region40: #{bert_encoder_forward.14} parent=27 // pred_check
                _
              $region41: #{bert_encoder_forward.14} parent=27 // pred_check_branch
                %214 = sbr.rel (0) target = $region43
              $region42: #{bert_encoder_forward.14} parent=27 // pred_region
                loop: start=0, step=1, limit=1
                $region44: #{bert_encoder_forward.14} parent=42 // loop_pre_header
                  _
                $region45: #{bert_encoder_forward.14} parent=42 // loop_header
                  %s216 = sphi 0, %s220
                  %p217 = scmp.ge.s32.totalorder %s216, 1
                  %s221 = sphi %s193, %s193
                  %s222 = sphi %s189, %s189
                $region46: #{bert_encoder_forward.14} parent=42 // loop_header_branch
                  %219 = sbr.rel (%p217) target = $region50
                $region47: #{bert_encoder_forward.14} parent=42 // loop_body
                  _
                $region48: #{bert_encoder_forward.14} parent=42 // loop_footer
                  %s220 = sadd.s32 1, %s216
                $region49: #{bert_encoder_forward.14} parent=42 // loop_footer_branch
                  %215 = sbr.rel target = $region45
                $region50: #{bert_encoder_forward.14} parent=42 // loop_exit
                  _
                loop: start=0, step=1, limit=1
                $region51: #{bert_encoder_forward.14} parent=42 // loop_pre_header
                  _
                $region52: #{bert_encoder_forward.14} parent=42 // loop_header
                  %s225 = sphi 0, %s229
                  %p226 = scmp.ge.s32.totalorder %s225, 1
                  %s230 = sphi %s193, %s193
                  %s231 = sphi %s189, %s189
                $region53: #{bert_encoder_forward.14} parent=42 // loop_header_branch
                  %228 = sbr.rel (%p226) target = $region57
                $region54: #{bert_encoder_forward.14} parent=42 // loop_body
                  %v232 = vld [vmem:[%s230] sm:$0xf]
                  %233 = vst [vmem:[%s231] sm:$0xf] %v232
                  %v234 = vld [vmem:[%s230 + $0xc] sm:$0xf]
                  %235 = vst [vmem:[%s231 + $0x4] sm:$0xf] %v234
                $region55: #{bert_encoder_forward.14} parent=42 // loop_footer
                  %s229 = sadd.s32 1, %s225
                $region56: #{bert_encoder_forward.14} parent=42 // loop_footer_branch
                  %224 = sbr.rel target = $region52
                $region57: #{bert_encoder_forward.14} parent=42 // loop_exit
                  _
              $region43: #{bert_encoder_forward.14} parent=27 // pred_fallthru
                _
            $region28: #{bert_encoder_forward.14} parent=23 // pred_fallthru
              _
            // Predicated region
            $region29: #{bert_encoder_forward.14} parent=23 // pred_check
              _
            $region30: #{bert_encoder_forward.14} parent=23 // pred_check_branch
              %199 = sbr.rel (0) target = $region32
            $region31: #{bert_encoder_forward.14} parent=23 // pred_region
              loop: start=0, step=1, limit=1
              $region33: #{bert_encoder_forward.14} parent=31 // loop_pre_header
                _
              $region34: #{bert_encoder_forward.14} parent=31 // loop_header
                %s202 = sphi 0, %s206
                %p203 = scmp.ge.s32.totalorder %s202, 1
                %s207 = sphi %s193, %s193
                %s208 = sphi %s189, %s189
              $region35: #{bert_encoder_forward.14} parent=31 // loop_header_branch
                %205 = sbr.rel (%p203) target = $region39
              $region36: #{bert_encoder_forward.14} parent=31 // loop_body
                %v209 = vld [vmem:[%s207] sm:$0xf]
                %210 = vst [vmem:[%s208] sm:$0xf] %v209
                %v211 = vld [vmem:[%s207 + $0xc] sm:$0xf]
                %212 = vst [vmem:[%s208 + $0x4] sm:$0xf] %v211
              $region37: #{bert_encoder_forward.14} parent=31 // loop_footer
                %s206 = sadd.s32 1, %s202
              $region38: #{bert_encoder_forward.14} parent=31 // loop_footer_branch
                %201 = sbr.rel target = $region34
              $region39: #{bert_encoder_forward.14} parent=31 // loop_exit
                _
            $region32: #{bert_encoder_forward.14} parent=23 // pred_fallthru
              _
          $region24: #{bert_encoder_forward.14} parent=19 // pred_fallthru
            _
          %236 = vnop
        $region20: #{bert_encoder_forward.14} parent=15 // pred_fallthru
          _
        // Predicated region
        $region58: #{bert_encoder_forward.14} parent=15 // pred_check
          %p237 = pneg %p74
        $region59: #{bert_encoder_forward.14} parent=15 // pred_check_branch
          %239 = sbr.rel (%p237) target = $region61
        $region60: #{bert_encoder_forward.14} parent=15 // pred_region
          %s240 = sand.u32 %s64, 1
          %s241 = sand.u32 %s64, 1
          %s242 = smul.addr %s241, 8
          %s243 = scalar_lea.vmem [#allocation3], %s242
          %s244 = sadd.s32 %s18, 1
          %s245 = smul.addr %s17, 6
          %s246 = sadd.s32 %s244, %s245
          %s247 = smul.addr %s246, 4
          %s248 = scalar_lea.vmem %s1, %s247
          // Predicated region
          $region62: #{bert_encoder_forward.14} parent=60 // pred_check
            _
          $region63: #{bert_encoder_forward.14} parent=60 // pred_check_branch
            %250 = sbr.rel (0) target = $region65
          $region64: #{bert_encoder_forward.14} parent=60 // pred_region
            // Predicated region
            $region66: #{bert_encoder_forward.14} parent=64 // pred_check
              _
            $region67: #{bert_encoder_forward.14} parent=64 // pred_check_branch
              %252 = sbr.rel target = $region69
            $region68: #{bert_encoder_forward.14} parent=64 // pred_region
              // Predicated region
              $region81: #{bert_encoder_forward.14} parent=68 // pred_check
                _
              $region82: #{bert_encoder_forward.14} parent=68 // pred_check_branch
                %269 = sbr.rel (0) target = $region84
              $region83: #{bert_encoder_forward.14} parent=68 // pred_region
                loop: start=0, step=1, limit=1
                $region85: #{bert_encoder_forward.14} parent=83 // loop_pre_header
                  _
                $region86: #{bert_encoder_forward.14} parent=83 // loop_header
                  %s271 = sphi 0, %s275
                  %p272 = scmp.ge.s32.totalorder %s271, 1
                  %s276 = sphi %s248, %s248
                  %s277 = sphi %s243, %s243
                $region87: #{bert_encoder_forward.14} parent=83 // loop_header_branch
                  %274 = sbr.rel (%p272) target = $region91
                $region88: #{bert_encoder_forward.14} parent=83 // loop_body
                  _
                $region89: #{bert_encoder_forward.14} parent=83 // loop_footer
                  %s275 = sadd.s32 1, %s271
                $region90: #{bert_encoder_forward.14} parent=83 // loop_footer_branch
                  %270 = sbr.rel target = $region86
                $region91: #{bert_encoder_forward.14} parent=83 // loop_exit
                  _
                loop: start=0, step=1, limit=1
                $region92: #{bert_encoder_forward.14} parent=83 // loop_pre_header
                  _
                $region93: #{bert_encoder_forward.14} parent=83 // loop_header
                  %s280 = sphi 0, %s284
                  %p281 = scmp.ge.s32.totalorder %s280, 1
                  %s285 = sphi %s248, %s248
                  %s286 = sphi %s243, %s243
                $region94: #{bert_encoder_forward.14} parent=83 // loop_header_branch
                  %283 = sbr.rel (%p281) target = $region98
                $region95: #{bert_encoder_forward.14} parent=83 // loop_body
                  %v287 = vld [vmem:[%s285] sm:$0xf]
                  %288 = vst [vmem:[%s286] sm:$0xf] %v287
                  %v289 = vld [vmem:[%s285 + $0xc] sm:$0xf]
                  %290 = vst [vmem:[%s286 + $0x4] sm:$0xf] %v289
                $region96: #{bert_encoder_forward.14} parent=83 // loop_footer
                  %s284 = sadd.s32 1, %s280
                $region97: #{bert_encoder_forward.14} parent=83 // loop_footer_branch
                  %279 = sbr.rel target = $region93
                $region98: #{bert_encoder_forward.14} parent=83 // loop_exit
                  _
              $region84: #{bert_encoder_forward.14} parent=68 // pred_fallthru
                _
            $region69: #{bert_encoder_forward.14} parent=64 // pred_fallthru
              _
            // Predicated region
            $region70: #{bert_encoder_forward.14} parent=64 // pred_check
              _
            $region71: #{bert_encoder_forward.14} parent=64 // pred_check_branch
              %254 = sbr.rel (0) target = $region73
            $region72: #{bert_encoder_forward.14} parent=64 // pred_region
              loop: start=0, step=1, limit=1
              $region74: #{bert_encoder_forward.14} parent=72 // loop_pre_header
                _
              $region75: #{bert_encoder_forward.14} parent=72 // loop_header
                %s257 = sphi 0, %s261
                %p258 = scmp.ge.s32.totalorder %s257, 1
                %s262 = sphi %s248, %s248
                %s263 = sphi %s243, %s243
              $region76: #{bert_encoder_forward.14} parent=72 // loop_header_branch
                %260 = sbr.rel (%p258) target = $region80
              $region77: #{bert_encoder_forward.14} parent=72 // loop_body
                %v264 = vld [vmem:[%s262] sm:$0xf]
                %265 = vst [vmem:[%s263] sm:$0xf] %v264
                %v266 = vld [vmem:[%s262 + $0xc] sm:$0xf]
                %267 = vst [vmem:[%s263 + $0x4] sm:$0xf] %v266
              $region78: #{bert_encoder_forward.14} parent=72 // loop_footer
                %s261 = sadd.s32 1, %s257
              $region79: #{bert_encoder_forward.14} parent=72 // loop_footer_branch
                %256 = sbr.rel target = $region75
              $region80: #{bert_encoder_forward.14} parent=72 // loop_exit
                _
            $region73: #{bert_encoder_forward.14} parent=64 // pred_fallthru
              _
          $region65: #{bert_encoder_forward.14} parent=60 // pred_fallthru
            _
          %291 = vnop
        $region61: #{bert_encoder_forward.14} parent=15 // pred_fallthru
          _
        // Predicated region
        $region99: #{bert_encoder_forward.14} parent=15 // pred_check
          %p292 = pneg %p104
        $region100: #{bert_encoder_forward.14} parent=15 // pred_check_branch
          %294 = sbr.rel (%p292) target = $region102
        $region101: #{bert_encoder_forward.14} parent=15 // pred_region
          %s295 = sand.u32 %s94, 1
          %s296 = sand.u32 %s94, 1
          %s297 = smul.addr %s296, 8
          %s298 = scalar_lea.vmem [#allocation4], %s297
          %s299 = sadd.s32 %s18, 2
          %s300 = smul.addr %s17, 6
          %s301 = sadd.s32 %s299, %s300
          %s302 = smul.addr %s301, 4
          %s303 = scalar_lea.vmem %s2, %s302
          // Predicated region
          $region103: #{bert_encoder_forward.14} parent=101 // pred_check
            _
          $region104: #{bert_encoder_forward.14} parent=101 // pred_check_branch
            %305 = sbr.rel (0) target = $region106
          $region105: #{bert_encoder_forward.14} parent=101 // pred_region
            // Predicated region
            $region107: #{bert_encoder_forward.14} parent=105 // pred_check
              _
            $region108: #{bert_encoder_forward.14} parent=105 // pred_check_branch
              %307 = sbr.rel target = $region110
            $region109: #{bert_encoder_forward.14} parent=105 // pred_region
              // Predicated region
              $region122: #{bert_encoder_forward.14} parent=109 // pred_check
                _
              $region123: #{bert_encoder_forward.14} parent=109 // pred_check_branch
                %324 = sbr.rel (0) target = $region125
              $region124: #{bert_encoder_forward.14} parent=109 // pred_region
                loop: start=0, step=1, limit=1
                $region126: #{bert_encoder_forward.14} parent=124 // loop_pre_header
                  _
                $region127: #{bert_encoder_forward.14} parent=124 // loop_header
                  %s326 = sphi 0, %s330
                  %p327 = scmp.ge.s32.totalorder %s326, 1
                  %s331 = sphi %s303, %s303
                  %s332 = sphi %s298, %s298
                $region128: #{bert_encoder_forward.14} parent=124 // loop_header_branch
                  %329 = sbr.rel (%p327) target = $region132
                $region129: #{bert_encoder_forward.14} parent=124 // loop_body
                  _
                $region130: #{bert_encoder_forward.14} parent=124 // loop_footer
                  %s330 = sadd.s32 1, %s326
                $region131: #{bert_encoder_forward.14} parent=124 // loop_footer_branch
                  %325 = sbr.rel target = $region127
                $region132: #{bert_encoder_forward.14} parent=124 // loop_exit
                  _
                loop: start=0, step=1, limit=1
                $region133: #{bert_encoder_forward.14} parent=124 // loop_pre_header
                  _
                $region134: #{bert_encoder_forward.14} parent=124 // loop_header
                  %s335 = sphi 0, %s339
                  %p336 = scmp.ge.s32.totalorder %s335, 1
                  %s340 = sphi %s303, %s303
                  %s341 = sphi %s298, %s298
                $region135: #{bert_encoder_forward.14} parent=124 // loop_header_branch
                  %338 = sbr.rel (%p336) target = $region139
                $region136: #{bert_encoder_forward.14} parent=124 // loop_body
                  %v342 = vld [vmem:[%s340] sm:$0xf]
                  %343 = vst [vmem:[%s341] sm:$0xf] %v342
                  %v344 = vld [vmem:[%s340 + $0xc] sm:$0xf]
                  %345 = vst [vmem:[%s341 + $0x4] sm:$0xf] %v344
                $region137: #{bert_encoder_forward.14} parent=124 // loop_footer
                  %s339 = sadd.s32 1, %s335
                $region138: #{bert_encoder_forward.14} parent=124 // loop_footer_branch
                  %334 = sbr.rel target = $region134
                $region139: #{bert_encoder_forward.14} parent=124 // loop_exit
                  _
              $region125: #{bert_encoder_forward.14} parent=109 // pred_fallthru
                _
            $region110: #{bert_encoder_forward.14} parent=105 // pred_fallthru
              _
            // Predicated region
            $region111: #{bert_encoder_forward.14} parent=105 // pred_check
              _
            $region112: #{bert_encoder_forward.14} parent=105 // pred_check_branch
              %309 = sbr.rel (0) target = $region114
            $region113: #{bert_encoder_forward.14} parent=105 // pred_region
              loop: start=0, step=1, limit=1
              $region115: #{bert_encoder_forward.14} parent=113 // loop_pre_header
                _
              $region116: #{bert_encoder_forward.14} parent=113 // loop_header
                %s312 = sphi 0, %s316
                %p313 = scmp.ge.s32.totalorder %s312, 1
                %s317 = sphi %s303, %s303
                %s318 = sphi %s298, %s298
              $region117: #{bert_encoder_forward.14} parent=113 // loop_header_branch
                %315 = sbr.rel (%p313) target = $region121
              $region118: #{bert_encoder_forward.14} parent=113 // loop_body
                %v319 = vld [vmem:[%s317] sm:$0xf]
                %320 = vst [vmem:[%s318] sm:$0xf] %v319
                %v321 = vld [vmem:[%s317 + $0xc] sm:$0xf]
                %322 = vst [vmem:[%s318 + $0x4] sm:$0xf] %v321
              $region119: #{bert_encoder_forward.14} parent=113 // loop_footer
                %s316 = sadd.s32 1, %s312
              $region120: #{bert_encoder_forward.14} parent=113 // loop_footer_branch
                %311 = sbr.rel target = $region116
              $region121: #{bert_encoder_forward.14} parent=113 // loop_exit
                _
            $region114: #{bert_encoder_forward.14} parent=105 // pred_fallthru
              _
          $region106: #{bert_encoder_forward.14} parent=101 // pred_fallthru
            _
          %346 = vnop
        $region102: #{bert_encoder_forward.14} parent=15 // pred_fallthru
          _
        // Predicated region
        $region140: #{bert_encoder_forward.14} parent=15 // pred_check
          %p347 = pneg %p130
        $region141: #{bert_encoder_forward.14} parent=15 // pred_check_branch
          %349 = sbr.rel (%p347) target = $region143
        $region142: #{bert_encoder_forward.14} parent=15 // pred_region
          %p350 = scmp.lt.s32.totalorder %s17, 5
          %s351 = scalar_select %p350, %s17, 5
          %s352 = scalar_lea.vmem %s3, %s351
        $region143: #{bert_encoder_forward.14} parent=15 // pred_fallthru
          _
      $region16: #{bert_encoder_forward.14} parent=5 // pred_fallthru
        _
      %p353 = scmp.le.s32.totalorder 1, %s10
      %p354 = scmp.lt.s32.totalorder %s10, 7
      %p355 = pnand %p353, %p354
      %p356 = pneg %p355
      // Predicated region
      $region144: #{bert_encoder_forward.14} parent=5 // pred_check
        _
      $region145: #{bert_encoder_forward.14} parent=5 // pred_check_branch
        %358 = sbr.rel (%p355) target = $region147
      $region146: #{bert_encoder_forward.14} parent=5 // pred_region
        %s359 = ssub.s32 %s10, 1
        %s360 = sand.u32 %s37, 1
        %s361 = sand.u32 %s37, 1
        %s362 = smul.addr %s361, 8
        %s363 = scalar_lea.vmem [#allocation2], %s362
        // Predicated region
        $region148: #{bert_encoder_forward.14} parent=146 // pred_check
          %p364 = pneg %p50
        $region149: #{bert_encoder_forward.14} parent=146 // pred_check_branch
          %366 = sbr.rel (%p364) target = $region151
        $region150: #{bert_encoder_forward.14} parent=146 // pred_region
          _
        $region151: #{bert_encoder_forward.14} parent=146 // pred_fallthru
          _
        %s367 = sand.u32 %s67, 1
        %s368 = sand.u32 %s67, 1
        %s369 = smul.addr %s368, 8
        %s370 = scalar_lea.vmem [#allocation3], %s369
        // Predicated region
        $region152: #{bert_encoder_forward.14} parent=146 // pred_check
          %p371 = pneg %p80
        $region153: #{bert_encoder_forward.14} parent=146 // pred_check_branch
          %373 = sbr.rel (%p371) target = $region155
        $region154: #{bert_encoder_forward.14} parent=146 // pred_region
          _
        $region155: #{bert_encoder_forward.14} parent=146 // pred_fallthru
          _
        %s374 = sand.u32 %s97, 1
        %s375 = sand.u32 %s97, 1
        %s376 = smul.addr %s375, 8
        %s377 = scalar_lea.vmem [#allocation4], %s376
        // Predicated region
        $region156: #{bert_encoder_forward.14} parent=146 // pred_check
          %p378 = pneg %p110
        $region157: #{bert_encoder_forward.14} parent=146 // pred_check_branch
          %380 = sbr.rel (%p378) target = $region159
        $region158: #{bert_encoder_forward.14} parent=146 // pred_region
          _
        $region159: #{bert_encoder_forward.14} parent=146 // pred_fallthru
          _
        %s381 = sand.u32 %s37, 1
        %s382 = sand.u32 %s37, 1
        %s383 = smul.addr %s382, 8
        %s384 = scalar_lea.vmem [#allocation2], %s383
        %p385 = pneg %p50
        %p386 = pneg %p47
        %s387 = sand.u32 %s67, 1
        %s388 = sand.u32 %s67, 1
        %s389 = smul.addr %s388, 8
        %s390 = scalar_lea.vmem [#allocation3], %s389
        %p391 = pneg %p80
        %p392 = pneg %p77
        %s393 = sand.u32 %s97, 1
        %s394 = sand.u32 %s97, 1
        %s395 = smul.addr %s394, 8
        %s396 = scalar_lea.vmem [#allocation4], %s395
        %p397 = pneg %p110
        %p398 = pneg %p107
        %p399 = scmp.lt.s32.totalorder %s19, 5
        %s400 = scalar_select %p399, %s19, 5
        %s401 = scalar_lea.vmem %s3, %s400
        %p402 = pneg %p136
        %p403 = pneg %p133
        %p404 = pneg %p164
        %p405 = pneg %p161
        %p406 = scmp.lt.s32.totalorder %s19, 5
        %s407 = scalar_select %p406, %s19, 5
        %p408 = scmp.lt.s32.totalorder %s20, 0
        %s409 = scalar_select %p408, %s20, 0
        %s410 = smul.addr %s407, 2
        %s411 = sadd.s32 %s409, %s410
        %s412 = smul.addr %s411, 4
        %s413 = scalar_lea.vmem %s4, %s412
        %s414 = sadd.s32 %s20, 1
        %s415 = sadd.s32 %s20, 2
        %p416 = scmp.lt.s32.totalorder %s19, 5
        %s417 = scalar_select %p416, %s19, 5
        %s418 = scalar_lea.vmem %s3, %s417
        %p419 = scmp.lt.s32.totalorder %s19, 5
        %s420 = scalar_select %p419, %s19, 5
        %p421 = scmp.lt.s32.totalorder %s20, 0
        %s422 = scalar_select %p421, %s20, 0
        %s423 = smul.addr %s420, 2
        %s424 = sadd.s32 %s422, %s423
        %s425 = smul.addr %s424, 4
        %s426 = scalar_lea.vmem %s4, %s425
        %v428 = vld [vmem:[%s418] sm:$0x1]
        %v429 = vld [vmem:[%s363] sm:$0xf]
        %v430 = vld [vmem:[%s363 + $0x4] sm:$0xf]
        %v431 = vld [vmem:[%s370] sm:$0xf]
        %v432 = vld [vmem:[%s370 + $0x4] sm:$0xf]
        %v433 = vld [vmem:[%s377] sm:$0xf]
        %v434 = vld [vmem:[%s377 + $0x4] sm:$0xf]
        %v436 = vlaneseq
        %v437 = vshrl.u32 %v436, 7
        %v438 = vsub.s32 0, %v437
        %v439 = vrot.slane %v428, %v438
        %v443 = vunpack.c.l.b16 %v429
        %v444 = vunpack.c.l.b16 %v430
        %v445 = vpack.c.b16 %v444, %v443
        %v448 = vunpack.c.l.b16 %v431
        %v449 = vunpack.c.l.b16 %v432
        %v450 = vpack.c.b16 %v449, %v448
        %vm451 = vcmask 523264
        %v453 = vsel %vm451, %v445, 0
        %v456 = vsel %vm451, %v450, 0
        %458 = vmatprep.subr.bf16.mxu0 0
        %459 = vmatpush1.bf16.xpose.msra.mxu0 %v456
        %460 = vmatprep.subr.bf16.mxu0 0
        %461 = vmatpush1.bf16.xpose.msra.mxu0 0
        %462 = vmatprep.subr.bf16.mxu0 0
        %463 = vmatpush1.bf16.xpose.msra.mxu0 0
        %464 = vmatprep.subr.bf16.mxu0 0
        %465 = vmatpush1.bf16.xpose.msra.mxu0 0
        %466 = vmatprep.subr.bf16.mxu0 0
        %467 = vmatpush1.bf16.xpose.msra.mxu0 0
        %468 = vmatprep.subr.bf16.mxu0 0
        %469 = vmatpush1.bf16.xpose.msra.mxu0 0
        %470 = vmatprep.subr.bf16.mxu0 0
        %471 = vmatpush1.bf16.xpose.msra.mxu0 0
        %472 = vmatprep.subr.bf16.mxu0 0
        %473 = vmatpush1.bf16.xpose.msra.mxu0 0
        %474 = vmatprep.subr.bf16.mxu0 0
        %475 = vmatpush1.bf16.xpose.msra.mxu0 0
        %476 = vmatprep.subr.bf16.mxu0 0
        %477 = vmatpush1.bf16.xpose.msra.mxu0 0
        %478 = vmatprep.subr.bf16.mxu0 0
        %479 = vmatpush1.bf16.xpose.msra.mxu0 0
        %480 = vmatprep.subr.bf16.mxu0 0
        %481 = vmatpush1.bf16.xpose.msra.mxu0 0
        %482 = vmatprep.subr.bf16.mxu0 0
        %483 = vmatpush1.bf16.xpose.msra.mxu0 0
        %484 = vmatprep.subr.bf16.mxu0 0
        %485 = vmatpush1.bf16.xpose.msra.mxu0 0
        %486 = vmatprep.subr.bf16.mxu0 0
        %487 = vmatpush1.bf16.xpose.msra.mxu0 0
        %488 = vmatprep.subr.bf16.mxu0 0
        %489 = vmatpush1.bf16.xpose.msra.mxu0 0
        %490 = vmatprep.mubr.bf16.mxu0 0
        %491 = vmatmul.mubr.bf16.gmra.mrb[0].mxu0 %v453
        %v492 = vpop.f32.mrb[0].mxu0
        %v493 = vadd.f32 %v439, %v492
        %v494 = vpop.f32.mrb[0].mxu0
        %v495 = vpop.f32.mrb[0].mxu0
        %v496 = vadd.f32 %v439, %v495
        %v497 = vpop.f32.mrb[0].mxu0
        %498 = vdwg.mxu0
        %vm499 = vcmask 130048
        %v500 = vsel %vm499, %v493, -inf
        %501 = vmax.xlane.f32.xlu0 %v500
        %v502 = vpop.xlane.xlu0 %501
        %v503 = vsel %vm499, %v496, -inf
        %504 = vmax.xlane.f32.xlu0 %v503
        %v505 = vpop.xlane.xlu0 %504
        %v506 = vsub.f32 %v493, %v502
        %v507 = vsub.f32 %v496, %v505
        %v508 = vmul.f32 %v506, 1.442695
        %v509 = vpow.pop %v508
        %v510 = vmul.f32 %v507, 1.442695
        %v511 = vpow.pop %v510
        %v512 = vsel %vm499, %v509, 0.0
        %513 = vadd.xlane.f32.xlu0 %v512
        %v514 = vpop.xlane.xlu0 %513
        %v515 = vsel %vm499, %v511, 0.0
        %516 = vadd.xlane.f32.xlu0 %v515
        %v517 = vpop.xlane.xlu0 %516
        %v518 = vrcp.pop %v514
        %v519 = vrcp.pop %v517
        %v520 = vmul.f32 %v509, %v518
        %v521 = vmul.f32 %v511, %v519
        %v522 = vpack.c.bf16 %v521, %v520
        %v525 = vunpack.c.l.b16 %v433
        %v526 = vunpack.c.l.b16 %v434
        %v527 = vpack.c.b16 %v526, %v525
        %v530 = vsel %vm499, %v522, 0
        %532 = vmatprep.subr.bf16.mxu0 0
        %533 = vmatpush1.bf16.msra.mxu0 %v527
        %534 = vmatprep.subr.bf16.mxu0 0
        %535 = vmatpush1.bf16.msra.mxu0 0
        %536 = vmatprep.subr.bf16.mxu0 0
        %537 = vmatpush1.bf16.msra.mxu0 0
        %538 = vmatprep.subr.bf16.mxu0 0
        %539 = vmatpush1.bf16.msra.mxu0 0
        %540 = vmatprep.subr.bf16.mxu0 0
        %541 = vmatpush1.bf16.msra.mxu0 0
        %542 = vmatprep.subr.bf16.mxu0 0
        %543 = vmatpush1.bf16.msra.mxu0 0
        %544 = vmatprep.subr.bf16.mxu0 0
        %545 = vmatpush1.bf16.msra.mxu0 0
        %546 = vmatprep.subr.bf16.mxu0 0
        %547 = vmatpush1.bf16.msra.mxu0 0
        %548 = vmatprep.subr.bf16.mxu0 0
        %549 = vmatpush1.bf16.msra.mxu0 0
        %550 = vmatprep.subr.bf16.mxu0 0
        %551 = vmatpush1.bf16.msra.mxu0 0
        %552 = vmatprep.subr.bf16.mxu0 0
        %553 = vmatpush1.bf16.msra.mxu0 0
        %554 = vmatprep.subr.bf16.mxu0 0
        %555 = vmatpush1.bf16.msra.mxu0 0
        %556 = vmatprep.subr.bf16.mxu0 0
        %557 = vmatpush1.bf16.msra.mxu0 0
        %558 = vmatprep.subr.bf16.mxu0 0
        %559 = vmatpush1.bf16.msra.mxu0 0
        %560 = vmatprep.subr.bf16.mxu0 0
        %561 = vmatpush1.bf16.msra.mxu0 0
        %562 = vmatprep.subr.bf16.mxu0 0
        %563 = vmatpush1.bf16.msra.mxu0 0
        %564 = vmatprep.mubr.bf16.mxu0 0
        %565 = vmatmul.mubr.bf16.gmra.mrb[0].mxu0 %v530
        %v566 = vpop.f32.mrb[0].mxu0
        %v567 = vadd.f32 0.0, %v566
        %v568 = vpop.f32.mrb[0].mxu0
        %v569 = vpop.f32.mrb[0].mxu0
        %v570 = vadd.f32 0.0, %v569
        %v571 = vpop.f32.mrb[0].mxu0
        %572 = vdwg.mxu0
        %v573 = vpack.c.bf16 %v570, %v567
        %v575 = vunpack.c.l.b16 %v573
        %v576 = vunpack.c.h.b16 %v573
        %v577 = vpack.c.b16 %v575, %v575
        %v578 = vpack.c.b16 %v576, %v576
        %vm581 = vcmask 519168
        %582 = vst.msk [vmem:[%s426] sm:$0xf] %vm581, %v577
        %583 = vst.msk [vmem:[%s426 + $0x4] sm:$0xf] %vm581, %v578
        %584 = vrot.lane.b32.xlu0 %v445, 64
        %v585 = vpop.permute.xlu0 %584
        %586 = vrot.lane.b32.xlu0 %v450, 64
        %v587 = vpop.permute.xlu0 %586
        %v589 = vsel %vm451, %v585, 0
        %v592 = vsel %vm451, %v587, 0
        %594 = vmatprep.subr.bf16.mxu0 0
        %595 = vmatpush1.bf16.xpose.msra.mxu0 %v592
        %596 = vmatprep.subr.bf16.mxu0 0
        %597 = vmatpush1.bf16.xpose.msra.mxu0 0
        %598 = vmatprep.subr.bf16.mxu0 0
        %599 = vmatpush1.bf16.xpose.msra.mxu0 0
        %600 = vmatprep.subr.bf16.mxu0 0
        %601 = vmatpush1.bf16.xpose.msra.mxu0 0
        %602 = vmatprep.subr.bf16.mxu0 0
        %603 = vmatpush1.bf16.xpose.msra.mxu0 0
        %604 = vmatprep.subr.bf16.mxu0 0
        %605 = vmatpush1.bf16.xpose.msra.mxu0 0
        %606 = vmatprep.subr.bf16.mxu0 0
        %607 = vmatpush1.bf16.xpose.msra.mxu0 0
        %608 = vmatprep.subr.bf16.mxu0 0
        %609 = vmatpush1.bf16.xpose.msra.mxu0 0
        %610 = vmatprep.subr.bf16.mxu0 0
        %611 = vmatpush1.bf16.xpose.msra.mxu0 0
        %612 = vmatprep.subr.bf16.mxu0 0
        %613 = vmatpush1.bf16.xpose.msra.mxu0 0
        %614 = vmatprep.subr.bf16.mxu0 0
        %615 = vmatpush1.bf16.xpose.msra.mxu0 0
        %616 = vmatprep.subr.bf16.mxu0 0
        %617 = vmatpush1.bf16.xpose.msra.mxu0 0
        %618 = vmatprep.subr.bf16.mxu0 0
        %619 = vmatpush1.bf16.xpose.msra.mxu0 0
        %620 = vmatprep.subr.bf16.mxu0 0
        %621 = vmatpush1.bf16.xpose.msra.mxu0 0
        %622 = vmatprep.subr.bf16.mxu0 0
        %623 = vmatpush1.bf16.xpose.msra.mxu0 0
        %624 = vmatprep.subr.bf16.mxu0 0
        %625 = vmatpush1.bf16.xpose.msra.mxu0 0
        %626 = vmatprep.mubr.bf16.mxu0 0
        %627 = vmatmul.mubr.bf16.gmra.mrb[0].mxu0 %v589
        %v628 = vpop.f32.mrb[0].mxu0
        %v629 = vadd.f32 %v439, %v628
        %v630 = vpop.f32.mrb[0].mxu0
        %v631 = vpop.f32.mrb[0].mxu0
        %v632 = vadd.f32 %v439, %v631
        %v633 = vpop.f32.mrb[0].mxu0
        %634 = vdwg.mxu0
        %v635 = vsel %vm499, %v629, -inf
        %636 = vmax.xlane.f32.xlu0 %v635
        %v637 = vpop.xlane.xlu0 %636
        %v638 = vsel %vm499, %v632, -inf
        %639 = vmax.xlane.f32.xlu0 %v638
        %v640 = vpop.xlane.xlu0 %639
        %v641 = vsub.f32 %v629, %v637
        %v642 = vsub.f32 %v632, %v640
        %v643 = vmul.f32 %v641, 1.442695
        %v644 = vpow.pop %v643
        %v645 = vmul.f32 %v642, 1.442695
        %v646 = vpow.pop %v645
        %v647 = vsel %vm499, %v644, 0.0
        %648 = vadd.xlane.f32.xlu0 %v647
        %v649 = vpop.xlane.xlu0 %648
        %v650 = vsel %vm499, %v646, 0.0
        %651 = vadd.xlane.f32.xlu0 %v650
        %v652 = vpop.xlane.xlu0 %651
        %v653 = vrcp.pop %v649
        %v654 = vrcp.pop %v652
        %v655 = vmul.f32 %v644, %v653
        %v656 = vmul.f32 %v646, %v654
        %v657 = vpack.c.bf16 %v656, %v655
        %658 = vrot.lane.b32.xlu0 %v527, 64
        %v659 = vpop.permute.xlu0 %658
        %v662 = vsel %vm499, %v657, 0
        %664 = vmatprep.subr.bf16.mxu0 0
        %665 = vmatpush1.bf16.msra.mxu0 %v659
        %666 = vmatprep.subr.bf16.mxu0 0
        %667 = vmatpush1.bf16.msra.mxu0 0
        %668 = vmatprep.subr.bf16.mxu0 0
        %669 = vmatpush1.bf16.msra.mxu0 0
        %670 = vmatprep.subr.bf16.mxu0 0
        %671 = vmatpush1.bf16.msra.mxu0 0
        %672 = vmatprep.subr.bf16.mxu0 0
        %673 = vmatpush1.bf16.msra.mxu0 0
        %674 = vmatprep.subr.bf16.mxu0 0
        %675 = vmatpush1.bf16.msra.mxu0 0
        %676 = vmatprep.subr.bf16.mxu0 0
        %677 = vmatpush1.bf16.msra.mxu0 0
        %678 = vmatprep.subr.bf16.mxu0 0
        %679 = vmatpush1.bf16.msra.mxu0 0
        %680 = vmatprep.subr.bf16.mxu0 0
        %681 = vmatpush1.bf16.msra.mxu0 0
        %682 = vmatprep.subr.bf16.mxu0 0
        %683 = vmatpush1.bf16.msra.mxu0 0
        %684 = vmatprep.subr.bf16.mxu0 0
        %685 = vmatpush1.bf16.msra.mxu0 0
        %686 = vmatprep.subr.bf16.mxu0 0
        %687 = vmatpush1.bf16.msra.mxu0 0
        %688 = vmatprep.subr.bf16.mxu0 0
        %689 = vmatpush1.bf16.msra.mxu0 0
        %690 = vmatprep.subr.bf16.mxu0 0
        %691 = vmatpush1.bf16.msra.mxu0 0
        %692 = vmatprep.subr.bf16.mxu0 0
        %693 = vmatpush1.bf16.msra.mxu0 0
        %694 = vmatprep.subr.bf16.mxu0 0
        %695 = vmatpush1.bf16.msra.mxu0 0
        %696 = vmatprep.mubr.bf16.mxu0 0
        %697 = vmatmul.mubr.bf16.gmra.mrb[0].mxu0 %v662
        %v698 = vpop.f32.mrb[0].mxu0
        %v699 = vadd.f32 0.0, %v698
        %v700 = vpop.f32.mrb[0].mxu0
        %v701 = vpop.f32.mrb[0].mxu0
        %v702 = vadd.f32 0.0, %v701
        %v703 = vpop.f32.mrb[0].mxu0
        %704 = vdwg.mxu0
        %v705 = vpack.c.bf16 %v702, %v699
        %v707 = vunpack.c.l.b16 %v705
        %v708 = vunpack.c.h.b16 %v705
        %v709 = vpack.c.b16 %v707, %v707
        %v710 = vpack.c.b16 %v708, %v708
        %711 = vrot.lane.b32.xlu0 %v709, 64
        %v712 = vpop.permute.xlu0 %711
        %713 = vrot.lane.b32.xlu0 %v710, 64
        %v714 = vpop.permute.xlu0 %713
        %vm717 = vcmask 1043968
        %718 = vst.msk [vmem:[%s426] sm:$0xf] %vm717, %v712
        %719 = vst.msk [vmem:[%s426 + $0x4] sm:$0xf] %vm717, %v714
        %p720 = scmp.lt.s32.totalorder %s19, 5
        %s721 = scalar_select %p720, %s19, 5
        %p722 = scmp.lt.s32.totalorder %s20, 0
        %s723 = scalar_select %p722, %s20, 0
        %s724 = smul.addr %s721, 2
        %s725 = sadd.s32 %s723, %s724
        %s726 = smul.addr %s725, 4
        %s727 = scalar_lea.vmem %s4, %s726
        // Predicated region
        $region160: #{bert_encoder_forward.14} parent=146 // pred_check
          %p728 = pneg %p161
        $region161: #{bert_encoder_forward.14} parent=146 // pred_check_branch
          %730 = sbr.rel (%p728) target = $region163
        $region162: #{bert_encoder_forward.14} parent=146 // pred_region
          _
        $region163: #{bert_encoder_forward.14} parent=146 // pred_fallthru
          _
      $region147: #{bert_encoder_forward.14} parent=5 // pred_fallthru
        _
      %p731 = scmp.le.s32.totalorder 2, %s10
      // Predicated region
      $region164: #{bert_encoder_forward.14} parent=5 // pred_check
        %p732 = pneg %p731
      $region165: #{bert_encoder_forward.14} parent=5 // pred_check_branch
        %734 = sbr.rel (%p732) target = $region167
      $region166: #{bert_encoder_forward.14} parent=5 // pred_region
        %s735 = ssub.s32 %s10, 2
        // Predicated region
        $region168: #{bert_encoder_forward.14} parent=166 // pred_check
          %p736 = pneg %p167
        $region169: #{bert_encoder_forward.14} parent=166 // pred_check_branch
          %738 = sbr.rel (%p736) target = $region171
        $region170: #{bert_encoder_forward.14} parent=166 // pred_region
          %p739 = scmp.lt.s32.totalorder %s21, 5
          %s740 = scalar_select %p739, %s21, 5
          %p741 = scmp.lt.s32.totalorder %s22, 0
          %s742 = scalar_select %p741, %s22, 0
          %s743 = smul.addr %s740, 2
          %s744 = sadd.s32 %s742, %s743
          %s745 = smul.addr %s744, 4
          %s746 = scalar_lea.vmem %s4, %s745
        $region171: #{bert_encoder_forward.14} parent=166 // pred_fallthru
          _
      $region167: #{bert_encoder_forward.14} parent=5 // pred_fallthru
        _
    $region6: #{bert_encoder_forward.14} parent=1 // loop_footer
      %s14 = sadd.s32 1, %s10
    $region7: #{bert_encoder_forward.14} parent=1 // loop_footer_branch
      %9 = sbr.rel target = $region3
    $region8: #{bert_encoder_forward.14} parent=1 // loop_exit
      _

// kernel: bert_encoder_forward.13
$region0: #{bert_encoder_forward.13}
  #allocation0 [shape = 'u32[]', space=smem, size = 0x4, offset = 0x4, fixed_abs, tag = 'smem constant byte address 0x4 - core index']
  #allocation1 [shape = 'u32[144,128]{1,0:T(1,128)}', space=vmem, size = 0x12000, scoped, tag = 'internal scratch']
  #allocation2 [shape = 'f32[96,384]{1,0:T(8,128)}', space=vmem, size = 0x24000, scoped, tag = 'scratch operand']
  %s0 = inlined_call_operand.vmem [shape: bf16[96,128], index: 0, kind: input, shape index: {}]
  %s1 = inlined_call_operand.vmem [shape: bf16[128,384], index: 1, kind: input, shape index: {}]
  %s2 = inlined_call_operand.vmem [shape: f32[1,384], index: 2, kind: input, shape index: {}]
  %s3 = inlined_call_operand.vmem [shape: bf16[96,384], index: 3, kind: output, shape index: {}]
  %s4 = sld [smem:[#allocation0]]
  $region30: #{bert_encoder_forward.13} parent=0
    _
  %s6 = ssub.s32 1, %s4
  %s7 = scalar_select 0, %s6, %s4
  // Predicated region
  $region2: #{bert_encoder_forward.13} parent=0 // pred_check
    _
  $region3: #{bert_encoder_forward.13} parent=0 // pred_check_branch
    %9 = sbr.rel (0) target = $region5
  $region4: #{bert_encoder_forward.13} parent=0 // pred_region
    _
  $region5: #{bert_encoder_forward.13} parent=0 // pred_fallthru
    _
  // Predicated region
  $region6: #{bert_encoder_forward.13} parent=0 // pred_check
    _
  $region7: #{bert_encoder_forward.13} parent=0 // pred_check_branch
    %11 = sbr.rel (0) target = $region9
  $region8: #{bert_encoder_forward.13} parent=0 // pred_region
    _
  $region9: #{bert_encoder_forward.13} parent=0 // pred_fallthru
    _
  // Predicated region
  $region10: #{bert_encoder_forward.13} parent=0 // pred_check
    _
  $region11: #{bert_encoder_forward.13} parent=0 // pred_check_branch
    %13 = sbr.rel (0) target = $region13
  $region12: #{bert_encoder_forward.13} parent=0 // pred_region
    _
  $region13: #{bert_encoder_forward.13} parent=0 // pred_fallthru
    _
  %p15 = scmp.eq.s32.totalorder 0, 0
  // Predicated region
  $region14: #{bert_encoder_forward.13} parent=0 // pred_check
    %p16 = pneg %p15
  $region15: #{bert_encoder_forward.13} parent=0 // pred_check_branch
    %18 = sbr.rel (%p16) target = $region17
  $region16: #{bert_encoder_forward.13} parent=0 // pred_region
    %19 = vst [vmem:[#allocation2] sm:$0xff] 0.0
    %20 = vst [vmem:[#allocation2 + $0x8] sm:$0xff] 0.0
    %21 = vst [vmem:[#allocation2 + $0x10] sm:$0xff] 0.0
    %22 = vst [vmem:[#allocation2 + $0x18] sm:$0xff] 0.0
    %23 = vst [vmem:[#allocation2 + $0x20] sm:$0xff] 0.0
    %24 = vst [vmem:[#allocation2 + $0x28] sm:$0xff] 0.0
    %25 = vst [vmem:[#allocation2 + $0x30] sm:$0xff] 0.0
    %26 = vst [vmem:[#allocation2 + $0x38] sm:$0xff] 0.0
    %27 = vst [vmem:[#allocation2 + $0x40] sm:$0xff] 0.0
    %28 = vst [vmem:[#allocation2 + $0x48] sm:$0xff] 0.0
    %29 = vst [vmem:[#allocation2 + $0x50] sm:$0xff] 0.0
    %30 = vst [vmem:[#allocation2 + $0x58] sm:$0xff] 0.0
    %31 = vst [vmem:[#allocation2 + $0x60] sm:$0xff] 0.0
    %32 = vst [vmem:[#allocation2 + $0x68] sm:$0xff] 0.0
    %33 = vst [vmem:[#allocation2 + $0x70] sm:$0xff] 0.0
    %34 = vst [vmem:[#allocation2 + $0x78] sm:$0xff] 0.0
    %35 = vst [vmem:[#allocation2 + $0x80] sm:$0xff] 0.0
    %36 = vst [vmem:[#allocation2 + $0x88] sm:$0xff] 0.0
    %37 = vst [vmem:[#allocation2 + $0x90] sm:$0xff] 0.0
    %38 = vst [vmem:[#allocation2 + $0x98] sm:$0xff] 0.0
    %39 = vst [vmem:[#allocation2 + $0xa0] sm:$0xff] 0.0
    %40 = vst [vmem:[#allocation2 + $0xa8] sm:$0xff] 0.0
    %41 = vst [vmem:[#allocation2 + $0xb0] sm:$0xff] 0.0
    %42 = vst [vmem:[#allocation2 + $0xb8] sm:$0xff] 0.0
    %43 = vst [vmem:[#allocation2 + $0xc0] sm:$0xff] 0.0
    %44 = vst [vmem:[#allocation2 + $0xc8] sm:$0xff] 0.0
    %45 = vst [vmem:[#allocation2 + $0xd0] sm:$0xff] 0.0
    %46 = vst [vmem:[#allocation2 + $0xd8] sm:$0xff] 0.0
    %47 = vst [vmem:[#allocation2 + $0xe0] sm:$0xff] 0.0
    %48 = vst [vmem:[#allocation2 + $0xe8] sm:$0xff] 0.0
    %49 = vst [vmem:[#allocation2 + $0xf0] sm:$0xff] 0.0
    %50 = vst [vmem:[#allocation2 + $0xf8] sm:$0xff] 0.0
    %51 = vst [vmem:[#allocation2 + $0x100] sm:$0xff] 0.0
    %52 = vst [vmem:[#allocation2 + $0x108] sm:$0xff] 0.0
    %53 = vst [vmem:[#allocation2 + $0x110] sm:$0xff] 0.0
    %54 = vst [vmem:[#allocation2 + $0x118] sm:$0xff] 0.0
  $region17: #{bert_encoder_forward.13} parent=0 // pred_fallthru
    _
  %v55 = vld [vmem:[#allocation2] sm:$0xff]
  %v56 = vld [vmem:[#allocation2 + $0x8] sm:$0xff]
  %v57 = vld [vmem:[#allocation2 + $0x10] sm:$0xff]
  %v58 = vld [vmem:[#allocation2 + $0x18] sm:$0xff]
  %v59 = vld [vmem:[#allocation2 + $0x20] sm:$0xff]
  %v60 = vld [vmem:[#allocation2 + $0x28] sm:$0xff]
  %v61 = vld [vmem:[#allocation2 + $0x30] sm:$0xff]
  %v62 = vld [vmem:[#allocation2 + $0x38] sm:$0xff]
  %v63 = vld [vmem:[#allocation2 + $0x40] sm:$0xff]
  %v64 = vld [vmem:[#allocation2 + $0x48] sm:$0xff]
  %v65 = vld [vmem:[#allocation2 + $0x50] sm:$0xff]
  %v66 = vld [vmem:[#allocation2 + $0x58] sm:$0xff]
  %v67 = vld [vmem:[#allocation2 + $0x60] sm:$0xff]
  %v68 = vld [vmem:[#allocation2 + $0x68] sm:$0xff]
  %v69 = vld [vmem:[#allocation2 + $0x70] sm:$0xff]
  %v70 = vld [vmem:[#allocation2 + $0x78] sm:$0xff]
  %v71 = vld [vmem:[#allocation2 + $0x80] sm:$0xff]
  %v72 = vld [vmem:[#allocation2 + $0x88] sm:$0xff]
  %v73 = vld [vmem:[#allocation2 + $0x90] sm:$0xff]
  %v74 = vld [vmem:[#allocation2 + $0x98] sm:$0xff]
  %v75 = vld [vmem:[#allocation2 + $0xa0] sm:$0xff]
  %v76 = vld [vmem:[#allocation2 + $0xa8] sm:$0xff]
  %v77 = vld [vmem:[#allocation2 + $0xb0] sm:$0xff]
  %v78 = vld [vmem:[#allocation2 + $0xb8] sm:$0xff]
  %v79 = vld [vmem:[#allocation2 + $0xc0] sm:$0xff]
  %v80 = vld [vmem:[#allocation2 + $0xc8] sm:$0xff]
  %v81 = vld [vmem:[#allocation2 + $0xd0] sm:$0xff]
  %v82 = vld [vmem:[#allocation2 + $0xd8] sm:$0xff]
  %v83 = vld [vmem:[#allocation2 + $0xe0] sm:$0xff]
  %v84 = vld [vmem:[#allocation2 + $0xe8] sm:$0xff]
  %v85 = vld [vmem:[#allocation2 + $0xf0] sm:$0xff]
  %v86 = vld [vmem:[#allocation2 + $0xf8] sm:$0xff]
  %v87 = vld [vmem:[#allocation2 + $0x100] sm:$0xff]
  %v88 = vld [vmem:[#allocation2 + $0x108] sm:$0xff]
  %v89 = vld [vmem:[#allocation2 + $0x110] sm:$0xff]
  %v90 = vld [vmem:[#allocation2 + $0x118] sm:$0xff]
  %v91 = vld [vmem:[%s0] sm:$0xf]
  %v92 = vld [vmem:[%s0 + $0x4] sm:$0xf]
  %v93 = vld [vmem:[%s0 + $0x8] sm:$0xf]
  %v94 = vld [vmem:[%s0 + $0xc] sm:$0xf]
  %v95 = vld [vmem:[%s0 + $0x10] sm:$0xf]
  %v96 = vld [vmem:[%s0 + $0x14] sm:$0xf]
  %v97 = vld [vmem:[%s0 + $0x18] sm:$0xf]
  %v98 = vld [vmem:[%s0 + $0x1c] sm:$0xf]
  %v99 = vld [vmem:[%s0 + $0x20] sm:$0xf]
  %v100 = vld [vmem:[%s0 + $0x24] sm:$0xf]
  %v101 = vld [vmem:[%s0 + $0x28] sm:$0xf]
  %v102 = vld [vmem:[%s0 + $0x2c] sm:$0xf]
  %v103 = vld [vmem:[%s1] sm:$0xff]
  %v104 = vld [vmem:[%s1 + $0x8] sm:$0xf]
  %v105 = vld [vmem:[%s1 + $0xc] sm:$0xff]
  %v106 = vld [vmem:[%s1 + $0x14] sm:$0xf]
  %v107 = vld [vmem:[%s1 + $0x18] sm:$0xff]
  %v108 = vld [vmem:[%s1 + $0x20] sm:$0xf]
  %v109 = vld [vmem:[%s1 + $0x24] sm:$0xff]
  %v110 = vld [vmem:[%s1 + $0x2c] sm:$0xf]
  %v111 = vld [vmem:[%s1 + $0x30] sm:$0xff]
  %v112 = vld [vmem:[%s1 + $0x38] sm:$0xf]
  %v113 = vld [vmem:[%s1 + $0x3c] sm:$0xff]
  %v114 = vld [vmem:[%s1 + $0x44] sm:$0xf]
  %v115 = vld [vmem:[%s1 + $0x48] sm:$0xff]
  %v116 = vld [vmem:[%s1 + $0x50] sm:$0xf]
  %v117 = vld [vmem:[%s1 + $0x54] sm:$0xff]
  %v118 = vld [vmem:[%s1 + $0x5c] sm:$0xf]
  %v119 = vld [vmem:[%s1 + $0x60] sm:$0xff]
  %v120 = vld [vmem:[%s1 + $0x68] sm:$0xf]
  %v121 = vld [vmem:[%s1 + $0x6c] sm:$0xff]
  %v122 = vld [vmem:[%s1 + $0x74] sm:$0xf]
  %v123 = vld [vmem:[%s1 + $0x78] sm:$0xff]
  %v124 = vld [vmem:[%s1 + $0x80] sm:$0xf]
  %v125 = vld [vmem:[%s1 + $0x84] sm:$0xff]
  %v126 = vld [vmem:[%s1 + $0x8c] sm:$0xf]
  %v127 = vld [vmem:[%s1 + $0x90] sm:$0xff]
  %v128 = vld [vmem:[%s1 + $0x98] sm:$0xf]
  %v129 = vld [vmem:[%s1 + $0x9c] sm:$0xff]
  %v130 = vld [vmem:[%s1 + $0xa4] sm:$0xf]
  %v131 = vld [vmem:[%s1 + $0xa8] sm:$0xff]
  %v132 = vld [vmem:[%s1 + $0xb0] sm:$0xf]
  %v133 = vld [vmem:[%s1 + $0xb4] sm:$0xff]
  %v134 = vld [vmem:[%s1 + $0xbc] sm:$0xf]
  %v147 = vunpack.c.l.b16 %v91
  %v148 = vunpack.c.l.b16 %v92
  %v149 = vunpack.c.l.b16 %v93
  %v150 = vunpack.c.l.b16 %v94
  %v151 = vunpack.c.l.b16 %v95
  %v152 = vunpack.c.l.b16 %v96
  %v153 = vunpack.c.l.b16 %v97
  %v154 = vunpack.c.l.b16 %v98
  %v155 = vunpack.c.l.b16 %v99
  %v156 = vunpack.c.l.b16 %v100
  %v157 = vunpack.c.l.b16 %v101
  %v158 = vunpack.c.l.b16 %v102
  %v159 = vpack.c.b16 %v148, %v147
  %v160 = vpack.c.b16 %v150, %v149
  %v161 = vpack.c.b16 %v152, %v151
  %v162 = vpack.c.b16 %v154, %v153
  %v163 = vpack.c.b16 %v156, %v155
  %v164 = vpack.c.b16 %v158, %v157
  %v203 = vunpack.c.l.b16 %v103
  %v204 = vunpack.c.h.b16 %v103
  %v205 = vunpack.c.l.b16 %v104
  %v206 = vunpack.c.l.b16 %v105
  %v207 = vunpack.c.h.b16 %v105
  %v208 = vunpack.c.l.b16 %v106
  %v209 = vunpack.c.l.b16 %v107
  %v210 = vunpack.c.h.b16 %v107
  %v211 = vunpack.c.l.b16 %v108
  %v212 = vunpack.c.l.b16 %v109
  %v213 = vunpack.c.h.b16 %v109
  %v214 = vunpack.c.l.b16 %v110
  %v215 = vunpack.c.l.b16 %v111
  %v216 = vunpack.c.h.b16 %v111
  %v217 = vunpack.c.l.b16 %v112
  %v218 = vunpack.c.l.b16 %v113
  %v219 = vunpack.c.h.b16 %v113
  %v220 = vunpack.c.l.b16 %v114
  %v221 = vunpack.c.l.b16 %v115
  %v222 = vunpack.c.h.b16 %v115
  %v223 = vunpack.c.l.b16 %v116
  %v224 = vunpack.c.l.b16 %v117
  %v225 = vunpack.c.h.b16 %v117
  %v226 = vunpack.c.l.b16 %v118
  %v227 = vunpack.c.l.b16 %v119
  %v228 = vunpack.c.h.b16 %v119
  %v229 = vunpack.c.l.b16 %v120
  %v230 = vunpack.c.l.b16 %v121
  %v231 = vunpack.c.h.b16 %v121
  %v232 = vunpack.c.l.b16 %v122
  %v233 = vunpack.c.l.b16 %v123
  %v234 = vunpack.c.h.b16 %v123
  %v235 = vunpack.c.l.b16 %v124
  %v236 = vunpack.c.l.b16 %v125
  %v237 = vunpack.c.h.b16 %v125
  %v238 = vunpack.c.l.b16 %v126
  %v239 = vunpack.c.l.b16 %v127
  %v240 = vunpack.c.h.b16 %v127
  %v241 = vunpack.c.l.b16 %v128
  %v242 = vunpack.c.l.b16 %v129
  %v243 = vunpack.c.h.b16 %v129
  %v244 = vunpack.c.l.b16 %v130
  %v245 = vunpack.c.l.b16 %v131
  %v246 = vunpack.c.h.b16 %v131
  %v247 = vunpack.c.l.b16 %v132
  %v248 = vunpack.c.l.b16 %v133
  %v249 = vunpack.c.h.b16 %v133
  %v250 = vunpack.c.l.b16 %v134
  %v251 = vpack.c.b16 %v206, %v203
  %v252 = vpack.c.b16 %v207, %v204
  %v253 = vpack.c.b16 %v208, %v205
  %v254 = vpack.c.b16 %v212, %v209
  %v255 = vpack.c.b16 %v213, %v210
  %v256 = vpack.c.b16 %v214, %v211
  %v257 = vpack.c.b16 %v218, %v215
  %v258 = vpack.c.b16 %v219, %v216
  %v259 = vpack.c.b16 %v220, %v217
  %v260 = vpack.c.b16 %v224, %v221
  %v261 = vpack.c.b16 %v225, %v222
  %v262 = vpack.c.b16 %v226, %v223
  %v263 = vpack.c.b16 %v230, %v227
  %v264 = vpack.c.b16 %v231, %v228
  %v265 = vpack.c.b16 %v232, %v229
  %v266 = vpack.c.b16 %v236, %v233
  %v267 = vpack.c.b16 %v237, %v234
  %v268 = vpack.c.b16 %v238, %v235
  %v269 = vpack.c.b16 %v242, %v239
  %v270 = vpack.c.b16 %v243, %v240
  %v271 = vpack.c.b16 %v244, %v241
  %v272 = vpack.c.b16 %v248, %v245
  %v273 = vpack.c.b16 %v249, %v246
  %v274 = vpack.c.b16 %v250, %v247
  %299 = vmatprep.subr.bf16.mxu0 %v252
  %300 = vmatpush1.bf16.msra.mxu0 %v251
  %301 = vmatprep.subr.bf16.mxu0 %v255
  %302 = vmatpush1.bf16.msra.mxu0 %v254
  %303 = vmatprep.subr.bf16.mxu0 %v258
  %304 = vmatpush1.bf16.msra.mxu0 %v257
  %305 = vmatprep.subr.bf16.mxu0 %v261
  %306 = vmatpush1.bf16.msra.mxu0 %v260
  %307 = vmatprep.subr.bf16.mxu0 %v264
  %308 = vmatpush1.bf16.msra.mxu0 %v263
  %309 = vmatprep.subr.bf16.mxu0 %v267
  %310 = vmatpush1.bf16.msra.mxu0 %v266
  %311 = vmatprep.subr.bf16.mxu0 %v270
  %312 = vmatpush1.bf16.msra.mxu0 %v269
  %313 = vmatprep.subr.bf16.mxu0 %v273
  %314 = vmatpush1.bf16.msra.mxu0 %v272
  %315 = vmatprep.subr.bf16.mxu0 0
  %316 = vmatpush1.bf16.msra.mxu0 0
  %317 = vmatprep.subr.bf16.mxu0 0
  %318 = vmatpush1.bf16.msra.mxu0 0
  %319 = vmatprep.subr.bf16.mxu0 0
  %320 = vmatpush1.bf16.msra.mxu0 0
  %321 = vmatprep.subr.bf16.mxu0 0
  %322 = vmatpush1.bf16.msra.mxu0 0
  %323 = vmatprep.subr.bf16.mxu0 0
  %324 = vmatpush1.bf16.msra.mxu0 0
  %325 = vmatprep.subr.bf16.mxu0 0
  %326 = vmatpush1.bf16.msra.mxu0 0
  %327 = vmatprep.subr.bf16.mxu0 0
  %328 = vmatpush1.bf16.msra.mxu0 0
  %329 = vmatprep.subr.bf16.mxu0 0
  %330 = vmatpush1.bf16.msra.mxu0 0
  %331 = vmatprep.mubr.bf16.mxu0 0
  %332 = vmatmul.mubr.bf16.gmra.mrb[0].mxu0 %v159
  %v333 = vpop.f32.mrb[0].mxu0
  %v334 = vadd.f32 0.0, %v333
  %v335 = vpop.f32.mrb[0].mxu0
  %v336 = vadd.f32 0.0, %v335
  %v337 = vpop.f32.mrb[0].mxu0
  %v338 = vadd.f32 0.0, %v337
  %v339 = vpop.f32.mrb[0].mxu0
  %v340 = vadd.f32 0.0, %v339
  %341 = vmatprep.mubr.bf16.mxu0 0
  %342 = vmatmul.mubr.bf16.gmra.mrb[0].mxu0 %v160
  %v343 = vpop.f32.mrb[0].mxu0
  %v344 = vadd.f32 0.0, %v343
  %v345 = vpop.f32.mrb[0].mxu0
  %v346 = vadd.f32 0.0, %v345
  %v347 = vpop.f32.mrb[0].mxu0
  %v348 = vadd.f32 0.0, %v347
  %v349 = vpop.f32.mrb[0].mxu0
  %v350 = vadd.f32 0.0, %v349
  %351 = vmatprep.mubr.bf16.mxu0 0
  %352 = vmatmul.mubr.bf16.gmra.mrb[0].mxu0 %v161
  %v353 = vpop.f32.mrb[0].mxu0
  %v354 = vadd.f32 0.0, %v353
  %v355 = vpop.f32.mrb[0].mxu0
  %v356 = vadd.f32 0.0, %v355
  %v357 = vpop.f32.mrb[0].mxu0
  %v358 = vadd.f32 0.0, %v357
  %v359 = vpop.f32.mrb[0].mxu0
  %v360 = vadd.f32 0.0, %v359
  %361 = vmatprep.mubr.bf16.mxu0 0
  %362 = vmatmul.mubr.bf16.gmra.mrb[0].mxu0 %v162
  %v363 = vpop.f32.mrb[0].mxu0
  %v364 = vadd.f32 0.0, %v363
  %v365 = vpop.f32.mrb[0].mxu0
  %v366 = vadd.f32 0.0, %v365
  %v367 = vpop.f32.mrb[0].mxu0
  %v368 = vadd.f32 0.0, %v367
  %v369 = vpop.f32.mrb[0].mxu0
  %v370 = vadd.f32 0.0, %v369
  %371 = vmatprep.mubr.bf16.mxu0 0
  %372 = vmatmul.mubr.bf16.gmra.mrb[0].mxu0 %v163
  %v373 = vpop.f32.mrb[0].mxu0
  %v374 = vadd.f32 0.0, %v373
  %v375 = vpop.f32.mrb[0].mxu0
  %v376 = vadd.f32 0.0, %v375
  %v377 = vpop.f32.mrb[0].mxu0
  %v378 = vadd.f32 0.0, %v377
  %v379 = vpop.f32.mrb[0].mxu0
  %v380 = vadd.f32 0.0, %v379
  %381 = vmatprep.mubr.bf16.mxu0 0
  %382 = vmatmul.mubr.bf16.gmra.mrb[0].mxu0 %v164
  %v383 = vpop.f32.mrb[0].mxu0
  %v384 = vadd.f32 0.0, %v383
  %v385 = vpop.f32.mrb[0].mxu0
  %v386 = vadd.f32 0.0, %v385
  %v387 = vpop.f32.mrb[0].mxu0
  %v388 = vadd.f32 0.0, %v387
  %v389 = vpop.f32.mrb[0].mxu0
  %v390 = vadd.f32 0.0, %v389
  %391 = vdwg.mxu0
  %392 = vmatprep.subr.bf16.mxu0 0
  %393 = vmatpush1.bf16.msra.mxu0 %v253
  %394 = vmatprep.subr.bf16.mxu0 0
  %395 = vmatpush1.bf16.msra.mxu0 %v256
  %396 = vmatprep.subr.bf16.mxu0 0
  %397 = vmatpush1.bf16.msra.mxu0 %v259
  %398 = vmatprep.subr.bf16.mxu0 0
  %399 = vmatpush1.bf16.msra.mxu0 %v262
  %400 = vmatprep.subr.bf16.mxu0 0
  %401 = vmatpush1.bf16.msra.mxu0 %v265
  %402 = vmatprep.subr.bf16.mxu0 0
  %403 = vmatpush1.bf16.msra.mxu0 %v268
  %404 = vmatprep.subr.bf16.mxu0 0
  %405 = vmatpush1.bf16.msra.mxu0 %v271
  %406 = vmatprep.subr.bf16.mxu0 0
  %407 = vmatpush1.bf16.msra.mxu0 %v274
  %408 = vmatprep.subr.bf16.mxu0 0
  %409 = vmatpush1.bf16.msra.mxu0 0
  %410 = vmatprep.subr.bf16.mxu0 0
  %411 = vmatpush1.bf16.msra.mxu0 0
  %412 = vmatprep.subr.bf16.mxu0 0
  %413 = vmatpush1.bf16.msra.mxu0 0
  %414 = vmatprep.subr.bf16.mxu0 0
  %415 = vmatpush1.bf16.msra.mxu0 0
  %416 = vmatprep.subr.bf16.mxu0 0
  %417 = vmatpush1.bf16.msra.mxu0 0
  %418 = vmatprep.subr.bf16.mxu0 0
  %419 = vmatpush1.bf16.msra.mxu0 0
  %420 = vmatprep.subr.bf16.mxu0 0
  %421 = vmatpush1.bf16.msra.mxu0 0
  %422 = vmatprep.subr.bf16.mxu0 0
  %423 = vmatpush1.bf16.msra.mxu0 0
  %424 = vmatprep.mubr.bf16.mxu0 0
  %425 = vmatmul.mubr.bf16.gmra.mrb[0].mxu0 %v159
  %v426 = vpop.f32.mrb[0].mxu0
  %v427 = vadd.f32 0.0, %v426
  %v428 = vpop.f32.mrb[0].mxu0
  %v429 = vpop.f32.mrb[0].mxu0
  %v430 = vadd.f32 0.0, %v429
  %v431 = vpop.f32.mrb[0].mxu0
  %432 = vmatprep.mubr.bf16.mxu0 0
  %433 = vmatmul.mubr.bf16.gmra.mrb[0].mxu0 %v160
  %v434 = vpop.f32.mrb[0].mxu0
  %v435 = vadd.f32 0.0, %v434
  %v436 = vpop.f32.mrb[0].mxu0
  %v437 = vpop.f32.mrb[0].mxu0
  %v438 = vadd.f32 0.0, %v437
  %v439 = vpop.f32.mrb[0].mxu0
  %440 = vmatprep.mubr.bf16.mxu0 0
  %441 = vmatmul.mubr.bf16.gmra.mrb[0].mxu0 %v161
  %v442 = vpop.f32.mrb[0].mxu0
  %v443 = vadd.f32 0.0, %v442
  %v444 = vpop.f32.mrb[0].mxu0
  %v445 = vpop.f32.mrb[0].mxu0
  %v446 = vadd.f32 0.0, %v445
  %v447 = vpop.f32.mrb[0].mxu0
  %448 = vmatprep.mubr.bf16.mxu0 0
  %449 = vmatmul.mubr.bf16.gmra.mrb[0].mxu0 %v162
  %v450 = vpop.f32.mrb[0].mxu0
  %v451 = vadd.f32 0.0, %v450
  %v452 = vpop.f32.mrb[0].mxu0
  %v453 = vpop.f32.mrb[0].mxu0
  %v454 = vadd.f32 0.0, %v453
  %v455 = vpop.f32.mrb[0].mxu0
  %456 = vmatprep.mubr.bf16.mxu0 0
  %457 = vmatmul.mubr.bf16.gmra.mrb[0].mxu0 %v163
  %v458 = vpop.f32.mrb[0].mxu0
  %v459 = vadd.f32 0.0, %v458
  %v460 = vpop.f32.mrb[0].mxu0
  %v461 = vpop.f32.mrb[0].mxu0
  %v462 = vadd.f32 0.0, %v461
  %v463 = vpop.f32.mrb[0].mxu0
  %464 = vmatprep.mubr.bf16.mxu0 0
  %465 = vmatmul.mubr.bf16.gmra.mrb[0].mxu0 %v164
  %v466 = vpop.f32.mrb[0].mxu0
  %v467 = vadd.f32 0.0, %v466
  %v468 = vpop.f32.mrb[0].mxu0
  %v469 = vpop.f32.mrb[0].mxu0
  %v470 = vadd.f32 0.0, %v469
  %v471 = vpop.f32.mrb[0].mxu0
  %472 = vdwg.mxu0
  %v473 = vadd.f32 %v55, %v334
  %v474 = vadd.f32 %v56, %v336
  %v475 = vadd.f32 %v57, %v427
  %v476 = vadd.f32 %v58, %v338
  %v477 = vadd.f32 %v59, %v340
  %v478 = vadd.f32 %v60, %v430
  %v479 = vadd.f32 %v61, %v344
  %v480 = vadd.f32 %v62, %v346
  %v481 = vadd.f32 %v63, %v435
  %v482 = vadd.f32 %v64, %v348
  %v483 = vadd.f32 %v65, %v350
  %v484 = vadd.f32 %v66, %v438
  %v485 = vadd.f32 %v67, %v354
  %v486 = vadd.f32 %v68, %v356
  %v487 = vadd.f32 %v69, %v443
  %v488 = vadd.f32 %v70, %v358
  %v489 = vadd.f32 %v71, %v360
  %v490 = vadd.f32 %v72, %v446
  %v491 = vadd.f32 %v73, %v364
  %v492 = vadd.f32 %v74, %v366
  %v493 = vadd.f32 %v75, %v451
  %v494 = vadd.f32 %v76, %v368
  %v495 = vadd.f32 %v77, %v370
  %v496 = vadd.f32 %v78, %v454
  %v497 = vadd.f32 %v79, %v374
  %v498 = vadd.f32 %v80, %v376
  %v499 = vadd.f32 %v81, %v459
  %v500 = vadd.f32 %v82, %v378
  %v501 = vadd.f32 %v83, %v380
  %v502 = vadd.f32 %v84, %v462
  %v503 = vadd.f32 %v85, %v384
  %v504 = vadd.f32 %v86, %v386
  %v505 = vadd.f32 %v87, %v467
  %v506 = vadd.f32 %v88, %v388
  %v507 = vadd.f32 %v89, %v390
  %v508 = vadd.f32 %v90, %v470
  %509 = vst [vmem:[#allocation2] sm:$0xff] %v473
  %510 = vst [vmem:[#allocation2 + $0x8] sm:$0xff] %v474
  %511 = vst [vmem:[#allocation2 + $0x10] sm:$0xff] %v475
  %512 = vst [vmem:[#allocation2 + $0x18] sm:$0xff] %v476
  %513 = vst [vmem:[#allocation2 + $0x20] sm:$0xff] %v477
  %514 = vst [vmem:[#allocation2 + $0x28] sm:$0xff] %v478
  %515 = vst [vmem:[#allocation2 + $0x30] sm:$0xff] %v479
  %516 = vst [vmem:[#allocation2 + $0x38] sm:$0xff] %v480
  %517 = vst [vmem:[#allocation2 + $0x40] sm:$0xff] %v481
  %518 = vst [vmem:[#allocation2 + $0x48] sm:$0xff] %v482
  %519 = vst [vmem:[#allocation2 + $0x50] sm:$0xff] %v483
  %520 = vst [vmem:[#allocation2 + $0x58] sm:$0xff] %v484
  %521 = vst [vmem:[#allocation2 + $0x60] sm:$0xff] %v485
  %522 = vst [vmem:[#allocation2 + $0x68] sm:$0xff] %v486
  %523 = vst [vmem:[#allocation2 + $0x70] sm:$0xff] %v487
  %524 = vst [vmem:[#allocation2 + $0x78] sm:$0xff] %v488
  %525 = vst [vmem:[#allocation2 + $0x80] sm:$0xff] %v489
  %526 = vst [vmem:[#allocation2 + $0x88] sm:$0xff] %v490
  %527 = vst [vmem:[#allocation2 + $0x90] sm:$0xff] %v491
  %528 = vst [vmem:[#allocation2 + $0x98] sm:$0xff] %v492
  %529 = vst [vmem:[#allocation2 + $0xa0] sm:$0xff] %v493
  %530 = vst [vmem:[#allocation2 + $0xa8] sm:$0xff] %v494
  %531 = vst [vmem:[#allocation2 + $0xb0] sm:$0xff] %v495
  %532 = vst [vmem:[#allocation2 + $0xb8] sm:$0xff] %v496
  %533 = vst [vmem:[#allocation2 + $0xc0] sm:$0xff] %v497
  %534 = vst [vmem:[#allocation2 + $0xc8] sm:$0xff] %v498
  %535 = vst [vmem:[#allocation2 + $0xd0] sm:$0xff] %v499
  %536 = vst [vmem:[#allocation2 + $0xd8] sm:$0xff] %v500
  %537 = vst [vmem:[#allocation2 + $0xe0] sm:$0xff] %v501
  %538 = vst [vmem:[#allocation2 + $0xe8] sm:$0xff] %v502
  %539 = vst [vmem:[#allocation2 + $0xf0] sm:$0xff] %v503
  %540 = vst [vmem:[#allocation2 + $0xf8] sm:$0xff] %v504
  %541 = vst [vmem:[#allocation2 + $0x100] sm:$0xff] %v505
  %542 = vst [vmem:[#allocation2 + $0x108] sm:$0xff] %v506
  %543 = vst [vmem:[#allocation2 + $0x110] sm:$0xff] %v507
  %544 = vst [vmem:[#allocation2 + $0x118] sm:$0xff] %v508
  // Predicated region
  $region18: #{bert_encoder_forward.13} parent=0 // pred_check
    %p545 = pneg %p15
  $region19: #{bert_encoder_forward.13} parent=0 // pred_check_branch
    %547 = sbr.rel (%p545) target = $region21
  $region20: #{bert_encoder_forward.13} parent=0 // pred_region
    %v548 = vld [vmem:[#allocation2] sm:$0xff]
    %v549 = vld [vmem:[#allocation2 + $0x8] sm:$0xff]
    %v550 = vld [vmem:[#allocation2 + $0x10] sm:$0xff]
    %v551 = vld [vmem:[#allocation2 + $0x18] sm:$0xff]
    %v552 = vld [vmem:[#allocation2 + $0x20] sm:$0xff]
    %v553 = vld [vmem:[#allocation2 + $0x28] sm:$0xff]
    %v554 = vld [vmem:[#allocation2 + $0x30] sm:$0xff]
    %v555 = vld [vmem:[#allocation2 + $0x38] sm:$0xff]
    %v556 = vld [vmem:[#allocation2 + $0x40] sm:$0xff]
    %v557 = vld [vmem:[#allocation2 + $0x48] sm:$0xff]
    %v558 = vld [vmem:[#allocation2 + $0x50] sm:$0xff]
    %v559 = vld [vmem:[#allocation2 + $0x58] sm:$0xff]
    %v560 = vld [vmem:[#allocation2 + $0x60] sm:$0xff]
    %v561 = vld [vmem:[#allocation2 + $0x68] sm:$0xff]
    %v562 = vld [vmem:[#allocation2 + $0x70] sm:$0xff]
    %v563 = vld [vmem:[#allocation2 + $0x78] sm:$0xff]
    %v564 = vld [vmem:[#allocation2 + $0x80] sm:$0xff]
    %v565 = vld [vmem:[#allocation2 + $0x88] sm:$0xff]
    %v566 = vld [vmem:[#allocation2 + $0x90] sm:$0xff]
    %v567 = vld [vmem:[#allocation2 + $0x98] sm:$0xff]
    %v568 = vld [vmem:[#allocation2 + $0xa0] sm:$0xff]
    %v569 = vld [vmem:[#allocation2 + $0xa8] sm:$0xff]
    %v570 = vld [vmem:[#allocation2 + $0xb0] sm:$0xff]
    %v571 = vld [vmem:[#allocation2 + $0xb8] sm:$0xff]
    %v572 = vld [vmem:[#allocation2 + $0xc0] sm:$0xff]
    %v573 = vld [vmem:[#allocation2 + $0xc8] sm:$0xff]
    %v574 = vld [vmem:[#allocation2 + $0xd0] sm:$0xff]
    %v575 = vld [vmem:[#allocation2 + $0xd8] sm:$0xff]
    %v576 = vld [vmem:[#allocation2 + $0xe0] sm:$0xff]
    %v577 = vld [vmem:[#allocation2 + $0xe8] sm:$0xff]
    %v578 = vld [vmem:[#allocation2 + $0xf0] sm:$0xff]
    %v579 = vld [vmem:[#allocation2 + $0xf8] sm:$0xff]
    %v580 = vld [vmem:[#allocation2 + $0x100] sm:$0xff]
    %v581 = vld [vmem:[#allocation2 + $0x108] sm:$0xff]
    %v582 = vld [vmem:[#allocation2 + $0x110] sm:$0xff]
    %v583 = vld [vmem:[#allocation2 + $0x118] sm:$0xff]
    %v584 = vld [vmem:[%s2] sm:$0x7]
    %v586 = vlaneseq
    %v587 = vshrl.u32 %v586, 7
    %v588 = vsub.s32 0, %v587
    %v589 = vrot.slane %v584, %v588
    %v590 = vlaneseq
    %v591 = vshrl.u32 %v590, 7
    %v592 = vsub.s32 1, %v591
    %v593 = vrot.slane %v584, %v592
    %v594 = vlaneseq
    %v595 = vshrl.u32 %v594, 7
    %v596 = vsub.s32 2, %v595
    %v597 = vrot.slane %v584, %v596
    %v601 = vadd.f32 %v548, %v589
    %v602 = vadd.f32 %v549, %v593
    %v603 = vadd.f32 %v550, %v597
    %v604 = vadd.f32 %v551, %v589
    %v605 = vadd.f32 %v552, %v593
    %v606 = vadd.f32 %v553, %v597
    %v607 = vadd.f32 %v554, %v589
    %v608 = vadd.f32 %v555, %v593
    %v609 = vadd.f32 %v556, %v597
    %v610 = vadd.f32 %v557, %v589
    %v611 = vadd.f32 %v558, %v593
    %v612 = vadd.f32 %v559, %v597
    %v613 = vadd.f32 %v560, %v589
    %v614 = vadd.f32 %v561, %v593
    %v615 = vadd.f32 %v562, %v597
    %v616 = vadd.f32 %v563, %v589
    %v617 = vadd.f32 %v564, %v593
    %v618 = vadd.f32 %v565, %v597
    %v619 = vadd.f32 %v566, %v589
    %v620 = vadd.f32 %v567, %v593
    %v621 = vadd.f32 %v568, %v597
    %v622 = vadd.f32 %v569, %v589
    %v623 = vadd.f32 %v570, %v593
    %v624 = vadd.f32 %v571, %v597
    %v625 = vadd.f32 %v572, %v589
    %v626 = vadd.f32 %v573, %v593
    %v627 = vadd.f32 %v574, %v597
    %v628 = vadd.f32 %v575, %v589
    %v629 = vadd.f32 %v576, %v593
    %v630 = vadd.f32 %v577, %v597
    %v631 = vadd.f32 %v578, %v589
    %v632 = vadd.f32 %v579, %v593
    %v633 = vadd.f32 %v580, %v597
    %v634 = vadd.f32 %v581, %v589
    %v635 = vadd.f32 %v582, %v593
    %v636 = vadd.f32 %v583, %v597
    %v637 = vpack.c.bf16 %v604, %v601
    %v638 = vpack.c.bf16 %v605, %v602
    %v639 = vpack.c.bf16 %v606, %v603
    %v640 = vpack.c.bf16 %v610, %v607
    %v641 = vpack.c.bf16 %v611, %v608
    %v642 = vpack.c.bf16 %v612, %v609
    %v643 = vpack.c.bf16 %v616, %v613
    %v644 = vpack.c.bf16 %v617, %v614
    %v645 = vpack.c.bf16 %v618, %v615
    %v646 = vpack.c.bf16 %v622, %v619
    %v647 = vpack.c.bf16 %v623, %v620
    %v648 = vpack.c.bf16 %v624, %v621
    %v649 = vpack.c.bf16 %v628, %v625
    %v650 = vpack.c.bf16 %v629, %v626
    %v651 = vpack.c.bf16 %v630, %v627
    %v652 = vpack.c.bf16 %v634, %v631
    %v653 = vpack.c.bf16 %v635, %v632
    %v654 = vpack.c.bf16 %v636, %v633
    %v673 = vunpack.c.l.b16 %v637
    %v674 = vunpack.c.l.b16 %v638
    %v675 = vunpack.c.l.b16 %v639
    %v676 = vunpack.c.h.b16 %v637
    %v677 = vunpack.c.h.b16 %v638
    %v678 = vunpack.c.h.b16 %v639
    %v679 = vunpack.c.l.b16 %v640
    %v680 = vunpack.c.l.b16 %v641
    %v681 = vunpack.c.l.b16 %v642
    %v682 = vunpack.c.h.b16 %v640
    %v683 = vunpack.c.h.b16 %v641
    %v684 = vunpack.c.h.b16 %v642
    %v685 = vunpack.c.l.b16 %v643
    %v686 = vunpack.c.l.b16 %v644
    %v687 = vunpack.c.l.b16 %v645
    %v688 = vunpack.c.h.b16 %v643
    %v689 = vunpack.c.h.b16 %v644
    %v690 = vunpack.c.h.b16 %v645
    %v691 = vunpack.c.l.b16 %v646
    %v692 = vunpack.c.l.b16 %v647
    %v693 = vunpack.c.l.b16 %v648
    %v694 = vunpack.c.h.b16 %v646
    %v695 = vunpack.c.h.b16 %v647
    %v696 = vunpack.c.h.b16 %v648
    %v697 = vunpack.c.l.b16 %v649
    %v698 = vunpack.c.l.b16 %v650
    %v699 = vunpack.c.l.b16 %v651
    %v700 = vunpack.c.h.b16 %v649
    %v701 = vunpack.c.h.b16 %v650
    %v702 = vunpack.c.h.b16 %v651
    %v703 = vunpack.c.l.b16 %v652
    %v704 = vunpack.c.l.b16 %v653
    %v705 = vunpack.c.l.b16 %v654
    %v706 = vunpack.c.h.b16 %v652
    %v707 = vunpack.c.h.b16 %v653
    %v708 = vunpack.c.h.b16 %v654
    %v709 = vpack.c.b16 %v674, %v673
    %v710 = vpack.c.b16 %v675, %v675
    %v711 = vpack.c.b16 %v677, %v676
    %v712 = vpack.c.b16 %v678, %v678
    %v713 = vpack.c.b16 %v680, %v679
    %v714 = vpack.c.b16 %v681, %v681
    %v715 = vpack.c.b16 %v683, %v682
    %v716 = vpack.c.b16 %v684, %v684
    %v717 = vpack.c.b16 %v686, %v685
    %v718 = vpack.c.b16 %v687, %v687
    %v719 = vpack.c.b16 %v689, %v688
    %v720 = vpack.c.b16 %v690, %v690
    %v721 = vpack.c.b16 %v692, %v691
    %v722 = vpack.c.b16 %v693, %v693
    %v723 = vpack.c.b16 %v695, %v694
    %v724 = vpack.c.b16 %v696, %v696
    %v725 = vpack.c.b16 %v698, %v697
    %v726 = vpack.c.b16 %v699, %v699
    %v727 = vpack.c.b16 %v701, %v700
    %v728 = vpack.c.b16 %v702, %v702
    %v729 = vpack.c.b16 %v704, %v703
    %v730 = vpack.c.b16 %v705, %v705
    %v731 = vpack.c.b16 %v707, %v706
    %v732 = vpack.c.b16 %v708, %v708
    %757 = vst [vmem:[%s3] sm:$0xff] %v709
    %758 = vst [vmem:[%s3 + $0x8] sm:$0xf] %v710
    %759 = vst [vmem:[%s3 + $0xc] sm:$0xff] %v711
    %760 = vst [vmem:[%s3 + $0x14] sm:$0xf] %v712
    %761 = vst [vmem:[%s3 + $0x18] sm:$0xff] %v713
    %762 = vst [vmem:[%s3 + $0x20] sm:$0xf] %v714
    %763 = vst [vmem:[%s3 + $0x24] sm:$0xff] %v715
    %764 = vst [vmem:[%s3 + $0x2c] sm:$0xf] %v716
    %765 = vst [vmem:[%s3 + $0x30] sm:$0xff] %v717
    %766 = vst [vmem:[%s3 + $0x38] sm:$0xf] %v718
    %767 = vst [vmem:[%s3 + $0x3c] sm:$0xff] %v719
    %768 = vst [vmem:[%s3 + $0x44] sm:$0xf] %v720
    %769 = vst [vmem:[%s3 + $0x48] sm:$0xff] %v721
    %770 = vst [vmem:[%s3 + $0x50] sm:$0xf] %v722
    %771 = vst [vmem:[%s3 + $0x54] sm:$0xff] %v723
    %772 = vst [vmem:[%s3 + $0x5c] sm:$0xf] %v724
    %773 = vst [vmem:[%s3 + $0x60] sm:$0xff] %v725
    %774 = vst [vmem:[%s3 + $0x68] sm:$0xf] %v726
    %775 = vst [vmem:[%s3 + $0x6c] sm:$0xff] %v727
    %776 = vst [vmem:[%s3 + $0x74] sm:$0xf] %v728
    %777 = vst [vmem:[%s3 + $0x78] sm:$0xff] %v729
    %778 = vst [vmem:[%s3 + $0x80] sm:$0xf] %v730
    %779 = vst [vmem:[%s3 + $0x84] sm:$0xff] %v731
    %780 = vst [vmem:[%s3 + $0x8c] sm:$0xf] %v732
  $region21: #{bert_encoder_forward.13} parent=0 // pred_fallthru
    _
  // Predicated region
  $region22: #{bert_encoder_forward.13} parent=0 // pred_check
    _
  $region23: #{bert_encoder_forward.13} parent=0 // pred_check_branch
    %782 = sbr.rel (0) target = $region25
  $region24: #{bert_encoder_forward.13} parent=0 // pred_region
    _
  $region25: #{bert_encoder_forward.13} parent=0 // pred_fallthru
    _
  // Predicated region
  $region26: #{bert_encoder_forward.13} parent=0 // pred_check
    _
  $region27: #{bert_encoder_forward.13} parent=0 // pred_check_branch
    %784 = sbr.rel (0) target = $region29
  $region28: #{bert_encoder_forward.13} parent=0 // pred_region
    _
  $region29: #{bert_encoder_forward.13} parent=0 // pred_fallthru
    _

// kernel: bert_encoder_forward.15
$region0: #{bert_encoder_forward.15}
  #allocation0 [shape = 'u32[]', space=smem, size = 0x4, offset = 0x4, fixed_abs, tag = 'smem constant byte address 0x4 - core index']
  #allocation1 [shape = 'u32[144,128]{1,0:T(1,128)}', space=vmem, size = 0x12000, scoped, tag = 'internal scratch']
  #allocation2 [shape = 'f32[96,128]{1,0:T(8,128)}', space=vmem, size = 0xc000, scoped, tag = 'scratch operand']
  %s0 = inlined_call_operand.vmem [shape: bf16[96,128], index: 0, kind: input, shape index: {}]
  %s1 = inlined_call_operand.vmem [shape: bf16[128,128], index: 1, kind: input, shape index: {}]
  %s2 = inlined_call_operand.vmem [shape: f32[1,128], index: 2, kind: input, shape index: {}]
  %s3 = inlined_call_operand.vmem [shape: bf16[96,128], index: 3, kind: input, shape index: {}]
  %s4 = inlined_call_operand.vmem [shape: f32[1,128], index: 4, kind: input, shape index: {}]
  %s5 = inlined_call_operand.vmem [shape: f32[1,128], index: 5, kind: input, shape index: {}]
  %s6 = inlined_call_operand.vmem [shape: bf16[96,128], index: 6, kind: output, shape index: {}]
  %s7 = sld [smem:[#allocation0]]
  $region42: #{bert_encoder_forward.15} parent=0
    _
  %s9 = ssub.s32 1, %s7
  %s10 = scalar_select 0, %s9, %s7
  // Predicated region
  $region2: #{bert_encoder_forward.15} parent=0 // pred_check
    _
  $region3: #{bert_encoder_forward.15} parent=0 // pred_check_branch
    %12 = sbr.rel (0) target = $region5
  $region4: #{bert_encoder_forward.15} parent=0 // pred_region
    _
  $region5: #{bert_encoder_forward.15} parent=0 // pred_fallthru
    _
  // Predicated region
  $region6: #{bert_encoder_forward.15} parent=0 // pred_check
    _
  $region7: #{bert_encoder_forward.15} parent=0 // pred_check_branch
    %14 = sbr.rel (0) target = $region9
  $region8: #{bert_encoder_forward.15} parent=0 // pred_region
    _
  $region9: #{bert_encoder_forward.15} parent=0 // pred_fallthru
    _
  // Predicated region
  $region10: #{bert_encoder_forward.15} parent=0 // pred_check
    _
  $region11: #{bert_encoder_forward.15} parent=0 // pred_check_branch
    %16 = sbr.rel (0) target = $region13
  $region12: #{bert_encoder_forward.15} parent=0 // pred_region
    _
  $region13: #{bert_encoder_forward.15} parent=0 // pred_fallthru
    _
  // Predicated region
  $region14: #{bert_encoder_forward.15} parent=0 // pred_check
    _
  $region15: #{bert_encoder_forward.15} parent=0 // pred_check_branch
    %18 = sbr.rel (0) target = $region17
  $region16: #{bert_encoder_forward.15} parent=0 // pred_region
    _
  $region17: #{bert_encoder_forward.15} parent=0 // pred_fallthru
    _
  // Predicated region
  $region18: #{bert_encoder_forward.15} parent=0 // pred_check
    _
  $region19: #{bert_encoder_forward.15} parent=0 // pred_check_branch
    %20 = sbr.rel (0) target = $region21
  $region20: #{bert_encoder_forward.15} parent=0 // pred_region
    _
  $region21: #{bert_encoder_forward.15} parent=0 // pred_fallthru
    _
  // Predicated region
  $region22: #{bert_encoder_forward.15} parent=0 // pred_check
    _
  $region23: #{bert_encoder_forward.15} parent=0 // pred_check_branch
    %22 = sbr.rel (0) target = $region25
  $region24: #{bert_encoder_forward.15} parent=0 // pred_region
    _
  $region25: #{bert_encoder_forward.15} parent=0 // pred_fallthru
    _
  %p24 = scmp.eq.s32.totalorder 0, 0
  // Predicated region
  $region26: #{bert_encoder_forward.15} parent=0 // pred_check
    %p25 = pneg %p24
  $region27: #{bert_encoder_forward.15} parent=0 // pred_check_branch
    %27 = sbr.rel (%p25) target = $region29
  $region28: #{bert_encoder_forward.15} parent=0 // pred_region
    %28 = vst [vmem:[#allocation2] sm:$0xff] 0.0
    %29 = vst [vmem:[#allocation2 + $0x8] sm:$0xff] 0.0
    %30 = vst [vmem:[#allocation2 + $0x10] sm:$0xff] 0.0
    %31 = vst [vmem:[#allocation2 + $0x18] sm:$0xff] 0.0
    %32 = vst [vmem:[#allocation2 + $0x20] sm:$0xff] 0.0
    %33 = vst [vmem:[#allocation2 + $0x28] sm:$0xff] 0.0
    %34 = vst [vmem:[#allocation2 + $0x30] sm:$0xff] 0.0
    %35 = vst [vmem:[#allocation2 + $0x38] sm:$0xff] 0.0
    %36 = vst [vmem:[#allocation2 + $0x40] sm:$0xff] 0.0
    %37 = vst [vmem:[#allocation2 + $0x48] sm:$0xff] 0.0
    %38 = vst [vmem:[#allocation2 + $0x50] sm:$0xff] 0.0
    %39 = vst [vmem:[#allocation2 + $0x58] sm:$0xff] 0.0
  $region29: #{bert_encoder_forward.15} parent=0 // pred_fallthru
    _
  %v40 = vld [vmem:[#allocation2] sm:$0xff]
  %v41 = vld [vmem:[#allocation2 + $0x8] sm:$0xff]
  %v42 = vld [vmem:[#allocation2 + $0x10] sm:$0xff]
  %v43 = vld [vmem:[#allocation2 + $0x18] sm:$0xff]
  %v44 = vld [vmem:[#allocation2 + $0x20] sm:$0xff]
  %v45 = vld [vmem:[#allocation2 + $0x28] sm:$0xff]
  %v46 = vld [vmem:[#allocation2 + $0x30] sm:$0xff]
  %v47 = vld [vmem:[#allocation2 + $0x38] sm:$0xff]
  %v48 = vld [vmem:[#allocation2 + $0x40] sm:$0xff]
  %v49 = vld [vmem:[#allocation2 + $0x48] sm:$0xff]
  %v50 = vld [vmem:[#allocation2 + $0x50] sm:$0xff]
  %v51 = vld [vmem:[#allocation2 + $0x58] sm:$0xff]
  %v52 = vld [vmem:[%s0] sm:$0xf]
  %v53 = vld [vmem:[%s0 + $0x4] sm:$0xf]
  %v54 = vld [vmem:[%s0 + $0x8] sm:$0xf]
  %v55 = vld [vmem:[%s0 + $0xc] sm:$0xf]
  %v56 = vld [vmem:[%s0 + $0x10] sm:$0xf]
  %v57 = vld [vmem:[%s0 + $0x14] sm:$0xf]
  %v58 = vld [vmem:[%s0 + $0x18] sm:$0xf]
  %v59 = vld [vmem:[%s0 + $0x1c] sm:$0xf]
  %v60 = vld [vmem:[%s0 + $0x20] sm:$0xf]
  %v61 = vld [vmem:[%s0 + $0x24] sm:$0xf]
  %v62 = vld [vmem:[%s0 + $0x28] sm:$0xf]
  %v63 = vld [vmem:[%s0 + $0x2c] sm:$0xf]
  %v64 = vld [vmem:[%s1] sm:$0xf]
  %v65 = vld [vmem:[%s1 + $0x4] sm:$0xf]
  %v66 = vld [vmem:[%s1 + $0x8] sm:$0xf]
  %v67 = vld [vmem:[%s1 + $0xc] sm:$0xf]
  %v68 = vld [vmem:[%s1 + $0x10] sm:$0xf]
  %v69 = vld [vmem:[%s1 + $0x14] sm:$0xf]
  %v70 = vld [vmem:[%s1 + $0x18] sm:$0xf]
  %v71 = vld [vmem:[%s1 + $0x1c] sm:$0xf]
  %v72 = vld [vmem:[%s1 + $0x20] sm:$0xf]
  %v73 = vld [vmem:[%s1 + $0x24] sm:$0xf]
  %v74 = vld [vmem:[%s1 + $0x28] sm:$0xf]
  %v75 = vld [vmem:[%s1 + $0x2c] sm:$0xf]
  %v76 = vld [vmem:[%s1 + $0x30] sm:$0xf]
  %v77 = vld [vmem:[%s1 + $0x34] sm:$0xf]
  %v78 = vld [vmem:[%s1 + $0x38] sm:$0xf]
  %v79 = vld [vmem:[%s1 + $0x3c] sm:$0xf]
  %v92 = vunpack.c.l.b16 %v52
  %v93 = vunpack.c.l.b16 %v53
  %v94 = vunpack.c.l.b16 %v54
  %v95 = vunpack.c.l.b16 %v55
  %v96 = vunpack.c.l.b16 %v56
  %v97 = vunpack.c.l.b16 %v57
  %v98 = vunpack.c.l.b16 %v58
  %v99 = vunpack.c.l.b16 %v59
  %v100 = vunpack.c.l.b16 %v60
  %v101 = vunpack.c.l.b16 %v61
  %v102 = vunpack.c.l.b16 %v62
  %v103 = vunpack.c.l.b16 %v63
  %v104 = vpack.c.b16 %v93, %v92
  %v105 = vpack.c.b16 %v95, %v94
  %v106 = vpack.c.b16 %v97, %v96
  %v107 = vpack.c.b16 %v99, %v98
  %v108 = vpack.c.b16 %v101, %v100
  %v109 = vpack.c.b16 %v103, %v102
  %v132 = vunpack.c.l.b16 %v64
  %v133 = vunpack.c.l.b16 %v65
  %v134 = vunpack.c.l.b16 %v66
  %v135 = vunpack.c.l.b16 %v67
  %v136 = vunpack.c.l.b16 %v68
  %v137 = vunpack.c.l.b16 %v69
  %v138 = vunpack.c.l.b16 %v70
  %v139 = vunpack.c.l.b16 %v71
  %v140 = vunpack.c.l.b16 %v72
  %v141 = vunpack.c.l.b16 %v73
  %v142 = vunpack.c.l.b16 %v74
  %v143 = vunpack.c.l.b16 %v75
  %v144 = vunpack.c.l.b16 %v76
  %v145 = vunpack.c.l.b16 %v77
  %v146 = vunpack.c.l.b16 %v78
  %v147 = vunpack.c.l.b16 %v79
  %v148 = vpack.c.b16 %v133, %v132
  %v149 = vpack.c.b16 %v135, %v134
  %v150 = vpack.c.b16 %v137, %v136
  %v151 = vpack.c.b16 %v139, %v138
  %v152 = vpack.c.b16 %v141, %v140
  %v153 = vpack.c.b16 %v143, %v142
  %v154 = vpack.c.b16 %v145, %v144
  %v155 = vpack.c.b16 %v147, %v146
  %164 = vmatprep.subr.bf16.mxu0 0
  %165 = vmatpush1.bf16.msra.mxu0 %v148
  %166 = vmatprep.subr.bf16.mxu0 0
  %167 = vmatpush1.bf16.msra.mxu0 %v149
  %168 = vmatprep.subr.bf16.mxu0 0
  %169 = vmatpush1.bf16.msra.mxu0 %v150
  %170 = vmatprep.subr.bf16.mxu0 0
  %171 = vmatpush1.bf16.msra.mxu0 %v151
  %172 = vmatprep.subr.bf16.mxu0 0
  %173 = vmatpush1.bf16.msra.mxu0 %v152
  %174 = vmatprep.subr.bf16.mxu0 0
  %175 = vmatpush1.bf16.msra.mxu0 %v153
  %176 = vmatprep.subr.bf16.mxu0 0
  %177 = vmatpush1.bf16.msra.mxu0 %v154
  %178 = vmatprep.subr.bf16.mxu0 0
  %179 = vmatpush1.bf16.msra.mxu0 %v155
  %180 = vmatprep.subr.bf16.mxu0 0
  %181 = vmatpush1.bf16.msra.mxu0 0
  %182 = vmatprep.subr.bf16.mxu0 0
  %183 = vmatpush1.bf16.msra.mxu0 0
  %184 = vmatprep.subr.bf16.mxu0 0
  %185 = vmatpush1.bf16.msra.mxu0 0
  %186 = vmatprep.subr.bf16.mxu0 0
  %187 = vmatpush1.bf16.msra.mxu0 0
  %188 = vmatprep.subr.bf16.mxu0 0
  %189 = vmatpush1.bf16.msra.mxu0 0
  %190 = vmatprep.subr.bf16.mxu0 0
  %191 = vmatpush1.bf16.msra.mxu0 0
  %192 = vmatprep.subr.bf16.mxu0 0
  %193 = vmatpush1.bf16.msra.mxu0 0
  %194 = vmatprep.subr.bf16.mxu0 0
  %195 = vmatpush1.bf16.msra.mxu0 0
  %196 = vmatprep.mubr.bf16.mxu0 0
  %197 = vmatmul.mubr.bf16.gmra.mrb[0].mxu0 %v104
  %v198 = vpop.f32.mrb[0].mxu0
  %v199 = vadd.f32 0.0, %v198
  %v200 = vpop.f32.mrb[0].mxu0
  %v201 = vpop.f32.mrb[0].mxu0
  %v202 = vadd.f32 0.0, %v201
  %v203 = vpop.f32.mrb[0].mxu0
  %204 = vmatprep.mubr.bf16.mxu0 0
  %205 = vmatmul.mubr.bf16.gmra.mrb[0].mxu0 %v105
  %v206 = vpop.f32.mrb[0].mxu0
  %v207 = vadd.f32 0.0, %v206
  %v208 = vpop.f32.mrb[0].mxu0
  %v209 = vpop.f32.mrb[0].mxu0
  %v210 = vadd.f32 0.0, %v209
  %v211 = vpop.f32.mrb[0].mxu0
  %212 = vmatprep.mubr.bf16.mxu0 0
  %213 = vmatmul.mubr.bf16.gmra.mrb[0].mxu0 %v106
  %v214 = vpop.f32.mrb[0].mxu0
  %v215 = vadd.f32 0.0, %v214
  %v216 = vpop.f32.mrb[0].mxu0
  %v217 = vpop.f32.mrb[0].mxu0
  %v218 = vadd.f32 0.0, %v217
  %v219 = vpop.f32.mrb[0].mxu0
  %220 = vmatprep.mubr.bf16.mxu0 0
  %221 = vmatmul.mubr.bf16.gmra.mrb[0].mxu0 %v107
  %v222 = vpop.f32.mrb[0].mxu0
  %v223 = vadd.f32 0.0, %v222
  %v224 = vpop.f32.mrb[0].mxu0
  %v225 = vpop.f32.mrb[0].mxu0
  %v226 = vadd.f32 0.0, %v225
  %v227 = vpop.f32.mrb[0].mxu0
  %228 = vmatprep.mubr.bf16.mxu0 0
  %229 = vmatmul.mubr.bf16.gmra.mrb[0].mxu0 %v108
  %v230 = vpop.f32.mrb[0].mxu0
  %v231 = vadd.f32 0.0, %v230
  %v232 = vpop.f32.mrb[0].mxu0
  %v233 = vpop.f32.mrb[0].mxu0
  %v234 = vadd.f32 0.0, %v233
  %v235 = vpop.f32.mrb[0].mxu0
  %236 = vmatprep.mubr.bf16.mxu0 0
  %237 = vmatmul.mubr.bf16.gmra.mrb[0].mxu0 %v109
  %v238 = vpop.f32.mrb[0].mxu0
  %v239 = vadd.f32 0.0, %v238
  %v240 = vpop.f32.mrb[0].mxu0
  %v241 = vpop.f32.mrb[0].mxu0
  %v242 = vadd.f32 0.0, %v241
  %v243 = vpop.f32.mrb[0].mxu0
  %244 = vdwg.mxu0
  %v245 = vadd.f32 %v40, %v199
  %v246 = vadd.f32 %v41, %v202
  %v247 = vadd.f32 %v42, %v207
  %v248 = vadd.f32 %v43, %v210
  %v249 = vadd.f32 %v44, %v215
  %v250 = vadd.f32 %v45, %v218
  %v251 = vadd.f32 %v46, %v223
  %v252 = vadd.f32 %v47, %v226
  %v253 = vadd.f32 %v48, %v231
  %v254 = vadd.f32 %v49, %v234
  %v255 = vadd.f32 %v50, %v239
  %v256 = vadd.f32 %v51, %v242
  %257 = vst [vmem:[#allocation2] sm:$0xff] %v245
  %258 = vst [vmem:[#allocation2 + $0x8] sm:$0xff] %v246
  %259 = vst [vmem:[#allocation2 + $0x10] sm:$0xff] %v247
  %260 = vst [vmem:[#allocation2 + $0x18] sm:$0xff] %v248
  %261 = vst [vmem:[#allocation2 + $0x20] sm:$0xff] %v249
  %262 = vst [vmem:[#allocation2 + $0x28] sm:$0xff] %v250
  %263 = vst [vmem:[#allocation2 + $0x30] sm:$0xff] %v251
  %264 = vst [vmem:[#allocation2 + $0x38] sm:$0xff] %v252
  %265 = vst [vmem:[#allocation2 + $0x40] sm:$0xff] %v253
  %266 = vst [vmem:[#allocation2 + $0x48] sm:$0xff] %v254
  %267 = vst [vmem:[#allocation2 + $0x50] sm:$0xff] %v255
  %268 = vst [vmem:[#allocation2 + $0x58] sm:$0xff] %v256
  // Predicated region
  $region30: #{bert_encoder_forward.15} parent=0 // pred_check
    %p269 = pneg %p24
  $region31: #{bert_encoder_forward.15} parent=0 // pred_check_branch
    %271 = sbr.rel (%p269) target = $region33
  $region32: #{bert_encoder_forward.15} parent=0 // pred_region
    %v272 = vld [vmem:[#allocation2] sm:$0xff]
    %v273 = vld [vmem:[#allocation2 + $0x8] sm:$0xff]
    %v274 = vld [vmem:[#allocation2 + $0x10] sm:$0xff]
    %v275 = vld [vmem:[#allocation2 + $0x18] sm:$0xff]
    %v276 = vld [vmem:[#allocation2 + $0x20] sm:$0xff]
    %v277 = vld [vmem:[#allocation2 + $0x28] sm:$0xff]
    %v278 = vld [vmem:[#allocation2 + $0x30] sm:$0xff]
    %v279 = vld [vmem:[#allocation2 + $0x38] sm:$0xff]
    %v280 = vld [vmem:[#allocation2 + $0x40] sm:$0xff]
    %v281 = vld [vmem:[#allocation2 + $0x48] sm:$0xff]
    %v282 = vld [vmem:[#allocation2 + $0x50] sm:$0xff]
    %v283 = vld [vmem:[#allocation2 + $0x58] sm:$0xff]
    %v284 = vld [vmem:[%s2] sm:$0x1]
    %v286 = vlaneseq
    %v287 = vshrl.u32 %v286, 7
    %v288 = vsub.s32 0, %v287
    %v289 = vrot.slane %v284, %v288
    %v291 = vadd.f32 %v272, %v289
    %v292 = vadd.f32 %v273, %v289
    %v293 = vadd.f32 %v274, %v289
    %v294 = vadd.f32 %v275, %v289
    %v295 = vadd.f32 %v276, %v289
    %v296 = vadd.f32 %v277, %v289
    %v297 = vadd.f32 %v278, %v289
    %v298 = vadd.f32 %v279, %v289
    %v299 = vadd.f32 %v280, %v289
    %v300 = vadd.f32 %v281, %v289
    %v301 = vadd.f32 %v282, %v289
    %v302 = vadd.f32 %v283, %v289
    %v303 = vld [vmem:[%s3] sm:$0xf]
    %v304 = vld [vmem:[%s3 + $0x4] sm:$0xf]
    %v305 = vld [vmem:[%s3 + $0x8] sm:$0xf]
    %v306 = vld [vmem:[%s3 + $0xc] sm:$0xf]
    %v307 = vld [vmem:[%s3 + $0x10] sm:$0xf]
    %v308 = vld [vmem:[%s3 + $0x14] sm:$0xf]
    %v309 = vld [vmem:[%s3 + $0x18] sm:$0xf]
    %v310 = vld [vmem:[%s3 + $0x1c] sm:$0xf]
    %v311 = vld [vmem:[%s3 + $0x20] sm:$0xf]
    %v312 = vld [vmem:[%s3 + $0x24] sm:$0xf]
    %v313 = vld [vmem:[%s3 + $0x28] sm:$0xf]
    %v314 = vld [vmem:[%s3 + $0x2c] sm:$0xf]
    %v315 = vunpack.c.l.bf16 %v303
    %v316 = vunpack.c.l.bf16 %v304
    %v317 = vunpack.c.l.bf16 %v305
    %v318 = vunpack.c.l.bf16 %v306
    %v319 = vunpack.c.l.bf16 %v307
    %v320 = vunpack.c.l.bf16 %v308
    %v321 = vunpack.c.l.bf16 %v309
    %v322 = vunpack.c.l.bf16 %v310
    %v323 = vunpack.c.l.bf16 %v311
    %v324 = vunpack.c.l.bf16 %v312
    %v325 = vunpack.c.l.bf16 %v313
    %v326 = vunpack.c.l.bf16 %v314
    %v327 = vadd.f32 %v291, %v315
    %v328 = vadd.f32 %v292, %v316
    %v329 = vadd.f32 %v293, %v317
    %v330 = vadd.f32 %v294, %v318
    %v331 = vadd.f32 %v295, %v319
    %v332 = vadd.f32 %v296, %v320
    %v333 = vadd.f32 %v297, %v321
    %v334 = vadd.f32 %v298, %v322
    %v335 = vadd.f32 %v299, %v323
    %v336 = vadd.f32 %v300, %v324
    %v337 = vadd.f32 %v301, %v325
    %v338 = vadd.f32 %v302, %v326
    %339 = vadd.xlane.f32.xlu0 %v327
    %v340 = vpop.xlane.xlu0 %339
    %341 = vadd.xlane.f32.xlu0 %v328
    %v342 = vpop.xlane.xlu0 %341
    %343 = vadd.xlane.f32.xlu0 %v329
    %v344 = vpop.xlane.xlu0 %343
    %345 = vadd.xlane.f32.xlu0 %v330
    %v346 = vpop.xlane.xlu0 %345
    %347 = vadd.xlane.f32.xlu0 %v331
    %v348 = vpop.xlane.xlu0 %347
    %349 = vadd.xlane.f32.xlu0 %v332
    %v350 = vpop.xlane.xlu0 %349
    %351 = vadd.xlane.f32.xlu0 %v333
    %v352 = vpop.xlane.xlu0 %351
    %353 = vadd.xlane.f32.xlu0 %v334
    %v354 = vpop.xlane.xlu0 %353
    %355 = vadd.xlane.f32.xlu0 %v335
    %v356 = vpop.xlane.xlu0 %355
    %357 = vadd.xlane.f32.xlu0 %v336
    %v358 = vpop.xlane.xlu0 %357
    %359 = vadd.xlane.f32.xlu0 %v337
    %v360 = vpop.xlane.xlu0 %359
    %361 = vadd.xlane.f32.xlu0 %v338
    %v362 = vpop.xlane.xlu0 %361
    %v363 = vrcp.pop 128.0
    %v364 = vmul.f32 %v340, %v363
    %v365 = vmul.f32 %v342, %v363
    %v366 = vmul.f32 %v344, %v363
    %v367 = vmul.f32 %v346, %v363
    %v368 = vmul.f32 %v348, %v363
    %v369 = vmul.f32 %v350, %v363
    %v370 = vmul.f32 %v352, %v363
    %v371 = vmul.f32 %v354, %v363
    %v372 = vmul.f32 %v356, %v363
    %v373 = vmul.f32 %v358, %v363
    %v374 = vmul.f32 %v360, %v363
    %v375 = vmul.f32 %v362, %v363
    %v376 = vsub.f32 %v327, %v364
    %v377 = vsub.f32 %v328, %v365
    %v378 = vsub.f32 %v329, %v366
    %v379 = vsub.f32 %v330, %v367
    %v380 = vsub.f32 %v331, %v368
    %v381 = vsub.f32 %v332, %v369
    %v382 = vsub.f32 %v333, %v370
    %v383 = vsub.f32 %v334, %v371
    %v384 = vsub.f32 %v335, %v372
    %v385 = vsub.f32 %v336, %v373
    %v386 = vsub.f32 %v337, %v374
    %v387 = vsub.f32 %v338, %v375
    %v388 = vmul.f32 %v376, %v376
    %v389 = vmul.f32 %v377, %v377
    %v390 = vmul.f32 %v378, %v378
    %v391 = vmul.f32 %v379, %v379
    %v392 = vmul.f32 %v380, %v380
    %v393 = vmul.f32 %v381, %v381
    %v394 = vmul.f32 %v382, %v382
    %v395 = vmul.f32 %v383, %v383
    %v396 = vmul.f32 %v384, %v384
    %v397 = vmul.f32 %v385, %v385
    %v398 = vmul.f32 %v386, %v386
    %v399 = vmul.f32 %v387, %v387
    %400 = vadd.xlane.f32.xlu0 %v388
    %v401 = vpop.xlane.xlu0 %400
    %402 = vadd.xlane.f32.xlu0 %v389
    %v403 = vpop.xlane.xlu0 %402
    %404 = vadd.xlane.f32.xlu0 %v390
    %v405 = vpop.xlane.xlu0 %404
    %406 = vadd.xlane.f32.xlu0 %v391
    %v407 = vpop.xlane.xlu0 %406
    %408 = vadd.xlane.f32.xlu0 %v392
    %v409 = vpop.xlane.xlu0 %408
    %410 = vadd.xlane.f32.xlu0 %v393
    %v411 = vpop.xlane.xlu0 %410
    %412 = vadd.xlane.f32.xlu0 %v394
    %v413 = vpop.xlane.xlu0 %412
    %414 = vadd.xlane.f32.xlu0 %v395
    %v415 = vpop.xlane.xlu0 %414
    %416 = vadd.xlane.f32.xlu0 %v396
    %v417 = vpop.xlane.xlu0 %416
    %418 = vadd.xlane.f32.xlu0 %v397
    %v419 = vpop.xlane.xlu0 %418
    %420 = vadd.xlane.f32.xlu0 %v398
    %v421 = vpop.xlane.xlu0 %420
    %422 = vadd.xlane.f32.xlu0 %v399
    %v423 = vpop.xlane.xlu0 %422
    %v424 = vmul.f32 %v401, %v363
    %v425 = vmul.f32 %v403, %v363
    %v426 = vmul.f32 %v405, %v363
    %v427 = vmul.f32 %v407, %v363
    %v428 = vmul.f32 %v409, %v363
    %v429 = vmul.f32 %v411, %v363
    %v430 = vmul.f32 %v413, %v363
    %v431 = vmul.f32 %v415, %v363
    %v432 = vmul.f32 %v417, %v363
    %v433 = vmul.f32 %v419, %v363
    %v434 = vmul.f32 %v421, %v363
    %v435 = vmul.f32 %v423, %v363
    %v436 = vadd.f32 %v424, 1e-12
    %v437 = vadd.f32 %v425, 1e-12
    %v438 = vadd.f32 %v426, 1e-12
    %v439 = vadd.f32 %v427, 1e-12
    %v440 = vadd.f32 %v428, 1e-12
    %v441 = vadd.f32 %v429, 1e-12
    %v442 = vadd.f32 %v430, 1e-12
    %v443 = vadd.f32 %v431, 1e-12
    %v444 = vadd.f32 %v432, 1e-12
    %v445 = vadd.f32 %v433, 1e-12
    %v446 = vadd.f32 %v434, 1e-12
    %v447 = vadd.f32 %v435, 1e-12
    %v448 = vrsqrt.pop %v436
    %v449 = vrsqrt.pop %v437
    %v450 = vrsqrt.pop %v438
    %v451 = vrsqrt.pop %v439
    %v452 = vrsqrt.pop %v440
    %v453 = vrsqrt.pop %v441
    %v454 = vrsqrt.pop %v442
    %v455 = vrsqrt.pop %v443
    %v456 = vrsqrt.pop %v444
    %v457 = vrsqrt.pop %v445
    %v458 = vrsqrt.pop %v446
    %v459 = vrsqrt.pop %v447
    %v460 = vmul.f32 %v376, %v448
    %v461 = vmul.f32 %v377, %v449
    %v462 = vmul.f32 %v378, %v450
    %v463 = vmul.f32 %v379, %v451
    %v464 = vmul.f32 %v380, %v452
    %v465 = vmul.f32 %v381, %v453
    %v466 = vmul.f32 %v382, %v454
    %v467 = vmul.f32 %v383, %v455
    %v468 = vmul.f32 %v384, %v456
    %v469 = vmul.f32 %v385, %v457
    %v470 = vmul.f32 %v386, %v458
    %v471 = vmul.f32 %v387, %v459
    %v472 = vld [vmem:[%s4] sm:$0x1]
    %v474 = vlaneseq
    %v475 = vshrl.u32 %v474, 7
    %v476 = vsub.s32 0, %v475
    %v477 = vrot.slane %v472, %v476
    %v479 = vmul.f32 %v460, %v477
    %v480 = vmul.f32 %v461, %v477
    %v481 = vmul.f32 %v462, %v477
    %v482 = vmul.f32 %v463, %v477
    %v483 = vmul.f32 %v464, %v477
    %v484 = vmul.f32 %v465, %v477
    %v485 = vmul.f32 %v466, %v477
    %v486 = vmul.f32 %v467, %v477
    %v487 = vmul.f32 %v468, %v477
    %v488 = vmul.f32 %v469, %v477
    %v489 = vmul.f32 %v470, %v477
    %v490 = vmul.f32 %v471, %v477
    %v491 = vld [vmem:[%s5] sm:$0x1]
    %v493 = vlaneseq
    %v494 = vshrl.u32 %v493, 7
    %v495 = vsub.s32 0, %v494
    %v496 = vrot.slane %v491, %v495
    %v498 = vadd.f32 %v479, %v496
    %v499 = vadd.f32 %v480, %v496
    %v500 = vadd.f32 %v481, %v496
    %v501 = vadd.f32 %v482, %v496
    %v502 = vadd.f32 %v483, %v496
    %v503 = vadd.f32 %v484, %v496
    %v504 = vadd.f32 %v485, %v496
    %v505 = vadd.f32 %v486, %v496
    %v506 = vadd.f32 %v487, %v496
    %v507 = vadd.f32 %v488, %v496
    %v508 = vadd.f32 %v489, %v496
    %v509 = vadd.f32 %v490, %v496
    %v510 = vpack.c.bf16 %v499, %v498
    %v511 = vpack.c.bf16 %v501, %v500
    %v512 = vpack.c.bf16 %v503, %v502
    %v513 = vpack.c.bf16 %v505, %v504
    %v514 = vpack.c.bf16 %v507, %v506
    %v515 = vpack.c.bf16 %v509, %v508
    %v522 = vunpack.c.l.b16 %v510
    %v523 = vunpack.c.h.b16 %v510
    %v524 = vunpack.c.l.b16 %v511
    %v525 = vunpack.c.h.b16 %v511
    %v526 = vunpack.c.l.b16 %v512
    %v527 = vunpack.c.h.b16 %v512
    %v528 = vunpack.c.l.b16 %v513
    %v529 = vunpack.c.h.b16 %v513
    %v530 = vunpack.c.l.b16 %v514
    %v531 = vunpack.c.h.b16 %v514
    %v532 = vunpack.c.l.b16 %v515
    %v533 = vunpack.c.h.b16 %v515
    %v534 = vpack.c.b16 %v522, %v522
    %v535 = vpack.c.b16 %v523, %v523
    %v536 = vpack.c.b16 %v524, %v524
    %v537 = vpack.c.b16 %v525, %v525
    %v538 = vpack.c.b16 %v526, %v526
    %v539 = vpack.c.b16 %v527, %v527
    %v540 = vpack.c.b16 %v528, %v528
    %v541 = vpack.c.b16 %v529, %v529
    %v542 = vpack.c.b16 %v530, %v530
    %v543 = vpack.c.b16 %v531, %v531
    %v544 = vpack.c.b16 %v532, %v532
    %v545 = vpack.c.b16 %v533, %v533
    %558 = vst [vmem:[%s6] sm:$0xf] %v534
    %559 = vst [vmem:[%s6 + $0x4] sm:$0xf] %v535
    %560 = vst [vmem:[%s6 + $0x8] sm:$0xf] %v536
    %561 = vst [vmem:[%s6 + $0xc] sm:$0xf] %v537
    %562 = vst [vmem:[%s6 + $0x10] sm:$0xf] %v538
    %563 = vst [vmem:[%s6 + $0x14] sm:$0xf] %v539
    %564 = vst [vmem:[%s6 + $0x18] sm:$0xf] %v540
    %565 = vst [vmem:[%s6 + $0x1c] sm:$0xf] %v541
    %566 = vst [vmem:[%s6 + $0x20] sm:$0xf] %v542
    %567 = vst [vmem:[%s6 + $0x24] sm:$0xf] %v543
    %568 = vst [vmem:[%s6 + $0x28] sm:$0xf] %v544
    %569 = vst [vmem:[%s6 + $0x2c] sm:$0xf] %v545
  $region33: #{bert_encoder_forward.15} parent=0 // pred_fallthru
    _
  // Predicated region
  $region34: #{bert_encoder_forward.15} parent=0 // pred_check
    _
  $region35: #{bert_encoder_forward.15} parent=0 // pred_check_branch
    %571 = sbr.rel (0) target = $region37
  $region36: #{bert_encoder_forward.15} parent=0 // pred_region
    _
  $region37: #{bert_encoder_forward.15} parent=0 // pred_fallthru
    _
  // Predicated region
  $region38: #{bert_encoder_forward.15} parent=0 // pred_check
    _
  $region39: #{bert_encoder_forward.15} parent=0 // pred_check_branch
    %573 = sbr.rel (0) target = $region41
  $region40: #{bert_encoder_forward.15} parent=0 // pred_region
    _
  $region41: #{bert_encoder_forward.15} parent=0 // pred_fallthru
    _

// kernel: bert_encoder_forward.23
$region0: #{bert_encoder_forward.23}
  #allocation0 [shape = 'u32[]', space=smem, size = 0x4, offset = 0x4, fixed_abs, tag = 'smem constant byte address 0x4 - core index']
  #allocation1 [shape = 'u32[144,128]{1,0:T(1,128)}', space=vmem, size = 0x12000, scoped, tag = 'internal scratch']
  #allocation2 [shape = 'f32[6,128]{1,0:T(8,128)}', space=vmem, size = 0x1000, scoped, tag = 'scratch operand']
  %s0 = inlined_call_operand.vmem [shape: bf16[6,128], index: 0, kind: input, shape index: {}]
  %s1 = inlined_call_operand.vmem [shape: bf16[128,128], index: 1, kind: input, shape index: {}]
  %s2 = inlined_call_operand.vmem [shape: f32[1,128], index: 2, kind: input, shape index: {}]
  %s3 = inlined_call_operand.vmem [shape: f32[6,128], index: 3, kind: output, shape index: {}]
  %s4 = sld [smem:[#allocation0]]
  $region30: #{bert_encoder_forward.23} parent=0
    _
  %s6 = ssub.s32 1, %s4
  %s7 = scalar_select 0, %s6, %s4
  // Predicated region
  $region2: #{bert_encoder_forward.23} parent=0 // pred_check
    _
  $region3: #{bert_encoder_forward.23} parent=0 // pred_check_branch
    %9 = sbr.rel (0) target = $region5
  $region4: #{bert_encoder_forward.23} parent=0 // pred_region
    _
  $region5: #{bert_encoder_forward.23} parent=0 // pred_fallthru
    _
  // Predicated region
  $region6: #{bert_encoder_forward.23} parent=0 // pred_check
    _
  $region7: #{bert_encoder_forward.23} parent=0 // pred_check_branch
    %11 = sbr.rel (0) target = $region9
  $region8: #{bert_encoder_forward.23} parent=0 // pred_region
    _
  $region9: #{bert_encoder_forward.23} parent=0 // pred_fallthru
    _
  // Predicated region
  $region10: #{bert_encoder_forward.23} parent=0 // pred_check
    _
  $region11: #{bert_encoder_forward.23} parent=0 // pred_check_branch
    %13 = sbr.rel (0) target = $region13
  $region12: #{bert_encoder_forward.23} parent=0 // pred_region
    _
  $region13: #{bert_encoder_forward.23} parent=0 // pred_fallthru
    _
  %p15 = scmp.eq.s32.totalorder 0, 0
  // Predicated region
  $region14: #{bert_encoder_forward.23} parent=0 // pred_check
    %p16 = pneg %p15
  $region15: #{bert_encoder_forward.23} parent=0 // pred_check_branch
    %18 = sbr.rel (%p16) target = $region17
  $region16: #{bert_encoder_forward.23} parent=0 // pred_region
    %19 = vst [vmem:[#allocation2] sm:$0x3f] 0.0
  $region17: #{bert_encoder_forward.23} parent=0 // pred_fallthru
    _
  %v20 = vld [vmem:[#allocation2] sm:$0x3f]
  %v21 = vld [vmem:[%s0] sm:$0x7]
  %v22 = vld [vmem:[%s1] sm:$0xf]
  %v23 = vld [vmem:[%s1 + $0x4] sm:$0xf]
  %v24 = vld [vmem:[%s1 + $0x8] sm:$0xf]
  %v25 = vld [vmem:[%s1 + $0xc] sm:$0xf]
  %v26 = vld [vmem:[%s1 + $0x10] sm:$0xf]
  %v27 = vld [vmem:[%s1 + $0x14] sm:$0xf]
  %v28 = vld [vmem:[%s1 + $0x18] sm:$0xf]
  %v29 = vld [vmem:[%s1 + $0x1c] sm:$0xf]
  %v30 = vld [vmem:[%s1 + $0x20] sm:$0xf]
  %v31 = vld [vmem:[%s1 + $0x24] sm:$0xf]
  %v32 = vld [vmem:[%s1 + $0x28] sm:$0xf]
  %v33 = vld [vmem:[%s1 + $0x2c] sm:$0xf]
  %v34 = vld [vmem:[%s1 + $0x30] sm:$0xf]
  %v35 = vld [vmem:[%s1 + $0x34] sm:$0xf]
  %v36 = vld [vmem:[%s1 + $0x38] sm:$0xf]
  %v37 = vld [vmem:[%s1 + $0x3c] sm:$0xf]
  %v54 = vunpack.c.l.b16 %v22
  %v55 = vunpack.c.l.b16 %v23
  %v56 = vunpack.c.l.b16 %v24
  %v57 = vunpack.c.l.b16 %v25
  %v58 = vunpack.c.l.b16 %v26
  %v59 = vunpack.c.l.b16 %v27
  %v60 = vunpack.c.l.b16 %v28
  %v61 = vunpack.c.l.b16 %v29
  %v62 = vunpack.c.l.b16 %v30
  %v63 = vunpack.c.l.b16 %v31
  %v64 = vunpack.c.l.b16 %v32
  %v65 = vunpack.c.l.b16 %v33
  %v66 = vunpack.c.l.b16 %v34
  %v67 = vunpack.c.l.b16 %v35
  %v68 = vunpack.c.l.b16 %v36
  %v69 = vunpack.c.l.b16 %v37
  %v70 = vpack.c.b16 %v55, %v54
  %v71 = vpack.c.b16 %v57, %v56
  %v72 = vpack.c.b16 %v59, %v58
  %v73 = vpack.c.b16 %v61, %v60
  %v74 = vpack.c.b16 %v63, %v62
  %v75 = vpack.c.b16 %v65, %v64
  %v76 = vpack.c.b16 %v67, %v66
  %v77 = vpack.c.b16 %v69, %v68
  %86 = vmatprep.subr.bf16.mxu0 0
  %87 = vmatpush1.bf16.msra.mxu0 %v70
  %88 = vmatprep.subr.bf16.mxu0 0
  %89 = vmatpush1.bf16.msra.mxu0 %v71
  %90 = vmatprep.subr.bf16.mxu0 0
  %91 = vmatpush1.bf16.msra.mxu0 %v72
  %92 = vmatprep.subr.bf16.mxu0 0
  %93 = vmatpush1.bf16.msra.mxu0 %v73
  %94 = vmatprep.subr.bf16.mxu0 0
  %95 = vmatpush1.bf16.msra.mxu0 %v74
  %96 = vmatprep.subr.bf16.mxu0 0
  %97 = vmatpush1.bf16.msra.mxu0 %v75
  %98 = vmatprep.subr.bf16.mxu0 0
  %99 = vmatpush1.bf16.msra.mxu0 %v76
  %100 = vmatprep.subr.bf16.mxu0 0
  %101 = vmatpush1.bf16.msra.mxu0 %v77
  %102 = vmatprep.subr.bf16.mxu0 0
  %103 = vmatpush1.bf16.msra.mxu0 0
  %104 = vmatprep.subr.bf16.mxu0 0
  %105 = vmatpush1.bf16.msra.mxu0 0
  %106 = vmatprep.subr.bf16.mxu0 0
  %107 = vmatpush1.bf16.msra.mxu0 0
  %108 = vmatprep.subr.bf16.mxu0 0
  %109 = vmatpush1.bf16.msra.mxu0 0
  %110 = vmatprep.subr.bf16.mxu0 0
  %111 = vmatpush1.bf16.msra.mxu0 0
  %112 = vmatprep.subr.bf16.mxu0 0
  %113 = vmatpush1.bf16.msra.mxu0 0
  %114 = vmatprep.subr.bf16.mxu0 0
  %115 = vmatpush1.bf16.msra.mxu0 0
  %116 = vmatprep.subr.bf16.mxu0 0
  %117 = vmatpush1.bf16.msra.mxu0 0
  %118 = vmatprep.mubr.bf16.mxu0 0
  %119 = vmatmul.mubr.bf16.gmra.mrb[0].mxu0 %v21
  %v120 = vpop.f32.mrb[0].mxu0
  %v121 = vadd.f32 0.0, %v120
  %v122 = vpop.f32.mrb[0].mxu0
  %v123 = vpop.f32.mrb[0].mxu0
  %v124 = vpop.f32.mrb[0].mxu0
  %125 = vdwg.mxu0
  %v126 = vadd.f32 %v20, %v121
  %127 = vst [vmem:[#allocation2] sm:$0x3f] %v126
  // Predicated region
  $region18: #{bert_encoder_forward.23} parent=0 // pred_check
    %p128 = pneg %p15
  $region19: #{bert_encoder_forward.23} parent=0 // pred_check_branch
    %130 = sbr.rel (%p128) target = $region21
  $region20: #{bert_encoder_forward.23} parent=0 // pred_region
    %v131 = vld [vmem:[#allocation2] sm:$0x3f]
    %v132 = vld [vmem:[%s2] sm:$0x1]
    %v134 = vlaneseq
    %v135 = vshrl.u32 %v134, 7
    %v136 = vsub.s32 0, %v135
    %v137 = vrot.slane %v132, %v136
    %v139 = vadd.f32 %v131, %v137
    %v140 = vtanh.pop %v139
    %141 = vst [vmem:[%s3] sm:$0x3f] %v140
  $region21: #{bert_encoder_forward.23} parent=0 // pred_fallthru
    _
  // Predicated region
  $region22: #{bert_encoder_forward.23} parent=0 // pred_check
    _
  $region23: #{bert_encoder_forward.23} parent=0 // pred_check_branch
    %143 = sbr.rel (0) target = $region25
  $region24: #{bert_encoder_forward.23} parent=0 // pred_region
    _
  $region25: #{bert_encoder_forward.23} parent=0 // pred_fallthru
    _
  // Predicated region
  $region26: #{bert_encoder_forward.23} parent=0 // pred_check
    _
  $region27: #{bert_encoder_forward.23} parent=0 // pred_check_branch
    %145 = sbr.rel (0) target = $region29
  $region28: #{bert_encoder_forward.23} parent=0 // pred_region
    _
  $region29: #{bert_encoder_forward.23} parent=0 // pred_fallthru
    _

// kernel: bert_encoder_forward.16
$region0: #{bert_encoder_forward.16}
  #allocation0 [shape = 'u32[]', space=smem, size = 0x4, offset = 0x4, fixed_abs, tag = 'smem constant byte address 0x4 - core index']
  #allocation1 [shape = 'u32[144,128]{1,0:T(1,128)}', space=vmem, size = 0x12000, scoped, tag = 'internal scratch']
  #allocation2 [shape = 'f32[96,256]{1,0:T(8,128)}', space=vmem, size = 0x18000, scoped, tag = 'scratch operand']
  %s0 = inlined_call_operand.vmem [shape: bf16[96,128], index: 0, kind: input, shape index: {}]
  %s1 = inlined_call_operand.vmem [shape: bf16[128,256], index: 1, kind: input, shape index: {}]
  %s2 = inlined_call_operand.vmem [shape: f32[1,256], index: 2, kind: input, shape index: {}]
  %s3 = inlined_call_operand.vmem [shape: bf16[96,256], index: 3, kind: output, shape index: {}]
  %s4 = sld [smem:[#allocation0]]
  $region30: #{bert_encoder_forward.16} parent=0
    _
  %s6 = ssub.s32 1, %s4
  %s7 = scalar_select 0, %s6, %s4
  // Predicated region
  $region2: #{bert_encoder_forward.16} parent=0 // pred_check
    _
  $region3: #{bert_encoder_forward.16} parent=0 // pred_check_branch
    %9 = sbr.rel (0) target = $region5
  $region4: #{bert_encoder_forward.16} parent=0 // pred_region
    _
  $region5: #{bert_encoder_forward.16} parent=0 // pred_fallthru
    _
  // Predicated region
  $region6: #{bert_encoder_forward.16} parent=0 // pred_check
    _
  $region7: #{bert_encoder_forward.16} parent=0 // pred_check_branch
    %11 = sbr.rel (0) target = $region9
  $region8: #{bert_encoder_forward.16} parent=0 // pred_region
    _
  $region9: #{bert_encoder_forward.16} parent=0 // pred_fallthru
    _
  // Predicated region
  $region10: #{bert_encoder_forward.16} parent=0 // pred_check
    _
  $region11: #{bert_encoder_forward.16} parent=0 // pred_check_branch
    %13 = sbr.rel (0) target = $region13
  $region12: #{bert_encoder_forward.16} parent=0 // pred_region
    _
  $region13: #{bert_encoder_forward.16} parent=0 // pred_fallthru
    _
  %p15 = scmp.eq.s32.totalorder 0, 0
  // Predicated region
  $region14: #{bert_encoder_forward.16} parent=0 // pred_check
    %p16 = pneg %p15
  $region15: #{bert_encoder_forward.16} parent=0 // pred_check_branch
    %18 = sbr.rel (%p16) target = $region17
  $region16: #{bert_encoder_forward.16} parent=0 // pred_region
    %19 = vst [vmem:[#allocation2] sm:$0xff] 0.0
    %20 = vst [vmem:[#allocation2 + $0x8] sm:$0xff] 0.0
    %21 = vst [vmem:[#allocation2 + $0x10] sm:$0xff] 0.0
    %22 = vst [vmem:[#allocation2 + $0x18] sm:$0xff] 0.0
    %23 = vst [vmem:[#allocation2 + $0x20] sm:$0xff] 0.0
    %24 = vst [vmem:[#allocation2 + $0x28] sm:$0xff] 0.0
    %25 = vst [vmem:[#allocation2 + $0x30] sm:$0xff] 0.0
    %26 = vst [vmem:[#allocation2 + $0x38] sm:$0xff] 0.0
    %27 = vst [vmem:[#allocation2 + $0x40] sm:$0xff] 0.0
    %28 = vst [vmem:[#allocation2 + $0x48] sm:$0xff] 0.0
    %29 = vst [vmem:[#allocation2 + $0x50] sm:$0xff] 0.0
    %30 = vst [vmem:[#allocation2 + $0x58] sm:$0xff] 0.0
    %31 = vst [vmem:[#allocation2 + $0x60] sm:$0xff] 0.0
    %32 = vst [vmem:[#allocation2 + $0x68] sm:$0xff] 0.0
    %33 = vst [vmem:[#allocation2 + $0x70] sm:$0xff] 0.0
    %34 = vst [vmem:[#allocation2 + $0x78] sm:$0xff] 0.0
    %35 = vst [vmem:[#allocation2 + $0x80] sm:$0xff] 0.0
    %36 = vst [vmem:[#allocation2 + $0x88] sm:$0xff] 0.0
    %37 = vst [vmem:[#allocation2 + $0x90] sm:$0xff] 0.0
    %38 = vst [vmem:[#allocation2 + $0x98] sm:$0xff] 0.0
    %39 = vst [vmem:[#allocation2 + $0xa0] sm:$0xff] 0.0
    %40 = vst [vmem:[#allocation2 + $0xa8] sm:$0xff] 0.0
    %41 = vst [vmem:[#allocation2 + $0xb0] sm:$0xff] 0.0
    %42 = vst [vmem:[#allocation2 + $0xb8] sm:$0xff] 0.0
  $region17: #{bert_encoder_forward.16} parent=0 // pred_fallthru
    _
  %v43 = vld [vmem:[#allocation2] sm:$0xff]
  %v44 = vld [vmem:[#allocation2 + $0x8] sm:$0xff]
  %v45 = vld [vmem:[#allocation2 + $0x10] sm:$0xff]
  %v46 = vld [vmem:[#allocation2 + $0x18] sm:$0xff]
  %v47 = vld [vmem:[#allocation2 + $0x20] sm:$0xff]
  %v48 = vld [vmem:[#allocation2 + $0x28] sm:$0xff]
  %v49 = vld [vmem:[#allocation2 + $0x30] sm:$0xff]
  %v50 = vld [vmem:[#allocation2 + $0x38] sm:$0xff]
  %v51 = vld [vmem:[#allocation2 + $0x40] sm:$0xff]
  %v52 = vld [vmem:[#allocation2 + $0x48] sm:$0xff]
  %v53 = vld [vmem:[#allocation2 + $0x50] sm:$0xff]
  %v54 = vld [vmem:[#allocation2 + $0x58] sm:$0xff]
  %v55 = vld [vmem:[#allocation2 + $0x60] sm:$0xff]
  %v56 = vld [vmem:[#allocation2 + $0x68] sm:$0xff]
  %v57 = vld [vmem:[#allocation2 + $0x70] sm:$0xff]
  %v58 = vld [vmem:[#allocation2 + $0x78] sm:$0xff]
  %v59 = vld [vmem:[#allocation2 + $0x80] sm:$0xff]
  %v60 = vld [vmem:[#allocation2 + $0x88] sm:$0xff]
  %v61 = vld [vmem:[#allocation2 + $0x90] sm:$0xff]
  %v62 = vld [vmem:[#allocation2 + $0x98] sm:$0xff]
  %v63 = vld [vmem:[#allocation2 + $0xa0] sm:$0xff]
  %v64 = vld [vmem:[#allocation2 + $0xa8] sm:$0xff]
  %v65 = vld [vmem:[#allocation2 + $0xb0] sm:$0xff]
  %v66 = vld [vmem:[#allocation2 + $0xb8] sm:$0xff]
  %v67 = vld [vmem:[%s0] sm:$0xf]
  %v68 = vld [vmem:[%s0 + $0x4] sm:$0xf]
  %v69 = vld [vmem:[%s0 + $0x8] sm:$0xf]
  %v70 = vld [vmem:[%s0 + $0xc] sm:$0xf]
  %v71 = vld [vmem:[%s0 + $0x10] sm:$0xf]
  %v72 = vld [vmem:[%s0 + $0x14] sm:$0xf]
  %v73 = vld [vmem:[%s0 + $0x18] sm:$0xf]
  %v74 = vld [vmem:[%s0 + $0x1c] sm:$0xf]
  %v75 = vld [vmem:[%s0 + $0x20] sm:$0xf]
  %v76 = vld [vmem:[%s0 + $0x24] sm:$0xf]
  %v77 = vld [vmem:[%s0 + $0x28] sm:$0xf]
  %v78 = vld [vmem:[%s0 + $0x2c] sm:$0xf]
  %v79 = vld [vmem:[%s1] sm:$0xff]
  %v80 = vld [vmem:[%s1 + $0x8] sm:$0xff]
  %v81 = vld [vmem:[%s1 + $0x10] sm:$0xff]
  %v82 = vld [vmem:[%s1 + $0x18] sm:$0xff]
  %v83 = vld [vmem:[%s1 + $0x20] sm:$0xff]
  %v84 = vld [vmem:[%s1 + $0x28] sm:$0xff]
  %v85 = vld [vmem:[%s1 + $0x30] sm:$0xff]
  %v86 = vld [vmem:[%s1 + $0x38] sm:$0xff]
  %v87 = vld [vmem:[%s1 + $0x40] sm:$0xff]
  %v88 = vld [vmem:[%s1 + $0x48] sm:$0xff]
  %v89 = vld [vmem:[%s1 + $0x50] sm:$0xff]
  %v90 = vld [vmem:[%s1 + $0x58] sm:$0xff]
  %v91 = vld [vmem:[%s1 + $0x60] sm:$0xff]
  %v92 = vld [vmem:[%s1 + $0x68] sm:$0xff]
  %v93 = vld [vmem:[%s1 + $0x70] sm:$0xff]
  %v94 = vld [vmem:[%s1 + $0x78] sm:$0xff]
  %v107 = vunpack.c.l.b16 %v67
  %v108 = vunpack.c.l.b16 %v68
  %v109 = vunpack.c.l.b16 %v69
  %v110 = vunpack.c.l.b16 %v70
  %v111 = vunpack.c.l.b16 %v71
  %v112 = vunpack.c.l.b16 %v72
  %v113 = vunpack.c.l.b16 %v73
  %v114 = vunpack.c.l.b16 %v74
  %v115 = vunpack.c.l.b16 %v75
  %v116 = vunpack.c.l.b16 %v76
  %v117 = vunpack.c.l.b16 %v77
  %v118 = vunpack.c.l.b16 %v78
  %v119 = vpack.c.b16 %v108, %v107
  %v120 = vpack.c.b16 %v110, %v109
  %v121 = vpack.c.b16 %v112, %v111
  %v122 = vpack.c.b16 %v114, %v113
  %v123 = vpack.c.b16 %v116, %v115
  %v124 = vpack.c.b16 %v118, %v117
  %v147 = vunpack.c.l.b16 %v79
  %v148 = vunpack.c.h.b16 %v79
  %v149 = vunpack.c.l.b16 %v80
  %v150 = vunpack.c.h.b16 %v80
  %v151 = vunpack.c.l.b16 %v81
  %v152 = vunpack.c.h.b16 %v81
  %v153 = vunpack.c.l.b16 %v82
  %v154 = vunpack.c.h.b16 %v82
  %v155 = vunpack.c.l.b16 %v83
  %v156 = vunpack.c.h.b16 %v83
  %v157 = vunpack.c.l.b16 %v84
  %v158 = vunpack.c.h.b16 %v84
  %v159 = vunpack.c.l.b16 %v85
  %v160 = vunpack.c.h.b16 %v85
  %v161 = vunpack.c.l.b16 %v86
  %v162 = vunpack.c.h.b16 %v86
  %v163 = vunpack.c.l.b16 %v87
  %v164 = vunpack.c.h.b16 %v87
  %v165 = vunpack.c.l.b16 %v88
  %v166 = vunpack.c.h.b16 %v88
  %v167 = vunpack.c.l.b16 %v89
  %v168 = vunpack.c.h.b16 %v89
  %v169 = vunpack.c.l.b16 %v90
  %v170 = vunpack.c.h.b16 %v90
  %v171 = vunpack.c.l.b16 %v91
  %v172 = vunpack.c.h.b16 %v91
  %v173 = vunpack.c.l.b16 %v92
  %v174 = vunpack.c.h.b16 %v92
  %v175 = vunpack.c.l.b16 %v93
  %v176 = vunpack.c.h.b16 %v93
  %v177 = vunpack.c.l.b16 %v94
  %v178 = vunpack.c.h.b16 %v94
  %v179 = vpack.c.b16 %v149, %v147
  %v180 = vpack.c.b16 %v150, %v148
  %v181 = vpack.c.b16 %v153, %v151
  %v182 = vpack.c.b16 %v154, %v152
  %v183 = vpack.c.b16 %v157, %v155
  %v184 = vpack.c.b16 %v158, %v156
  %v185 = vpack.c.b16 %v161, %v159
  %v186 = vpack.c.b16 %v162, %v160
  %v187 = vpack.c.b16 %v165, %v163
  %v188 = vpack.c.b16 %v166, %v164
  %v189 = vpack.c.b16 %v169, %v167
  %v190 = vpack.c.b16 %v170, %v168
  %v191 = vpack.c.b16 %v173, %v171
  %v192 = vpack.c.b16 %v174, %v172
  %v193 = vpack.c.b16 %v177, %v175
  %v194 = vpack.c.b16 %v178, %v176
  %211 = vmatprep.subr.bf16.mxu0 %v180
  %212 = vmatpush1.bf16.msra.mxu0 %v179
  %213 = vmatprep.subr.bf16.mxu0 %v182
  %214 = vmatpush1.bf16.msra.mxu0 %v181
  %215 = vmatprep.subr.bf16.mxu0 %v184
  %216 = vmatpush1.bf16.msra.mxu0 %v183
  %217 = vmatprep.subr.bf16.mxu0 %v186
  %218 = vmatpush1.bf16.msra.mxu0 %v185
  %219 = vmatprep.subr.bf16.mxu0 %v188
  %220 = vmatpush1.bf16.msra.mxu0 %v187
  %221 = vmatprep.subr.bf16.mxu0 %v190
  %222 = vmatpush1.bf16.msra.mxu0 %v189
  %223 = vmatprep.subr.bf16.mxu0 %v192
  %224 = vmatpush1.bf16.msra.mxu0 %v191
  %225 = vmatprep.subr.bf16.mxu0 %v194
  %226 = vmatpush1.bf16.msra.mxu0 %v193
  %227 = vmatprep.subr.bf16.mxu0 0
  %228 = vmatpush1.bf16.msra.mxu0 0
  %229 = vmatprep.subr.bf16.mxu0 0
  %230 = vmatpush1.bf16.msra.mxu0 0
  %231 = vmatprep.subr.bf16.mxu0 0
  %232 = vmatpush1.bf16.msra.mxu0 0
  %233 = vmatprep.subr.bf16.mxu0 0
  %234 = vmatpush1.bf16.msra.mxu0 0
  %235 = vmatprep.subr.bf16.mxu0 0
  %236 = vmatpush1.bf16.msra.mxu0 0
  %237 = vmatprep.subr.bf16.mxu0 0
  %238 = vmatpush1.bf16.msra.mxu0 0
  %239 = vmatprep.subr.bf16.mxu0 0
  %240 = vmatpush1.bf16.msra.mxu0 0
  %241 = vmatprep.subr.bf16.mxu0 0
  %242 = vmatpush1.bf16.msra.mxu0 0
  %243 = vmatprep.mubr.bf16.mxu0 0
  %244 = vmatmul.mubr.bf16.gmra.mrb[0].mxu0 %v119
  %v245 = vpop.f32.mrb[0].mxu0
  %v246 = vadd.f32 0.0, %v245
  %v247 = vpop.f32.mrb[0].mxu0
  %v248 = vadd.f32 0.0, %v247
  %v249 = vpop.f32.mrb[0].mxu0
  %v250 = vadd.f32 0.0, %v249
  %v251 = vpop.f32.mrb[0].mxu0
  %v252 = vadd.f32 0.0, %v251
  %253 = vmatprep.mubr.bf16.mxu0 0
  %254 = vmatmul.mubr.bf16.gmra.mrb[0].mxu0 %v120
  %v255 = vpop.f32.mrb[0].mxu0
  %v256 = vadd.f32 0.0, %v255
  %v257 = vpop.f32.mrb[0].mxu0
  %v258 = vadd.f32 0.0, %v257
  %v259 = vpop.f32.mrb[0].mxu0
  %v260 = vadd.f32 0.0, %v259
  %v261 = vpop.f32.mrb[0].mxu0
  %v262 = vadd.f32 0.0, %v261
  %263 = vmatprep.mubr.bf16.mxu0 0
  %264 = vmatmul.mubr.bf16.gmra.mrb[0].mxu0 %v121
  %v265 = vpop.f32.mrb[0].mxu0
  %v266 = vadd.f32 0.0, %v265
  %v267 = vpop.f32.mrb[0].mxu0
  %v268 = vadd.f32 0.0, %v267
  %v269 = vpop.f32.mrb[0].mxu0
  %v270 = vadd.f32 0.0, %v269
  %v271 = vpop.f32.mrb[0].mxu0
  %v272 = vadd.f32 0.0, %v271
  %273 = vmatprep.mubr.bf16.mxu0 0
  %274 = vmatmul.mubr.bf16.gmra.mrb[0].mxu0 %v122
  %v275 = vpop.f32.mrb[0].mxu0
  %v276 = vadd.f32 0.0, %v275
  %v277 = vpop.f32.mrb[0].mxu0
  %v278 = vadd.f32 0.0, %v277
  %v279 = vpop.f32.mrb[0].mxu0
  %v280 = vadd.f32 0.0, %v279
  %v281 = vpop.f32.mrb[0].mxu0
  %v282 = vadd.f32 0.0, %v281
  %283 = vmatprep.mubr.bf16.mxu0 0
  %284 = vmatmul.mubr.bf16.gmra.mrb[0].mxu0 %v123
  %v285 = vpop.f32.mrb[0].mxu0
  %v286 = vadd.f32 0.0, %v285
  %v287 = vpop.f32.mrb[0].mxu0
  %v288 = vadd.f32 0.0, %v287
  %v289 = vpop.f32.mrb[0].mxu0
  %v290 = vadd.f32 0.0, %v289
  %v291 = vpop.f32.mrb[0].mxu0
  %v292 = vadd.f32 0.0, %v291
  %293 = vmatprep.mubr.bf16.mxu0 0
  %294 = vmatmul.mubr.bf16.gmra.mrb[0].mxu0 %v124
  %v295 = vpop.f32.mrb[0].mxu0
  %v296 = vadd.f32 0.0, %v295
  %v297 = vpop.f32.mrb[0].mxu0
  %v298 = vadd.f32 0.0, %v297
  %v299 = vpop.f32.mrb[0].mxu0
  %v300 = vadd.f32 0.0, %v299
  %v301 = vpop.f32.mrb[0].mxu0
  %v302 = vadd.f32 0.0, %v301
  %303 = vdwg.mxu0
  %v304 = vadd.f32 %v43, %v246
  %v305 = vadd.f32 %v44, %v248
  %v306 = vadd.f32 %v45, %v250
  %v307 = vadd.f32 %v46, %v252
  %v308 = vadd.f32 %v47, %v256
  %v309 = vadd.f32 %v48, %v258
  %v310 = vadd.f32 %v49, %v260
  %v311 = vadd.f32 %v50, %v262
  %v312 = vadd.f32 %v51, %v266
  %v313 = vadd.f32 %v52, %v268
  %v314 = vadd.f32 %v53, %v270
  %v315 = vadd.f32 %v54, %v272
  %v316 = vadd.f32 %v55, %v276
  %v317 = vadd.f32 %v56, %v278
  %v318 = vadd.f32 %v57, %v280
  %v319 = vadd.f32 %v58, %v282
  %v320 = vadd.f32 %v59, %v286
  %v321 = vadd.f32 %v60, %v288
  %v322 = vadd.f32 %v61, %v290
  %v323 = vadd.f32 %v62, %v292
  %v324 = vadd.f32 %v63, %v296
  %v325 = vadd.f32 %v64, %v298
  %v326 = vadd.f32 %v65, %v300
  %v327 = vadd.f32 %v66, %v302
  %328 = vst [vmem:[#allocation2] sm:$0xff] %v304
  %329 = vst [vmem:[#allocation2 + $0x8] sm:$0xff] %v305
  %330 = vst [vmem:[#allocation2 + $0x10] sm:$0xff] %v306
  %331 = vst [vmem:[#allocation2 + $0x18] sm:$0xff] %v307
  %332 = vst [vmem:[#allocation2 + $0x20] sm:$0xff] %v308
  %333 = vst [vmem:[#allocation2 + $0x28] sm:$0xff] %v309
  %334 = vst [vmem:[#allocation2 + $0x30] sm:$0xff] %v310
  %335 = vst [vmem:[#allocation2 + $0x38] sm:$0xff] %v311
  %336 = vst [vmem:[#allocation2 + $0x40] sm:$0xff] %v312
  %337 = vst [vmem:[#allocation2 + $0x48] sm:$0xff] %v313
  %338 = vst [vmem:[#allocation2 + $0x50] sm:$0xff] %v314
  %339 = vst [vmem:[#allocation2 + $0x58] sm:$0xff] %v315
  %340 = vst [vmem:[#allocation2 + $0x60] sm:$0xff] %v316
  %341 = vst [vmem:[#allocation2 + $0x68] sm:$0xff] %v317
  %342 = vst [vmem:[#allocation2 + $0x70] sm:$0xff] %v318
  %343 = vst [vmem:[#allocation2 + $0x78] sm:$0xff] %v319
  %344 = vst [vmem:[#allocation2 + $0x80] sm:$0xff] %v320
  %345 = vst [vmem:[#allocation2 + $0x88] sm:$0xff] %v321
  %346 = vst [vmem:[#allocation2 + $0x90] sm:$0xff] %v322
  %347 = vst [vmem:[#allocation2 + $0x98] sm:$0xff] %v323
  %348 = vst [vmem:[#allocation2 + $0xa0] sm:$0xff] %v324
  %349 = vst [vmem:[#allocation2 + $0xa8] sm:$0xff] %v325
  %350 = vst [vmem:[#allocation2 + $0xb0] sm:$0xff] %v326
  %351 = vst [vmem:[#allocation2 + $0xb8] sm:$0xff] %v327
  // Predicated region
  $region18: #{bert_encoder_forward.16} parent=0 // pred_check
    %p352 = pneg %p15
  $region19: #{bert_encoder_forward.16} parent=0 // pred_check_branch
    %354 = sbr.rel (%p352) target = $region21
  $region20: #{bert_encoder_forward.16} parent=0 // pred_region
    %v355 = vld [vmem:[#allocation2] sm:$0xff]
    %v356 = vld [vmem:[#allocation2 + $0x8] sm:$0xff]
    %v357 = vld [vmem:[#allocation2 + $0x10] sm:$0xff]
    %v358 = vld [vmem:[#allocation2 + $0x18] sm:$0xff]
    %v359 = vld [vmem:[#allocation2 + $0x20] sm:$0xff]
    %v360 = vld [vmem:[#allocation2 + $0x28] sm:$0xff]
    %v361 = vld [vmem:[#allocation2 + $0x30] sm:$0xff]
    %v362 = vld [vmem:[#allocation2 + $0x38] sm:$0xff]
    %v363 = vld [vmem:[#allocation2 + $0x40] sm:$0xff]
    %v364 = vld [vmem:[#allocation2 + $0x48] sm:$0xff]
    %v365 = vld [vmem:[#allocation2 + $0x50] sm:$0xff]
    %v366 = vld [vmem:[#allocation2 + $0x58] sm:$0xff]
    %v367 = vld [vmem:[#allocation2 + $0x60] sm:$0xff]
    %v368 = vld [vmem:[#allocation2 + $0x68] sm:$0xff]
    %v369 = vld [vmem:[#allocation2 + $0x70] sm:$0xff]
    %v370 = vld [vmem:[#allocation2 + $0x78] sm:$0xff]
    %v371 = vld [vmem:[#allocation2 + $0x80] sm:$0xff]
    %v372 = vld [vmem:[#allocation2 + $0x88] sm:$0xff]
    %v373 = vld [vmem:[#allocation2 + $0x90] sm:$0xff]
    %v374 = vld [vmem:[#allocation2 + $0x98] sm:$0xff]
    %v375 = vld [vmem:[#allocation2 + $0xa0] sm:$0xff]
    %v376 = vld [vmem:[#allocation2 + $0xa8] sm:$0xff]
    %v377 = vld [vmem:[#allocation2 + $0xb0] sm:$0xff]
    %v378 = vld [vmem:[#allocation2 + $0xb8] sm:$0xff]
    %v379 = vld [vmem:[%s2] sm:$0x3]
    %v381 = vlaneseq
    %v382 = vshrl.u32 %v381, 7
    %v383 = vsub.s32 0, %v382
    %v384 = vrot.slane %v379, %v383
    %v385 = vlaneseq
    %v386 = vshrl.u32 %v385, 7
    %v387 = vsub.s32 1, %v386
    %v388 = vrot.slane %v379, %v387
    %v391 = vadd.f32 %v355, %v384
    %v392 = vadd.f32 %v356, %v388
    %v393 = vadd.f32 %v357, %v384
    %v394 = vadd.f32 %v358, %v388
    %v395 = vadd.f32 %v359, %v384
    %v396 = vadd.f32 %v360, %v388
    %v397 = vadd.f32 %v361, %v384
    %v398 = vadd.f32 %v362, %v388
    %v399 = vadd.f32 %v363, %v384
    %v400 = vadd.f32 %v364, %v388
    %v401 = vadd.f32 %v365, %v384
    %v402 = vadd.f32 %v366, %v388
    %v403 = vadd.f32 %v367, %v384
    %v404 = vadd.f32 %v368, %v388
    %v405 = vadd.f32 %v369, %v384
    %v406 = vadd.f32 %v370, %v388
    %v407 = vadd.f32 %v371, %v384
    %v408 = vadd.f32 %v372, %v388
    %v409 = vadd.f32 %v373, %v384
    %v410 = vadd.f32 %v374, %v388
    %v411 = vadd.f32 %v375, %v384
    %v412 = vadd.f32 %v376, %v388
    %v413 = vadd.f32 %v377, %v384
    %v414 = vadd.f32 %v378, %v388
    %v415 = vmul.f32 %v391, %v391
    %v416 = vmul.f32 %v392, %v392
    %v417 = vmul.f32 %v393, %v393
    %v418 = vmul.f32 %v394, %v394
    %v419 = vmul.f32 %v395, %v395
    %v420 = vmul.f32 %v396, %v396
    %v421 = vmul.f32 %v397, %v397
    %v422 = vmul.f32 %v398, %v398
    %v423 = vmul.f32 %v399, %v399
    %v424 = vmul.f32 %v400, %v400
    %v425 = vmul.f32 %v401, %v401
    %v426 = vmul.f32 %v402, %v402
    %v427 = vmul.f32 %v403, %v403
    %v428 = vmul.f32 %v404, %v404
    %v429 = vmul.f32 %v405, %v405
    %v430 = vmul.f32 %v406, %v406
    %v431 = vmul.f32 %v407, %v407
    %v432 = vmul.f32 %v408, %v408
    %v433 = vmul.f32 %v409, %v409
    %v434 = vmul.f32 %v410, %v410
    %v435 = vmul.f32 %v411, %v411
    %v436 = vmul.f32 %v412, %v412
    %v437 = vmul.f32 %v413, %v413
    %v438 = vmul.f32 %v414, %v414
    %v439 = vmul.f32 %v391, %v415
    %v440 = vmul.f32 %v392, %v416
    %v441 = vmul.f32 %v393, %v417
    %v442 = vmul.f32 %v394, %v418
    %v443 = vmul.f32 %v395, %v419
    %v444 = vmul.f32 %v396, %v420
    %v445 = vmul.f32 %v397, %v421
    %v446 = vmul.f32 %v398, %v422
    %v447 = vmul.f32 %v399, %v423
    %v448 = vmul.f32 %v400, %v424
    %v449 = vmul.f32 %v401, %v425
    %v450 = vmul.f32 %v402, %v426
    %v451 = vmul.f32 %v403, %v427
    %v452 = vmul.f32 %v404, %v428
    %v453 = vmul.f32 %v405, %v429
    %v454 = vmul.f32 %v406, %v430
    %v455 = vmul.f32 %v407, %v431
    %v456 = vmul.f32 %v408, %v432
    %v457 = vmul.f32 %v409, %v433
    %v458 = vmul.f32 %v410, %v434
    %v459 = vmul.f32 %v411, %v435
    %v460 = vmul.f32 %v412, %v436
    %v461 = vmul.f32 %v413, %v437
    %v462 = vmul.f32 %v414, %v438
    %v463 = vmul.f32 %v439, 0.044715
    %v464 = vmul.f32 %v440, 0.044715
    %v465 = vmul.f32 %v441, 0.044715
    %v466 = vmul.f32 %v442, 0.044715
    %v467 = vmul.f32 %v443, 0.044715
    %v468 = vmul.f32 %v444, 0.044715
    %v469 = vmul.f32 %v445, 0.044715
    %v470 = vmul.f32 %v446, 0.044715
    %v471 = vmul.f32 %v447, 0.044715
    %v472 = vmul.f32 %v448, 0.044715
    %v473 = vmul.f32 %v449, 0.044715
    %v474 = vmul.f32 %v450, 0.044715
    %v475 = vmul.f32 %v451, 0.044715
    %v476 = vmul.f32 %v452, 0.044715
    %v477 = vmul.f32 %v453, 0.044715
    %v478 = vmul.f32 %v454, 0.044715
    %v479 = vmul.f32 %v455, 0.044715
    %v480 = vmul.f32 %v456, 0.044715
    %v481 = vmul.f32 %v457, 0.044715
    %v482 = vmul.f32 %v458, 0.044715
    %v483 = vmul.f32 %v459, 0.044715
    %v484 = vmul.f32 %v460, 0.044715
    %v485 = vmul.f32 %v461, 0.044715
    %v486 = vmul.f32 %v462, 0.044715
    %v487 = vadd.f32 %v391, %v463
    %v488 = vadd.f32 %v392, %v464
    %v489 = vadd.f32 %v393, %v465
    %v490 = vadd.f32 %v394, %v466
    %v491 = vadd.f32 %v395, %v467
    %v492 = vadd.f32 %v396, %v468
    %v493 = vadd.f32 %v397, %v469
    %v494 = vadd.f32 %v398, %v470
    %v495 = vadd.f32 %v399, %v471
    %v496 = vadd.f32 %v400, %v472
    %v497 = vadd.f32 %v401, %v473
    %v498 = vadd.f32 %v402, %v474
    %v499 = vadd.f32 %v403, %v475
    %v500 = vadd.f32 %v404, %v476
    %v501 = vadd.f32 %v405, %v477
    %v502 = vadd.f32 %v406, %v478
    %v503 = vadd.f32 %v407, %v479
    %v504 = vadd.f32 %v408, %v480
    %v505 = vadd.f32 %v409, %v481
    %v506 = vadd.f32 %v410, %v482
    %v507 = vadd.f32 %v411, %v483
    %v508 = vadd.f32 %v412, %v484
    %v509 = vadd.f32 %v413, %v485
    %v510 = vadd.f32 %v414, %v486
    %v511 = vmul.f32 %v487, 0.7978846
    %v512 = vmul.f32 %v488, 0.7978846
    %v513 = vmul.f32 %v489, 0.7978846
    %v514 = vmul.f32 %v490, 0.7978846
    %v515 = vmul.f32 %v491, 0.7978846
    %v516 = vmul.f32 %v492, 0.7978846
    %v517 = vmul.f32 %v493, 0.7978846
    %v518 = vmul.f32 %v494, 0.7978846
    %v519 = vmul.f32 %v495, 0.7978846
    %v520 = vmul.f32 %v496, 0.7978846
    %v521 = vmul.f32 %v497, 0.7978846
    %v522 = vmul.f32 %v498, 0.7978846
    %v523 = vmul.f32 %v499, 0.7978846
    %v524 = vmul.f32 %v500, 0.7978846
    %v525 = vmul.f32 %v501, 0.7978846
    %v526 = vmul.f32 %v502, 0.7978846
    %v527 = vmul.f32 %v503, 0.7978846
    %v528 = vmul.f32 %v504, 0.7978846
    %v529 = vmul.f32 %v505, 0.7978846
    %v530 = vmul.f32 %v506, 0.7978846
    %v531 = vmul.f32 %v507, 0.7978846
    %v532 = vmul.f32 %v508, 0.7978846
    %v533 = vmul.f32 %v509, 0.7978846
    %v534 = vmul.f32 %v510, 0.7978846
    %v535 = vtanh.pop %v511
    %v536 = vtanh.pop %v512
    %v537 = vtanh.pop %v513
    %v538 = vtanh.pop %v514
    %v539 = vtanh.pop %v515
    %v540 = vtanh.pop %v516
    %v541 = vtanh.pop %v517
    %v542 = vtanh.pop %v518
    %v543 = vtanh.pop %v519
    %v544 = vtanh.pop %v520
    %v545 = vtanh.pop %v521
    %v546 = vtanh.pop %v522
    %v547 = vtanh.pop %v523
    %v548 = vtanh.pop %v524
    %v549 = vtanh.pop %v525
    %v550 = vtanh.pop %v526
    %v551 = vtanh.pop %v527
    %v552 = vtanh.pop %v528
    %v553 = vtanh.pop %v529
    %v554 = vtanh.pop %v530
    %v555 = vtanh.pop %v531
    %v556 = vtanh.pop %v532
    %v557 = vtanh.pop %v533
    %v558 = vtanh.pop %v534
    %v559 = vadd.f32 %v535, 1.0
    %v560 = vadd.f32 %v536, 1.0
    %v561 = vadd.f32 %v537, 1.0
    %v562 = vadd.f32 %v538, 1.0
    %v563 = vadd.f32 %v539, 1.0
    %v564 = vadd.f32 %v540, 1.0
    %v565 = vadd.f32 %v541, 1.0
    %v566 = vadd.f32 %v542, 1.0
    %v567 = vadd.f32 %v543, 1.0
    %v568 = vadd.f32 %v544, 1.0
    %v569 = vadd.f32 %v545, 1.0
    %v570 = vadd.f32 %v546, 1.0
    %v571 = vadd.f32 %v547, 1.0
    %v572 = vadd.f32 %v548, 1.0
    %v573 = vadd.f32 %v549, 1.0
    %v574 = vadd.f32 %v550, 1.0
    %v575 = vadd.f32 %v551, 1.0
    %v576 = vadd.f32 %v552, 1.0
    %v577 = vadd.f32 %v553, 1.0
    %v578 = vadd.f32 %v554, 1.0
    %v579 = vadd.f32 %v555, 1.0
    %v580 = vadd.f32 %v556, 1.0
    %v581 = vadd.f32 %v557, 1.0
    %v582 = vadd.f32 %v558, 1.0
    %v583 = vmul.f32 %v559, 0.5
    %v584 = vmul.f32 %v560, 0.5
    %v585 = vmul.f32 %v561, 0.5
    %v586 = vmul.f32 %v562, 0.5
    %v587 = vmul.f32 %v563, 0.5
    %v588 = vmul.f32 %v564, 0.5
    %v589 = vmul.f32 %v565, 0.5
    %v590 = vmul.f32 %v566, 0.5
    %v591 = vmul.f32 %v567, 0.5
    %v592 = vmul.f32 %v568, 0.5
    %v593 = vmul.f32 %v569, 0.5
    %v594 = vmul.f32 %v570, 0.5
    %v595 = vmul.f32 %v571, 0.5
    %v596 = vmul.f32 %v572, 0.5
    %v597 = vmul.f32 %v573, 0.5
    %v598 = vmul.f32 %v574, 0.5
    %v599 = vmul.f32 %v575, 0.5
    %v600 = vmul.f32 %v576, 0.5
    %v601 = vmul.f32 %v577, 0.5
    %v602 = vmul.f32 %v578, 0.5
    %v603 = vmul.f32 %v579, 0.5
    %v604 = vmul.f32 %v580, 0.5
    %v605 = vmul.f32 %v581, 0.5
    %v606 = vmul.f32 %v582, 0.5
    %v607 = vmul.f32 %v391, %v583
    %v608 = vmul.f32 %v392, %v584
    %v609 = vmul.f32 %v393, %v585
    %v610 = vmul.f32 %v394, %v586
    %v611 = vmul.f32 %v395, %v587
    %v612 = vmul.f32 %v396, %v588
    %v613 = vmul.f32 %v397, %v589
    %v614 = vmul.f32 %v398, %v590
    %v615 = vmul.f32 %v399, %v591
    %v616 = vmul.f32 %v400, %v592
    %v617 = vmul.f32 %v401, %v593
    %v618 = vmul.f32 %v402, %v594
    %v619 = vmul.f32 %v403, %v595
    %v620 = vmul.f32 %v404, %v596
    %v621 = vmul.f32 %v405, %v597
    %v622 = vmul.f32 %v406, %v598
    %v623 = vmul.f32 %v407, %v599
    %v624 = vmul.f32 %v408, %v600
    %v625 = vmul.f32 %v409, %v601
    %v626 = vmul.f32 %v410, %v602
    %v627 = vmul.f32 %v411, %v603
    %v628 = vmul.f32 %v412, %v604
    %v629 = vmul.f32 %v413, %v605
    %v630 = vmul.f32 %v414, %v606
    %v631 = vpack.c.bf16 %v609, %v607
    %v632 = vpack.c.bf16 %v610, %v608
    %v633 = vpack.c.bf16 %v613, %v611
    %v634 = vpack.c.bf16 %v614, %v612
    %v635 = vpack.c.bf16 %v617, %v615
    %v636 = vpack.c.bf16 %v618, %v616
    %v637 = vpack.c.bf16 %v621, %v619
    %v638 = vpack.c.bf16 %v622, %v620
    %v639 = vpack.c.bf16 %v625, %v623
    %v640 = vpack.c.bf16 %v626, %v624
    %v641 = vpack.c.bf16 %v629, %v627
    %v642 = vpack.c.bf16 %v630, %v628
    %v655 = vunpack.c.l.b16 %v631
    %v656 = vunpack.c.l.b16 %v632
    %v657 = vunpack.c.h.b16 %v631
    %v658 = vunpack.c.h.b16 %v632
    %v659 = vunpack.c.l.b16 %v633
    %v660 = vunpack.c.l.b16 %v634
    %v661 = vunpack.c.h.b16 %v633
    %v662 = vunpack.c.h.b16 %v634
    %v663 = vunpack.c.l.b16 %v635
    %v664 = vunpack.c.l.b16 %v636
    %v665 = vunpack.c.h.b16 %v635
    %v666 = vunpack.c.h.b16 %v636
    %v667 = vunpack.c.l.b16 %v637
    %v668 = vunpack.c.l.b16 %v638
    %v669 = vunpack.c.h.b16 %v637
    %v670 = vunpack.c.h.b16 %v638
    %v671 = vunpack.c.l.b16 %v639
    %v672 = vunpack.c.l.b16 %v640
    %v673 = vunpack.c.h.b16 %v639
    %v674 = vunpack.c.h.b16 %v640
    %v675 = vunpack.c.l.b16 %v641
    %v676 = vunpack.c.l.b16 %v642
    %v677 = vunpack.c.h.b16 %v641
    %v678 = vunpack.c.h.b16 %v642
    %v679 = vpack.c.b16 %v656, %v655
    %v680 = vpack.c.b16 %v658, %v657
    %v681 = vpack.c.b16 %v660, %v659
    %v682 = vpack.c.b16 %v662, %v661
    %v683 = vpack.c.b16 %v664, %v663
    %v684 = vpack.c.b16 %v666, %v665
    %v685 = vpack.c.b16 %v668, %v667
    %v686 = vpack.c.b16 %v670, %v669
    %v687 = vpack.c.b16 %v672, %v671
    %v688 = vpack.c.b16 %v674, %v673
    %v689 = vpack.c.b16 %v676, %v675
    %v690 = vpack.c.b16 %v678, %v677
    %703 = vst [vmem:[%s3] sm:$0xff] %v679
    %704 = vst [vmem:[%s3 + $0x8] sm:$0xff] %v680
    %705 = vst [vmem:[%s3 + $0x10] sm:$0xff] %v681
    %706 = vst [vmem:[%s3 + $0x18] sm:$0xff] %v682
    %707 = vst [vmem:[%s3 + $0x20] sm:$0xff] %v683
    %708 = vst [vmem:[%s3 + $0x28] sm:$0xff] %v684
    %709 = vst [vmem:[%s3 + $0x30] sm:$0xff] %v685
    %710 = vst [vmem:[%s3 + $0x38] sm:$0xff] %v686
    %711 = vst [vmem:[%s3 + $0x40] sm:$0xff] %v687
    %712 = vst [vmem:[%s3 + $0x48] sm:$0xff] %v688
    %713 = vst [vmem:[%s3 + $0x50] sm:$0xff] %v689
    %714 = vst [vmem:[%s3 + $0x58] sm:$0xff] %v690
  $region21: #{bert_encoder_forward.16} parent=0 // pred_fallthru
    _
  // Predicated region
  $region22: #{bert_encoder_forward.16} parent=0 // pred_check
    _
  $region23: #{bert_encoder_forward.16} parent=0 // pred_check_branch
    %716 = sbr.rel (0) target = $region25
  $region24: #{bert_encoder_forward.16} parent=0 // pred_region
    _
  $region25: #{bert_encoder_forward.16} parent=0 // pred_fallthru
    _
  // Predicated region
  $region26: #{bert_encoder_forward.16} parent=0 // pred_check
    _
  $region27: #{bert_encoder_forward.16} parent=0 // pred_check_branch
    %718 = sbr.rel (0) target = $region29
  $region28: #{bert_encoder_forward.16} parent=0 // pred_region
    _
  $region29: #{bert_encoder_forward.16} parent=0 // pred_fallthru
    _

// kernel: bert_encoder_forward.17
$region0: #{bert_encoder_forward.17}
  #allocation0 [shape = 'u32[]', space=smem, size = 0x4, offset = 0x4, fixed_abs, tag = 'smem constant byte address 0x4 - core index']
  #allocation1 [shape = 'u32[144,128]{1,0:T(1,128)}', space=vmem, size = 0x12000, scoped, tag = 'internal scratch']
  #allocation2 [shape = 'f32[96,128]{1,0:T(8,128)}', space=vmem, size = 0xc000, scoped, tag = 'scratch operand']
  %s0 = inlined_call_operand.vmem [shape: bf16[96,256], index: 0, kind: input, shape index: {}]
  %s1 = inlined_call_operand.vmem [shape: bf16[256,128], index: 1, kind: input, shape index: {}]
  %s2 = inlined_call_operand.vmem [shape: f32[1,128], index: 2, kind: input, shape index: {}]
  %s3 = inlined_call_operand.vmem [shape: bf16[96,128], index: 3, kind: input, shape index: {}]
  %s4 = inlined_call_operand.vmem [shape: f32[1,128], index: 4, kind: input, shape index: {}]
  %s5 = inlined_call_operand.vmem [shape: f32[1,128], index: 5, kind: input, shape index: {}]
  %s6 = inlined_call_operand.vmem [shape: bf16[96,128], index: 6, kind: output, shape index: {}]
  %s7 = sld [smem:[#allocation0]]
  $region42: #{bert_encoder_forward.17} parent=0
    _
  %s9 = ssub.s32 1, %s7
  %s10 = scalar_select 0, %s9, %s7
  // Predicated region
  $region2: #{bert_encoder_forward.17} parent=0 // pred_check
    _
  $region3: #{bert_encoder_forward.17} parent=0 // pred_check_branch
    %12 = sbr.rel (0) target = $region5
  $region4: #{bert_encoder_forward.17} parent=0 // pred_region
    _
  $region5: #{bert_encoder_forward.17} parent=0 // pred_fallthru
    _
  // Predicated region
  $region6: #{bert_encoder_forward.17} parent=0 // pred_check
    _
  $region7: #{bert_encoder_forward.17} parent=0 // pred_check_branch
    %14 = sbr.rel (0) target = $region9
  $region8: #{bert_encoder_forward.17} parent=0 // pred_region
    _
  $region9: #{bert_encoder_forward.17} parent=0 // pred_fallthru
    _
  // Predicated region
  $region10: #{bert_encoder_forward.17} parent=0 // pred_check
    _
  $region11: #{bert_encoder_forward.17} parent=0 // pred_check_branch
    %16 = sbr.rel (0) target = $region13
  $region12: #{bert_encoder_forward.17} parent=0 // pred_region
    _
  $region13: #{bert_encoder_forward.17} parent=0 // pred_fallthru
    _
  // Predicated region
  $region14: #{bert_encoder_forward.17} parent=0 // pred_check
    _
  $region15: #{bert_encoder_forward.17} parent=0 // pred_check_branch
    %18 = sbr.rel (0) target = $region17
  $region16: #{bert_encoder_forward.17} parent=0 // pred_region
    _
  $region17: #{bert_encoder_forward.17} parent=0 // pred_fallthru
    _
  // Predicated region
  $region18: #{bert_encoder_forward.17} parent=0 // pred_check
    _
  $region19: #{bert_encoder_forward.17} parent=0 // pred_check_branch
    %20 = sbr.rel (0) target = $region21
  $region20: #{bert_encoder_forward.17} parent=0 // pred_region
    _
  $region21: #{bert_encoder_forward.17} parent=0 // pred_fallthru
    _
  // Predicated region
  $region22: #{bert_encoder_forward.17} parent=0 // pred_check
    _
  $region23: #{bert_encoder_forward.17} parent=0 // pred_check_branch
    %22 = sbr.rel (0) target = $region25
  $region24: #{bert_encoder_forward.17} parent=0 // pred_region
    _
  $region25: #{bert_encoder_forward.17} parent=0 // pred_fallthru
    _
  %p24 = scmp.eq.s32.totalorder 0, 0
  // Predicated region
  $region26: #{bert_encoder_forward.17} parent=0 // pred_check
    %p25 = pneg %p24
  $region27: #{bert_encoder_forward.17} parent=0 // pred_check_branch
    %27 = sbr.rel (%p25) target = $region29
  $region28: #{bert_encoder_forward.17} parent=0 // pred_region
    %28 = vst [vmem:[#allocation2] sm:$0xff] 0.0
    %29 = vst [vmem:[#allocation2 + $0x8] sm:$0xff] 0.0
    %30 = vst [vmem:[#allocation2 + $0x10] sm:$0xff] 0.0
    %31 = vst [vmem:[#allocation2 + $0x18] sm:$0xff] 0.0
    %32 = vst [vmem:[#allocation2 + $0x20] sm:$0xff] 0.0
    %33 = vst [vmem:[#allocation2 + $0x28] sm:$0xff] 0.0
    %34 = vst [vmem:[#allocation2 + $0x30] sm:$0xff] 0.0
    %35 = vst [vmem:[#allocation2 + $0x38] sm:$0xff] 0.0
    %36 = vst [vmem:[#allocation2 + $0x40] sm:$0xff] 0.0
    %37 = vst [vmem:[#allocation2 + $0x48] sm:$0xff] 0.0
    %38 = vst [vmem:[#allocation2 + $0x50] sm:$0xff] 0.0
    %39 = vst [vmem:[#allocation2 + $0x58] sm:$0xff] 0.0
  $region29: #{bert_encoder_forward.17} parent=0 // pred_fallthru
    _
  %v40 = vld [vmem:[#allocation2] sm:$0xff]
  %v41 = vld [vmem:[#allocation2 + $0x8] sm:$0xff]
  %v42 = vld [vmem:[#allocation2 + $0x10] sm:$0xff]
  %v43 = vld [vmem:[#allocation2 + $0x18] sm:$0xff]
  %v44 = vld [vmem:[#allocation2 + $0x20] sm:$0xff]
  %v45 = vld [vmem:[#allocation2 + $0x28] sm:$0xff]
  %v46 = vld [vmem:[#allocation2 + $0x30] sm:$0xff]
  %v47 = vld [vmem:[#allocation2 + $0x38] sm:$0xff]
  %v48 = vld [vmem:[#allocation2 + $0x40] sm:$0xff]
  %v49 = vld [vmem:[#allocation2 + $0x48] sm:$0xff]
  %v50 = vld [vmem:[#allocation2 + $0x50] sm:$0xff]
  %v51 = vld [vmem:[#allocation2 + $0x58] sm:$0xff]
  %v52 = vld [vmem:[%s0] sm:$0xff]
  %v53 = vld [vmem:[%s0 + $0x8] sm:$0xff]
  %v54 = vld [vmem:[%s0 + $0x10] sm:$0xff]
  %v55 = vld [vmem:[%s0 + $0x18] sm:$0xff]
  %v56 = vld [vmem:[%s0 + $0x20] sm:$0xff]
  %v57 = vld [vmem:[%s0 + $0x28] sm:$0xff]
  %v58 = vld [vmem:[%s0 + $0x30] sm:$0xff]
  %v59 = vld [vmem:[%s0 + $0x38] sm:$0xff]
  %v60 = vld [vmem:[%s0 + $0x40] sm:$0xff]
  %v61 = vld [vmem:[%s0 + $0x48] sm:$0xff]
  %v62 = vld [vmem:[%s0 + $0x50] sm:$0xff]
  %v63 = vld [vmem:[%s0 + $0x58] sm:$0xff]
  %v64 = vld [vmem:[%s1] sm:$0xf]
  %v65 = vld [vmem:[%s1 + $0x4] sm:$0xf]
  %v66 = vld [vmem:[%s1 + $0x8] sm:$0xf]
  %v67 = vld [vmem:[%s1 + $0xc] sm:$0xf]
  %v68 = vld [vmem:[%s1 + $0x10] sm:$0xf]
  %v69 = vld [vmem:[%s1 + $0x14] sm:$0xf]
  %v70 = vld [vmem:[%s1 + $0x18] sm:$0xf]
  %v71 = vld [vmem:[%s1 + $0x1c] sm:$0xf]
  %v72 = vld [vmem:[%s1 + $0x20] sm:$0xf]
  %v73 = vld [vmem:[%s1 + $0x24] sm:$0xf]
  %v74 = vld [vmem:[%s1 + $0x28] sm:$0xf]
  %v75 = vld [vmem:[%s1 + $0x2c] sm:$0xf]
  %v76 = vld [vmem:[%s1 + $0x30] sm:$0xf]
  %v77 = vld [vmem:[%s1 + $0x34] sm:$0xf]
  %v78 = vld [vmem:[%s1 + $0x38] sm:$0xf]
  %v79 = vld [vmem:[%s1 + $0x3c] sm:$0xf]
  %v80 = vld [vmem:[%s1 + $0x40] sm:$0xf]
  %v81 = vld [vmem:[%s1 + $0x44] sm:$0xf]
  %v82 = vld [vmem:[%s1 + $0x48] sm:$0xf]
  %v83 = vld [vmem:[%s1 + $0x4c] sm:$0xf]
  %v84 = vld [vmem:[%s1 + $0x50] sm:$0xf]
  %v85 = vld [vmem:[%s1 + $0x54] sm:$0xf]
  %v86 = vld [vmem:[%s1 + $0x58] sm:$0xf]
  %v87 = vld [vmem:[%s1 + $0x5c] sm:$0xf]
  %v88 = vld [vmem:[%s1 + $0x60] sm:$0xf]
  %v89 = vld [vmem:[%s1 + $0x64] sm:$0xf]
  %v90 = vld [vmem:[%s1 + $0x68] sm:$0xf]
  %v91 = vld [vmem:[%s1 + $0x6c] sm:$0xf]
  %v92 = vld [vmem:[%s1 + $0x70] sm:$0xf]
  %v93 = vld [vmem:[%s1 + $0x74] sm:$0xf]
  %v94 = vld [vmem:[%s1 + $0x78] sm:$0xf]
  %v95 = vld [vmem:[%s1 + $0x7c] sm:$0xf]
  %v108 = vunpack.c.l.b16 %v52
  %v109 = vunpack.c.h.b16 %v52
  %v110 = vunpack.c.l.b16 %v53
  %v111 = vunpack.c.h.b16 %v53
  %v112 = vunpack.c.l.b16 %v54
  %v113 = vunpack.c.h.b16 %v54
  %v114 = vunpack.c.l.b16 %v55
  %v115 = vunpack.c.h.b16 %v55
  %v116 = vunpack.c.l.b16 %v56
  %v117 = vunpack.c.h.b16 %v56
  %v118 = vunpack.c.l.b16 %v57
  %v119 = vunpack.c.h.b16 %v57
  %v120 = vunpack.c.l.b16 %v58
  %v121 = vunpack.c.h.b16 %v58
  %v122 = vunpack.c.l.b16 %v59
  %v123 = vunpack.c.h.b16 %v59
  %v124 = vunpack.c.l.b16 %v60
  %v125 = vunpack.c.h.b16 %v60
  %v126 = vunpack.c.l.b16 %v61
  %v127 = vunpack.c.h.b16 %v61
  %v128 = vunpack.c.l.b16 %v62
  %v129 = vunpack.c.h.b16 %v62
  %v130 = vunpack.c.l.b16 %v63
  %v131 = vunpack.c.h.b16 %v63
  %v132 = vpack.c.b16 %v110, %v108
  %v133 = vpack.c.b16 %v111, %v109
  %v134 = vpack.c.b16 %v114, %v112
  %v135 = vpack.c.b16 %v115, %v113
  %v136 = vpack.c.b16 %v118, %v116
  %v137 = vpack.c.b16 %v119, %v117
  %v138 = vpack.c.b16 %v122, %v120
  %v139 = vpack.c.b16 %v123, %v121
  %v140 = vpack.c.b16 %v126, %v124
  %v141 = vpack.c.b16 %v127, %v125
  %v142 = vpack.c.b16 %v130, %v128
  %v143 = vpack.c.b16 %v131, %v129
  %v188 = vunpack.c.l.b16 %v64
  %v189 = vunpack.c.l.b16 %v65
  %v190 = vunpack.c.l.b16 %v66
  %v191 = vunpack.c.l.b16 %v67
  %v192 = vunpack.c.l.b16 %v68
  %v193 = vunpack.c.l.b16 %v69
  %v194 = vunpack.c.l.b16 %v70
  %v195 = vunpack.c.l.b16 %v71
  %v196 = vunpack.c.l.b16 %v72
  %v197 = vunpack.c.l.b16 %v73
  %v198 = vunpack.c.l.b16 %v74
  %v199 = vunpack.c.l.b16 %v75
  %v200 = vunpack.c.l.b16 %v76
  %v201 = vunpack.c.l.b16 %v77
  %v202 = vunpack.c.l.b16 %v78
  %v203 = vunpack.c.l.b16 %v79
  %v204 = vunpack.c.l.b16 %v80
  %v205 = vunpack.c.l.b16 %v81
  %v206 = vunpack.c.l.b16 %v82
  %v207 = vunpack.c.l.b16 %v83
  %v208 = vunpack.c.l.b16 %v84
  %v209 = vunpack.c.l.b16 %v85
  %v210 = vunpack.c.l.b16 %v86
  %v211 = vunpack.c.l.b16 %v87
  %v212 = vunpack.c.l.b16 %v88
  %v213 = vunpack.c.l.b16 %v89
  %v214 = vunpack.c.l.b16 %v90
  %v215 = vunpack.c.l.b16 %v91
  %v216 = vunpack.c.l.b16 %v92
  %v217 = vunpack.c.l.b16 %v93
  %v218 = vunpack.c.l.b16 %v94
  %v219 = vunpack.c.l.b16 %v95
  %v220 = vpack.c.b16 %v189, %v188
  %v221 = vpack.c.b16 %v191, %v190
  %v222 = vpack.c.b16 %v193, %v192
  %v223 = vpack.c.b16 %v195, %v194
  %v224 = vpack.c.b16 %v197, %v196
  %v225 = vpack.c.b16 %v199, %v198
  %v226 = vpack.c.b16 %v201, %v200
  %v227 = vpack.c.b16 %v203, %v202
  %v228 = vpack.c.b16 %v205, %v204
  %v229 = vpack.c.b16 %v207, %v206
  %v230 = vpack.c.b16 %v209, %v208
  %v231 = vpack.c.b16 %v211, %v210
  %v232 = vpack.c.b16 %v213, %v212
  %v233 = vpack.c.b16 %v215, %v214
  %v234 = vpack.c.b16 %v217, %v216
  %v235 = vpack.c.b16 %v219, %v218
  %252 = vmatprep.subr.bf16.mxu0 0
  %253 = vmatpush1.bf16.msra.mxu0 %v220
  %254 = vmatprep.subr.bf16.mxu0 0
  %255 = vmatpush1.bf16.msra.mxu0 %v221
  %256 = vmatprep.subr.bf16.mxu0 0
  %257 = vmatpush1.bf16.msra.mxu0 %v222
  %258 = vmatprep.subr.bf16.mxu0 0
  %259 = vmatpush1.bf16.msra.mxu0 %v223
  %260 = vmatprep.subr.bf16.mxu0 0
  %261 = vmatpush1.bf16.msra.mxu0 %v224
  %262 = vmatprep.subr.bf16.mxu0 0
  %263 = vmatpush1.bf16.msra.mxu0 %v225
  %264 = vmatprep.subr.bf16.mxu0 0
  %265 = vmatpush1.bf16.msra.mxu0 %v226
  %266 = vmatprep.subr.bf16.mxu0 0
  %267 = vmatpush1.bf16.msra.mxu0 %v227
  %268 = vmatprep.subr.bf16.mxu0 0
  %269 = vmatpush1.bf16.msra.mxu0 %v228
  %270 = vmatprep.subr.bf16.mxu0 0
  %271 = vmatpush1.bf16.msra.mxu0 %v229
  %272 = vmatprep.subr.bf16.mxu0 0
  %273 = vmatpush1.bf16.msra.mxu0 %v230
  %274 = vmatprep.subr.bf16.mxu0 0
  %275 = vmatpush1.bf16.msra.mxu0 %v231
  %276 = vmatprep.subr.bf16.mxu0 0
  %277 = vmatpush1.bf16.msra.mxu0 %v232
  %278 = vmatprep.subr.bf16.mxu0 0
  %279 = vmatpush1.bf16.msra.mxu0 %v233
  %280 = vmatprep.subr.bf16.mxu0 0
  %281 = vmatpush1.bf16.msra.mxu0 %v234
  %282 = vmatprep.subr.bf16.mxu0 0
  %283 = vmatpush1.bf16.msra.mxu0 %v235
  %284 = vmatprep.mubr.bf16.mxu0 %v133
  %285 = vmatmul.mubr.bf16.gmra.mrb[0].mxu0 %v132
  %v286 = vpop.f32.mrb[0].mxu0
  %v287 = vadd.f32 0.0, %v286
  %v288 = vpop.f32.mrb[0].mxu0
  %v289 = vpop.f32.mrb[0].mxu0
  %v290 = vadd.f32 0.0, %v289
  %v291 = vpop.f32.mrb[0].mxu0
  %292 = vmatprep.mubr.bf16.mxu0 %v135
  %293 = vmatmul.mubr.bf16.gmra.mrb[0].mxu0 %v134
  %v294 = vpop.f32.mrb[0].mxu0
  %v295 = vadd.f32 0.0, %v294
  %v296 = vpop.f32.mrb[0].mxu0
  %v297 = vpop.f32.mrb[0].mxu0
  %v298 = vadd.f32 0.0, %v297
  %v299 = vpop.f32.mrb[0].mxu0
  %300 = vmatprep.mubr.bf16.mxu0 %v137
  %301 = vmatmul.mubr.bf16.gmra.mrb[0].mxu0 %v136
  %v302 = vpop.f32.mrb[0].mxu0
  %v303 = vadd.f32 0.0, %v302
  %v304 = vpop.f32.mrb[0].mxu0
  %v305 = vpop.f32.mrb[0].mxu0
  %v306 = vadd.f32 0.0, %v305
  %v307 = vpop.f32.mrb[0].mxu0
  %308 = vmatprep.mubr.bf16.mxu0 %v139
  %309 = vmatmul.mubr.bf16.gmra.mrb[0].mxu0 %v138
  %v310 = vpop.f32.mrb[0].mxu0
  %v311 = vadd.f32 0.0, %v310
  %v312 = vpop.f32.mrb[0].mxu0
  %v313 = vpop.f32.mrb[0].mxu0
  %v314 = vadd.f32 0.0, %v313
  %v315 = vpop.f32.mrb[0].mxu0
  %316 = vmatprep.mubr.bf16.mxu0 %v141
  %317 = vmatmul.mubr.bf16.gmra.mrb[0].mxu0 %v140
  %v318 = vpop.f32.mrb[0].mxu0
  %v319 = vadd.f32 0.0, %v318
  %v320 = vpop.f32.mrb[0].mxu0
  %v321 = vpop.f32.mrb[0].mxu0
  %v322 = vadd.f32 0.0, %v321
  %v323 = vpop.f32.mrb[0].mxu0
  %324 = vmatprep.mubr.bf16.mxu0 %v143
  %325 = vmatmul.mubr.bf16.gmra.mrb[0].mxu0 %v142
  %v326 = vpop.f32.mrb[0].mxu0
  %v327 = vadd.f32 0.0, %v326
  %v328 = vpop.f32.mrb[0].mxu0
  %v329 = vpop.f32.mrb[0].mxu0
  %v330 = vadd.f32 0.0, %v329
  %v331 = vpop.f32.mrb[0].mxu0
  %332 = vdwg.mxu0
  %v333 = vadd.f32 %v40, %v287
  %v334 = vadd.f32 %v41, %v290
  %v335 = vadd.f32 %v42, %v295
  %v336 = vadd.f32 %v43, %v298
  %v337 = vadd.f32 %v44, %v303
  %v338 = vadd.f32 %v45, %v306
  %v339 = vadd.f32 %v46, %v311
  %v340 = vadd.f32 %v47, %v314
  %v341 = vadd.f32 %v48, %v319
  %v342 = vadd.f32 %v49, %v322
  %v343 = vadd.f32 %v50, %v327
  %v344 = vadd.f32 %v51, %v330
  %345 = vst [vmem:[#allocation2] sm:$0xff] %v333
  %346 = vst [vmem:[#allocation2 + $0x8] sm:$0xff] %v334
  %347 = vst [vmem:[#allocation2 + $0x10] sm:$0xff] %v335
  %348 = vst [vmem:[#allocation2 + $0x18] sm:$0xff] %v336
  %349 = vst [vmem:[#allocation2 + $0x20] sm:$0xff] %v337
  %350 = vst [vmem:[#allocation2 + $0x28] sm:$0xff] %v338
  %351 = vst [vmem:[#allocation2 + $0x30] sm:$0xff] %v339
  %352 = vst [vmem:[#allocation2 + $0x38] sm:$0xff] %v340
  %353 = vst [vmem:[#allocation2 + $0x40] sm:$0xff] %v341
  %354 = vst [vmem:[#allocation2 + $0x48] sm:$0xff] %v342
  %355 = vst [vmem:[#allocation2 + $0x50] sm:$0xff] %v343
  %356 = vst [vmem:[#allocation2 + $0x58] sm:$0xff] %v344
  // Predicated region
  $region30: #{bert_encoder_forward.17} parent=0 // pred_check
    %p357 = pneg %p24
  $region31: #{bert_encoder_forward.17} parent=0 // pred_check_branch
    %359 = sbr.rel (%p357) target = $region33
  $region32: #{bert_encoder_forward.17} parent=0 // pred_region
    %v360 = vld [vmem:[#allocation2] sm:$0xff]
    %v361 = vld [vmem:[#allocation2 + $0x8] sm:$0xff]
    %v362 = vld [vmem:[#allocation2 + $0x10] sm:$0xff]
    %v363 = vld [vmem:[#allocation2 + $0x18] sm:$0xff]
    %v364 = vld [vmem:[#allocation2 + $0x20] sm:$0xff]
    %v365 = vld [vmem:[#allocation2 + $0x28] sm:$0xff]
    %v366 = vld [vmem:[#allocation2 + $0x30] sm:$0xff]
    %v367 = vld [vmem:[#allocation2 + $0x38] sm:$0xff]
    %v368 = vld [vmem:[#allocation2 + $0x40] sm:$0xff]
    %v369 = vld [vmem:[#allocation2 + $0x48] sm:$0xff]
    %v370 = vld [vmem:[#allocation2 + $0x50] sm:$0xff]
    %v371 = vld [vmem:[#allocation2 + $0x58] sm:$0xff]
    %v372 = vld [vmem:[%s2] sm:$0x1]
    %v374 = vlaneseq
    %v375 = vshrl.u32 %v374, 7
    %v376 = vsub.s32 0, %v375
    %v377 = vrot.slane %v372, %v376
    %v379 = vadd.f32 %v360, %v377
    %v380 = vadd.f32 %v361, %v377
    %v381 = vadd.f32 %v362, %v377
    %v382 = vadd.f32 %v363, %v377
    %v383 = vadd.f32 %v364, %v377
    %v384 = vadd.f32 %v365, %v377
    %v385 = vadd.f32 %v366, %v377
    %v386 = vadd.f32 %v367, %v377
    %v387 = vadd.f32 %v368, %v377
    %v388 = vadd.f32 %v369, %v377
    %v389 = vadd.f32 %v370, %v377
    %v390 = vadd.f32 %v371, %v377
    %v391 = vld [vmem:[%s3] sm:$0xf]
    %v392 = vld [vmem:[%s3 + $0x4] sm:$0xf]
    %v393 = vld [vmem:[%s3 + $0x8] sm:$0xf]
    %v394 = vld [vmem:[%s3 + $0xc] sm:$0xf]
    %v395 = vld [vmem:[%s3 + $0x10] sm:$0xf]
    %v396 = vld [vmem:[%s3 + $0x14] sm:$0xf]
    %v397 = vld [vmem:[%s3 + $0x18] sm:$0xf]
    %v398 = vld [vmem:[%s3 + $0x1c] sm:$0xf]
    %v399 = vld [vmem:[%s3 + $0x20] sm:$0xf]
    %v400 = vld [vmem:[%s3 + $0x24] sm:$0xf]
    %v401 = vld [vmem:[%s3 + $0x28] sm:$0xf]
    %v402 = vld [vmem:[%s3 + $0x2c] sm:$0xf]
    %v403 = vunpack.c.l.bf16 %v391
    %v404 = vunpack.c.l.bf16 %v392
    %v405 = vunpack.c.l.bf16 %v393
    %v406 = vunpack.c.l.bf16 %v394
    %v407 = vunpack.c.l.bf16 %v395
    %v408 = vunpack.c.l.bf16 %v396
    %v409 = vunpack.c.l.bf16 %v397
    %v410 = vunpack.c.l.bf16 %v398
    %v411 = vunpack.c.l.bf16 %v399
    %v412 = vunpack.c.l.bf16 %v400
    %v413 = vunpack.c.l.bf16 %v401
    %v414 = vunpack.c.l.bf16 %v402
    %v415 = vadd.f32 %v379, %v403
    %v416 = vadd.f32 %v380, %v404
    %v417 = vadd.f32 %v381, %v405
    %v418 = vadd.f32 %v382, %v406
    %v419 = vadd.f32 %v383, %v407
    %v420 = vadd.f32 %v384, %v408
    %v421 = vadd.f32 %v385, %v409
    %v422 = vadd.f32 %v386, %v410
    %v423 = vadd.f32 %v387, %v411
    %v424 = vadd.f32 %v388, %v412
    %v425 = vadd.f32 %v389, %v413
    %v426 = vadd.f32 %v390, %v414
    %427 = vadd.xlane.f32.xlu0 %v415
    %v428 = vpop.xlane.xlu0 %427
    %429 = vadd.xlane.f32.xlu0 %v416
    %v430 = vpop.xlane.xlu0 %429
    %431 = vadd.xlane.f32.xlu0 %v417
    %v432 = vpop.xlane.xlu0 %431
    %433 = vadd.xlane.f32.xlu0 %v418
    %v434 = vpop.xlane.xlu0 %433
    %435 = vadd.xlane.f32.xlu0 %v419
    %v436 = vpop.xlane.xlu0 %435
    %437 = vadd.xlane.f32.xlu0 %v420
    %v438 = vpop.xlane.xlu0 %437
    %439 = vadd.xlane.f32.xlu0 %v421
    %v440 = vpop.xlane.xlu0 %439
    %441 = vadd.xlane.f32.xlu0 %v422
    %v442 = vpop.xlane.xlu0 %441
    %443 = vadd.xlane.f32.xlu0 %v423
    %v444 = vpop.xlane.xlu0 %443
    %445 = vadd.xlane.f32.xlu0 %v424
    %v446 = vpop.xlane.xlu0 %445
    %447 = vadd.xlane.f32.xlu0 %v425
    %v448 = vpop.xlane.xlu0 %447
    %449 = vadd.xlane.f32.xlu0 %v426
    %v450 = vpop.xlane.xlu0 %449
    %v451 = vrcp.pop 128.0
    %v452 = vmul.f32 %v428, %v451
    %v453 = vmul.f32 %v430, %v451
    %v454 = vmul.f32 %v432, %v451
    %v455 = vmul.f32 %v434, %v451
    %v456 = vmul.f32 %v436, %v451
    %v457 = vmul.f32 %v438, %v451
    %v458 = vmul.f32 %v440, %v451
    %v459 = vmul.f32 %v442, %v451
    %v460 = vmul.f32 %v444, %v451
    %v461 = vmul.f32 %v446, %v451
    %v462 = vmul.f32 %v448, %v451
    %v463 = vmul.f32 %v450, %v451
    %v464 = vsub.f32 %v415, %v452
    %v465 = vsub.f32 %v416, %v453
    %v466 = vsub.f32 %v417, %v454
    %v467 = vsub.f32 %v418, %v455
    %v468 = vsub.f32 %v419, %v456
    %v469 = vsub.f32 %v420, %v457
    %v470 = vsub.f32 %v421, %v458
    %v471 = vsub.f32 %v422, %v459
    %v472 = vsub.f32 %v423, %v460
    %v473 = vsub.f32 %v424, %v461
    %v474 = vsub.f32 %v425, %v462
    %v475 = vsub.f32 %v426, %v463
    %v476 = vmul.f32 %v464, %v464
    %v477 = vmul.f32 %v465, %v465
    %v478 = vmul.f32 %v466, %v466
    %v479 = vmul.f32 %v467, %v467
    %v480 = vmul.f32 %v468, %v468
    %v481 = vmul.f32 %v469, %v469
    %v482 = vmul.f32 %v470, %v470
    %v483 = vmul.f32 %v471, %v471
    %v484 = vmul.f32 %v472, %v472
    %v485 = vmul.f32 %v473, %v473
    %v486 = vmul.f32 %v474, %v474
    %v487 = vmul.f32 %v475, %v475
    %488 = vadd.xlane.f32.xlu0 %v476
    %v489 = vpop.xlane.xlu0 %488
    %490 = vadd.xlane.f32.xlu0 %v477
    %v491 = vpop.xlane.xlu0 %490
    %492 = vadd.xlane.f32.xlu0 %v478
    %v493 = vpop.xlane.xlu0 %492
    %494 = vadd.xlane.f32.xlu0 %v479
    %v495 = vpop.xlane.xlu0 %494
    %496 = vadd.xlane.f32.xlu0 %v480
    %v497 = vpop.xlane.xlu0 %496
    %498 = vadd.xlane.f32.xlu0 %v481
    %v499 = vpop.xlane.xlu0 %498
    %500 = vadd.xlane.f32.xlu0 %v482
    %v501 = vpop.xlane.xlu0 %500
    %502 = vadd.xlane.f32.xlu0 %v483
    %v503 = vpop.xlane.xlu0 %502
    %504 = vadd.xlane.f32.xlu0 %v484
    %v505 = vpop.xlane.xlu0 %504
    %506 = vadd.xlane.f32.xlu0 %v485
    %v507 = vpop.xlane.xlu0 %506
    %508 = vadd.xlane.f32.xlu0 %v486
    %v509 = vpop.xlane.xlu0 %508
    %510 = vadd.xlane.f32.xlu0 %v487
    %v511 = vpop.xlane.xlu0 %510
    %v512 = vmul.f32 %v489, %v451
    %v513 = vmul.f32 %v491, %v451
    %v514 = vmul.f32 %v493, %v451
    %v515 = vmul.f32 %v495, %v451
    %v516 = vmul.f32 %v497, %v451
    %v517 = vmul.f32 %v499, %v451
    %v518 = vmul.f32 %v501, %v451
    %v519 = vmul.f32 %v503, %v451
    %v520 = vmul.f32 %v505, %v451
    %v521 = vmul.f32 %v507, %v451
    %v522 = vmul.f32 %v509, %v451
    %v523 = vmul.f32 %v511, %v451
    %v524 = vadd.f32 %v512, 1e-12
    %v525 = vadd.f32 %v513, 1e-12
    %v526 = vadd.f32 %v514, 1e-12
    %v527 = vadd.f32 %v515, 1e-12
    %v528 = vadd.f32 %v516, 1e-12
    %v529 = vadd.f32 %v517, 1e-12
    %v530 = vadd.f32 %v518, 1e-12
    %v531 = vadd.f32 %v519, 1e-12
    %v532 = vadd.f32 %v520, 1e-12
    %v533 = vadd.f32 %v521, 1e-12
    %v534 = vadd.f32 %v522, 1e-12
    %v535 = vadd.f32 %v523, 1e-12
    %v536 = vrsqrt.pop %v524
    %v537 = vrsqrt.pop %v525
    %v538 = vrsqrt.pop %v526
    %v539 = vrsqrt.pop %v527
    %v540 = vrsqrt.pop %v528
    %v541 = vrsqrt.pop %v529
    %v542 = vrsqrt.pop %v530
    %v543 = vrsqrt.pop %v531
    %v544 = vrsqrt.pop %v532
    %v545 = vrsqrt.pop %v533
    %v546 = vrsqrt.pop %v534
    %v547 = vrsqrt.pop %v535
    %v548 = vmul.f32 %v464, %v536
    %v549 = vmul.f32 %v465, %v537
    %v550 = vmul.f32 %v466, %v538
    %v551 = vmul.f32 %v467, %v539
    %v552 = vmul.f32 %v468, %v540
    %v553 = vmul.f32 %v469, %v541
    %v554 = vmul.f32 %v470, %v542
    %v555 = vmul.f32 %v471, %v543
    %v556 = vmul.f32 %v472, %v544
    %v557 = vmul.f32 %v473, %v545
    %v558 = vmul.f32 %v474, %v546
    %v559 = vmul.f32 %v475, %v547
    %v560 = vld [vmem:[%s4] sm:$0x1]
    %v562 = vlaneseq
    %v563 = vshrl.u32 %v562, 7
    %v564 = vsub.s32 0, %v563
    %v565 = vrot.slane %v560, %v564
    %v567 = vmul.f32 %v548, %v565
    %v568 = vmul.f32 %v549, %v565
    %v569 = vmul.f32 %v550, %v565
    %v570 = vmul.f32 %v551, %v565
    %v571 = vmul.f32 %v552, %v565
    %v572 = vmul.f32 %v553, %v565
    %v573 = vmul.f32 %v554, %v565
    %v574 = vmul.f32 %v555, %v565
    %v575 = vmul.f32 %v556, %v565
    %v576 = vmul.f32 %v557, %v565
    %v577 = vmul.f32 %v558, %v565
    %v578 = vmul.f32 %v559, %v565
    %v579 = vld [vmem:[%s5] sm:$0x1]
    %v581 = vlaneseq
    %v582 = vshrl.u32 %v581, 7
    %v583 = vsub.s32 0, %v582
    %v584 = vrot.slane %v579, %v583
    %v586 = vadd.f32 %v567, %v584
    %v587 = vadd.f32 %v568, %v584
    %v588 = vadd.f32 %v569, %v584
    %v589 = vadd.f32 %v570, %v584
    %v590 = vadd.f32 %v571, %v584
    %v591 = vadd.f32 %v572, %v584
    %v592 = vadd.f32 %v573, %v584
    %v593 = vadd.f32 %v574, %v584
    %v594 = vadd.f32 %v575, %v584
    %v595 = vadd.f32 %v576, %v584
    %v596 = vadd.f32 %v577, %v584
    %v597 = vadd.f32 %v578, %v584
    %v598 = vpack.c.bf16 %v587, %v586
    %v599 = vpack.c.bf16 %v589, %v588
    %v600 = vpack.c.bf16 %v591, %v590
    %v601 = vpack.c.bf16 %v593, %v592
    %v602 = vpack.c.bf16 %v595, %v594
    %v603 = vpack.c.bf16 %v597, %v596
    %v610 = vunpack.c.l.b16 %v598
    %v611 = vunpack.c.h.b16 %v598
    %v612 = vunpack.c.l.b16 %v599
    %v613 = vunpack.c.h.b16 %v599
    %v614 = vunpack.c.l.b16 %v600
    %v615 = vunpack.c.h.b16 %v600
    %v616 = vunpack.c.l.b16 %v601
    %v617 = vunpack.c.h.b16 %v601
    %v618 = vunpack.c.l.b16 %v602
    %v619 = vunpack.c.h.b16 %v602
    %v620 = vunpack.c.l.b16 %v603
    %v621 = vunpack.c.h.b16 %v603
    %v622 = vpack.c.b16 %v610, %v610
    %v623 = vpack.c.b16 %v611, %v611
    %v624 = vpack.c.b16 %v612, %v612
    %v625 = vpack.c.b16 %v613, %v613
    %v626 = vpack.c.b16 %v614, %v614
    %v627 = vpack.c.b16 %v615, %v615
    %v628 = vpack.c.b16 %v616, %v616
    %v629 = vpack.c.b16 %v617, %v617
    %v630 = vpack.c.b16 %v618, %v618
    %v631 = vpack.c.b16 %v619, %v619
    %v632 = vpack.c.b16 %v620, %v620
    %v633 = vpack.c.b16 %v621, %v621
    %646 = vst [vmem:[%s6] sm:$0xf] %v622
    %647 = vst [vmem:[%s6 + $0x4] sm:$0xf] %v623
    %648 = vst [vmem:[%s6 + $0x8] sm:$0xf] %v624
    %649 = vst [vmem:[%s6 + $0xc] sm:$0xf] %v625
    %650 = vst [vmem:[%s6 + $0x10] sm:$0xf] %v626
    %651 = vst [vmem:[%s6 + $0x14] sm:$0xf] %v627
    %652 = vst [vmem:[%s6 + $0x18] sm:$0xf] %v628
    %653 = vst [vmem:[%s6 + $0x1c] sm:$0xf] %v629
    %654 = vst [vmem:[%s6 + $0x20] sm:$0xf] %v630
    %655 = vst [vmem:[%s6 + $0x24] sm:$0xf] %v631
    %656 = vst [vmem:[%s6 + $0x28] sm:$0xf] %v632
    %657 = vst [vmem:[%s6 + $0x2c] sm:$0xf] %v633
  $region33: #{bert_encoder_forward.17} parent=0 // pred_fallthru
    _
  // Predicated region
  $region34: #{bert_encoder_forward.17} parent=0 // pred_check
    _
  $region35: #{bert_encoder_forward.17} parent=0 // pred_check_branch
    %659 = sbr.rel (0) target = $region37
  $region36: #{bert_encoder_forward.17} parent=0 // pred_region
    _
  $region37: #{bert_encoder_forward.17} parent=0 // pred_fallthru
    _
  // Predicated region
  $region38: #{bert_encoder_forward.17} parent=0 // pred_check
    _
  $region39: #{bert_encoder_forward.17} parent=0 // pred_check_branch
    %661 = sbr.rel (0) target = $region41
  $region40: #{bert_encoder_forward.17} parent=0 // pred_region
    _
  $region41: #{bert_encoder_forward.17} parent=0 // pred_fallthru
    _

</llo_original>
